<compile_context>
chip_gen: v5e
topology: v5e:2x2
jax: 0.10.0
libtpu: 0.0.40
codegen_flags: <defaults>
</compile_context>

<pallas_src>
import math
from functools import partial

import jax
import jax.numpy as jnp
from jax import lax
from jax.experimental import pallas as pl
from jax.experimental.pallas import tpu as pltpu

COMPUTE_DTYPE = jnp.bfloat16          # activations + matmul weights
_MAX_TM = 512                         # row tile (multiple of 8)
_MAX_TN = 4096                        # lane tile for very wide weights


def _compute_vmem_limit():
    # generation-aware scoped-VMEM budget: physical capacity minus ~1/8 headroom
    # (v7x: 64 MiB/TC -> ~56 MiB; v5e/v6e: 128 MiB -> ~112 MiB).
    try:
        cap = int(pltpu.get_tpu_info().vmem_capacity_bytes)
        return cap - max(cap // 8, 8 * 1024 * 1024)
    except Exception:
        return 64 * 1024 * 1024


_VMEM_LIMIT = _compute_vmem_limit()


def _row_tile(m):
    return m if m <= _MAX_TM else _MAX_TM


def _col_tile(n):
    return n if n <= _MAX_TN else _MAX_TN


def _pick_nb(bh, n):
    """Largest divisor of bh with nb * n <= 2048 (batch heads/windows per step)."""
    target = max(1, 2048 // max(n, 1))
    nb = 1
    for d in range(1, bh + 1):
        if bh % d == 0 and d <= target:
            nb = d
    return nb


# ----------------------------------------------------------------------------
# Pallas kernels
# ----------------------------------------------------------------------------
def _linear_kernel(x_ref, w_ref, b_ref, o_ref, *, activation):
    y = jnp.dot(x_ref[...], w_ref[...], preferred_element_type=jnp.float32)
    y = y + b_ref[...]
    if activation == "gelu":
        # exact (erf) GELU, matching torch.nn.GELU default
        # TODO(synk): bf16 erf activation is a v6e/v7x EUP micro-win once bf16
        # erf lowering is confirmed; kept f32 here for lowering safety.
        y = 0.5 * y * (1.0 + lax.erf(y * 0.7071067811865476))
    o_ref[...] = y.astype(o_ref.dtype)


def _qkv_lora_kernel(x_ref, w_ref, b_ref, a_ref, bb_ref, o_ref):
    # qkv = x @ Wqkv + b ; lora delta = (x @ [Aq|Av|0-pad]) @ Baug  (Baug places
    # Bq on the q columns, Bv on the v columns, zeros elsewhere; rank padded to
    # 128 lanes) -> single fused output store.
    x = x_ref[...]
    acc = jnp.dot(x, w_ref[...], preferred_element_type=jnp.float32) + b_ref[...]
    t = jnp.dot(x, a_ref[...], preferred_element_type=jnp.float32)        # (tm, 128)
    acc = acc + jnp.dot(t.astype(x.dtype), bb_ref[...],
                        preferred_element_type=jnp.float32)
    o_ref[...] = acc.astype(o_ref.dtype)


def _layernorm_kernel(x_ref, g_ref, b_ref, o_ref, *, eps):
    x = x_ref[...].astype(jnp.float32)
    mu = jnp.mean(x, axis=-1, keepdims=True)
    var = jnp.mean((x - mu) ** 2, axis=-1, keepdims=True)
    y = (x - mu) * lax.rsqrt(var + eps)
    o_ref[...] = (y * g_ref[...] + b_ref[...]).astype(o_ref.dtype)


def _add_layernorm_kernel(a_ref, b_ref, g_ref, beta_ref, s_ref, o_ref, *, eps):
    # fused residual add + LayerNorm; emits the f32 sum (new residual stream)
    # and the bf16 normalized value in one pass over HBM.
    s = a_ref[...].astype(jnp.float32) + b_ref[...].astype(jnp.float32)
    s_ref[...] = s.astype(s_ref.dtype)
    mu = jnp.mean(s, axis=-1, keepdims=True)
    var = jnp.mean((s - mu) ** 2, axis=-1, keepdims=True)
    y = (s - mu) * lax.rsqrt(var + eps)
    o_ref[...] = (y * g_ref[...] + beta_ref[...]).astype(o_ref.dtype)


def _attn_kernel(q_ref, kt_ref, v_ref, o_ref):
    # q_ref: (nb, tq, Daug) = [scale*q | rel_h | rel_w]
    # kt_ref: (nb, Daug, N) = [K^T ; Eh ; Ew]  (pre-transposed + expansion rows)
    # -> scores + decomposed rel-pos bias come out of ONE batched matmul.
    s = jnp.einsum("bqd,bdk->bqk", q_ref[...], kt_ref[...],
                   preferred_element_type=jnp.float32)
    s = s - jnp.max(s, axis=-1, keepdims=True)
    p = jnp.exp(s)
    denom = jnp.sum(p, axis=-1, keepdims=True)
    p = p * pl.reciprocal(denom, approx=True)
    o_ref[...] = jnp.einsum("bqk,bkd->bqd", p.astype(v_ref.dtype), v_ref[...],
                            preferred_element_type=jnp.float32).astype(o_ref.dtype)
    # TODO(synk): for very long global sequences on v7x, a flash-style KV-tiled
    # variant (online softmax m/l/acc scratch) would shrink the f32 s/p
    # intermediates; current shapes fit comfortably in the VMEM budget.


# ----------------------------------------------------------------------------
# Pallas wrappers
# ----------------------------------------------------------------------------
def pallas_linear(x, w, b=None, activation="none"):
    """x: (M, K), w: (K, N) bf16, b: (N,) f32 or None -> (M, N) bf16."""
    M, K = x.shape
    N = w.shape[1]
    b2 = (jnp.zeros((1, N), jnp.float32) if b is None
          else b.reshape(1, N).astype(jnp.float32))
    tm, tn = _row_tile(M), _col_tile(N)
    # outer axis = column tiles, inner axis = row tiles -> the weight block
    # index depends only on the outer axis and is NOT re-DMA'd per row tile.
    grid = (pl.cdiv(N, tn), pl.cdiv(M, tm))
    return pl.pallas_call(
        partial(_linear_kernel, activation=activation),
        out_shape=jax.ShapeDtypeStruct((M, N), COMPUTE_DTYPE),
        grid=grid,
        in_specs=[
            pl.BlockSpec((tm, K), lambda j, i: (i, 0)),
            pl.BlockSpec((K, tn), lambda j, i: (0, j)),
            pl.BlockSpec((1, tn), lambda j, i: (0, j)),
        ],
        out_specs=pl.BlockSpec((tm, tn), lambda j, i: (i, j)),
        compiler_params=pltpu.CompilerParams(
            dimension_semantics=("arbitrary", "parallel"),
            vmem_limit_bytes=_VMEM_LIMIT),
    )(x, w, b2)


def pallas_qkv_lora(x, qkv_w, qkv_b, a_aug, b_aug):
    """Fused qkv + LoRA: (M, dim) -> (M, 3*dim)."""
    M, dim = x.shape
    N = qkv_w.shape[1]
    rpad = a_aug.shape[1]
    b2 = qkv_b.reshape(1, N).astype(jnp.float32)
    tm = _row_tile(M)
    grid = (pl.cdiv(M, tm),)
    return pl.pallas_call(
        _qkv_lora_kernel,
        out_shape=jax.ShapeDtypeStruct((M, N), COMPUTE_DTYPE),
        grid=grid,
        in_specs=[
            pl.BlockSpec((tm, dim), lambda i: (i, 0)),
            pl.BlockSpec((dim, N), lambda i: (0, 0)),
            pl.BlockSpec((1, N), lambda i: (0, 0)),
            pl.BlockSpec((dim, rpad), lambda i: (0, 0)),
            pl.BlockSpec((rpad, N), lambda i: (0, 0)),
        ],
        out_specs=pl.BlockSpec((tm, N), lambda i: (i, 0)),
        compiler_params=pltpu.CompilerParams(
            dimension_semantics=("parallel",),
            vmem_limit_bytes=_VMEM_LIMIT),
    )(x, qkv_w, b2, a_aug, b_aug)


def pallas_layernorm(x, g, b, eps=1e-6):
    """x: (M, F), normalize over last dim (LayerNorm / LayerNorm2d in NHWC)."""
    M, F = x.shape
    g2 = g.reshape(1, F).astype(jnp.float32)
    b2 = b.reshape(1, F).astype(jnp.float32)
    tm = _row_tile(M)
    grid = (pl.cdiv(M, tm),)
    return pl.pallas_call(
        partial(_layernorm_kernel, eps=eps),
        out_shape=jax.ShapeDtypeStruct((M, F), COMPUTE_DTYPE),
        grid=grid,
        in_specs=[
            pl.BlockSpec((tm, F), lambda i: (i, 0)),
            pl.BlockSpec((1, F), lambda i: (0, 0)),
            pl.BlockSpec((1, F), lambda i: (0, 0)),
        ],
        out_specs=pl.BlockSpec((tm, F), lambda i: (i, 0)),
        compiler_params=pltpu.CompilerParams(
            dimension_semantics=("parallel",),
            vmem_limit_bytes=_VMEM_LIMIT),
    )(x, g2, b2)


def pallas_add_layernorm(a, b, g, beta, eps=1e-6):
    """Fused (a + b) residual add + LayerNorm.

    Returns (sum f32, normalized bf16)."""
    M, F = a.shape
    g2 = g.reshape(1, F).astype(jnp.float32)
    beta2 = beta.reshape(1, F).astype(jnp.float32)
    tm = _row_tile(M)
    grid = (pl.cdiv(M, tm),)
    row_spec = pl.BlockSpec((tm, F), lambda i: (i, 0))
    par_spec = pl.BlockSpec((1, F), lambda i: (0, 0))
    s, o = pl.pallas_call(
        partial(_add_layernorm_kernel, eps=eps),
        out_shape=(jax.ShapeDtypeStruct((M, F), jnp.float32),
                   jax.ShapeDtypeStruct((M, F), COMPUTE_DTYPE)),
        grid=grid,
        in_specs=[row_spec, row_spec, par_spec, par_spec],
        out_specs=(row_spec, row_spec),
        compiler_params=pltpu.CompilerParams(
            dimension_semantics=("parallel",),
            vmem_limit_bytes=_VMEM_LIMIT),
    )(a, b, g2, beta2)
    return s, o


def pallas_attention(q_aug, kt_aug, v):
    """q_aug: (BH, N, Daug); kt_aug: (BH, Daug, N); v: (BH, N, D) -> (BH, N, D)."""
    BH, N, Daug = q_aug.shape
    D = v.shape[-1]
    nb = _pick_nb(BH, N)                   # heads/windows batched per grid step
    tq = N if N <= _MAX_TM else _MAX_TM
    grid = (BH // nb, pl.cdiv(N, tq))
    # TODO(synk): for a further v6e micro-win the per-step output could be laid
    # out as a lane-dense (tq, nb*D) slab; kept per-head layout for simplicity.
    return pl.pallas_call(
        _attn_kernel,
        out_shape=jax.ShapeDtypeStruct((BH, N, D), v.dtype),
        grid=grid,
        in_specs=[
            pl.BlockSpec((nb, tq, Daug), lambda b, i: (b, i, 0)),
            pl.BlockSpec((nb, Daug, N), lambda b, i: (b, 0, 0)),
            pl.BlockSpec((nb, N, D), lambda b, i: (b, 0, 0)),
        ],
        out_specs=pl.BlockSpec((nb, tq, D), lambda b, i: (b, i, 0)),
        compiler_params=pltpu.CompilerParams(
            dimension_semantics=("parallel", "parallel"),
            vmem_limit_bytes=_VMEM_LIMIT),
    )(q_aug, kt_aug, v)


# ----------------------------------------------------------------------------
# Pure-JAX glue that mirrors the torch helpers
# ----------------------------------------------------------------------------
def get_rel_pos(q_size, k_size, rel_pos):
    max_rel_dist = int(2 * max(q_size, k_size) - 1)
    # In this model q_size == k_size == input_size, so rel_pos always matches.
    # TODO(synk): F.interpolate resize branch of get_rel_pos is never hit here.
    assert rel_pos.shape[0] == max_rel_dist
    q_coords = jnp.arange(q_size)[:, None] * max(k_size / q_size, 1.0)
    k_coords = jnp.arange(k_size)[None, :] * max(q_size / k_size, 1.0)
    rel = q_coords - k_coords + (k_size - 1) * max(q_size / k_size, 1.0)
    return rel_pos[rel.astype(jnp.int32)]          # (q_size, k_size, head_dim)


def window_partition(x, ws):
    B, H, W, C = x.shape
    pad_h = (ws - H % ws) % ws
    pad_w = (ws - W % ws) % ws
    if pad_h > 0 or pad_w > 0:
        x = jnp.pad(x, ((0, 0), (0, pad_h), (0, pad_w), (0, 0)))
    Hp, Wp = H + pad_h, W + pad_w
    x = x.reshape(B, Hp // ws, ws, Wp // ws, ws, C)
    windows = jnp.transpose(x, (0, 1, 3, 2, 4, 5)).reshape(-1, ws, ws, C)
    return windows, (Hp, Wp)


def window_unpartition(windows, ws, pad_hw, hw):
    Hp, Wp = pad_hw
    H, W = hw
    B = windows.shape[0] // (Hp * Wp // ws // ws)
    x = windows.reshape(B, Hp // ws, Wp // ws, ws, ws, -1)
    x = jnp.transpose(x, (0, 1, 3, 2, 4, 5)).reshape(B, Hp, Wp, -1)
    if Hp > H or Wp > W:
        x = x[:, :H, :W, :]
    return x


def im2col_3x3(x):
    """NHWC 3x3/stride1/pad1 im2col, column order (kh, kw, Cin)."""
    B, H, W, C = x.shape
    xp = jnp.pad(x, ((0, 0), (1, 1), (1, 1), (0, 0)))
    cols = []
    for kh in range(3):
        for kw in range(3):
            cols.append(xp[:, kh:kh + H, kw:kw + W, :])
    return jnp.concatenate(cols, axis=-1).reshape(B * H * W, 9 * C)


# ----------------------------------------------------------------------------
# Model forward (SAM ViT encoder with LoRA-augmented qkv)
# ----------------------------------------------------------------------------
def attention_forward(x, bp, cfg):
    B_, H, W, dim = x.shape
    nh = cfg["num_heads"]
    hd = dim // nh
    scale = hd ** -0.5
    N = H * W
    xf = x.reshape(-1, dim)

    # Fused qkv + LoRA (_LoRA_qkv): Bq lands on the q columns, Bv on the v
    # columns; A/B are precomputed, rank-padded to 128 lanes at param prep.
    qkv = pallas_qkv_lora(xf, bp["qkv_w"], bp["qkv_b"],
                          bp["lora_a_aug"], bp["lora_b_aug"])          # (M, 3*dim)

    qkv = qkv.reshape(B_, N, 3, nh, hd)
    qkv = jnp.transpose(qkv, (2, 0, 3, 1, 4)).reshape(3, B_ * nh, N, hd)
    q, k, v = qkv[0], qkv[1], qkv[2]
    BH = B_ * nh

    # Decomposed rel-pos terms (small, O(N*(H+W))) computed from the UNSCALED q
    # (torch applies scale only to q @ k^T).
    Rh = get_rel_pos(H, H, bp["rel_pos_h"])
    Rw = get_rel_pos(W, W, bp["rel_pos_w"])
    r_q = q.reshape(BH, H, W, hd)
    rel_h = jnp.einsum("bhwc,hkc->bhwk", r_q, Rh,
                       preferred_element_type=jnp.float32)
    rel_w = jnp.einsum("bhwc,wkc->bhwk", r_q, Rw,
                       preferred_element_type=jnp.float32)
    rel_h = rel_h.reshape(BH, N, H).astype(q.dtype)
    rel_w = rel_w.reshape(BH, N, W).astype(q.dtype)

    # Fuse scale + rel-pos bias into the score matmul:
    #   s = [scale*q | rel_h | rel_w] @ [K^T ; Eh ; Ew]
    # with 0/1 expansion rows Eh/Ew (bias[q, c] = rel_h[q, c//W] + rel_w[q, c%W]).
    q_scaled = (q.astype(jnp.float32) * scale).astype(q.dtype)
    q_aug = jnp.concatenate([q_scaled, rel_h, rel_w], axis=-1)          # (BH, N, D+H+W)
    kt = jnp.swapaxes(k, 1, 2)                                          # one-time transpose
    eh = jnp.repeat(jnp.eye(H, dtype=q.dtype), W, axis=1)               # (H, N)
    ew = jnp.tile(jnp.eye(W, dtype=q.dtype), (1, H))                    # (W, N)
    kt_aug = jnp.concatenate(
        [kt, jnp.broadcast_to(eh, (BH, H, N)), jnp.broadcast_to(ew, (BH, W, N))],
        axis=1)                                                         # (BH, D+H+W, N)

    out = pallas_attention(q_aug, kt_aug, v)                            # (BH, N, hd)
    xo = out.reshape(B_, nh, H, W, hd)
    xo = jnp.transpose(xo, (0, 2, 3, 1, 4)).reshape(-1, dim)
    xo = pallas_linear(xo, bp["proj_w"], bp["proj_b"])
    return xo.reshape(B_, H, W, dim)


def block_forward(res, pend, bp, cfg, window_size):
    """res (f32) + pend (bf16) is the block input (pend = deferred MLP output of
    the previous block, or None for the first block); returns (res, pend)."""
    B, H, W, dim = res.shape
    M = B * H * W

    if pend is None:
        x = res
        xn = pallas_layernorm(res.reshape(M, dim), bp["norm1_g"], bp["norm1_b"])
        xn = xn.reshape(B, H, W, dim)
    else:
        x, xn = pallas_add_layernorm(res.reshape(M, dim), pend.reshape(M, dim),
                                     bp["norm1_g"], bp["norm1_b"])
        x = x.reshape(B, H, W, dim)
        xn = xn.reshape(B, H, W, dim)

    if window_size > 0:
        xn, pad_hw = window_partition(xn, window_size)
    xa = attention_forward(xn, bp, cfg)
    if window_size > 0:
        xa = window_unpartition(xa, window_size, pad_hw, (H, W))

    # fused residual add + norm2
    x2, xn2 = pallas_add_layernorm(x.reshape(M, dim), xa.reshape(M, dim),
                                   bp["norm2_g"], bp["norm2_b"])
    h = pallas_linear(xn2, bp["lin1_w"], bp["lin1_b"], activation="gelu")
    h = pallas_linear(h, bp["lin2_w"], bp["lin2_b"])
    return x2.reshape(B, H, W, dim), h.reshape(B, H, W, dim)


def lora_sam_encoder_forward(x_nchw, params, cfg):
    p = cfg["patch_size"]
    dim = cfg["embed_dim"]
    oc = cfg["out_chans"]
    B, C, H, W = x_nchw.shape
    nh_p, nw_p = H // p, W // p

    # PatchEmbed: Conv2d(k=stride=patch) == patchify + matmul
    x_nchw = x_nchw.astype(COMPUTE_DTYPE)
    patches = x_nchw.reshape(B, C, nh_p, p, nw_p, p)
    patches = jnp.transpose(patches, (0, 2, 4, 1, 3, 5)).reshape(B * nh_p * nw_p, C * p * p)
    x = pallas_linear(patches, params["patch_w"], params["patch_b"])
    x = x.reshape(B, nh_p, nw_p, dim)

    # absolute position embedding; residual stream carried in f32 for fidelity
    res = x.astype(jnp.float32) + params["pos_embed"]

    # transformer blocks (windowed or global attention); the MLP output of each
    # block is deferred and fused into the next block's add+LN.
    pend = None
    for i, bp in enumerate(params["blocks"]):
        ws = 0 if i in cfg["global_attn_indexes"] else cfg["window_size"]
        res, pend = block_forward(res, pend, bp, cfg, ws)
    x = res + pend.astype(jnp.float32)     # last deferred residual add (f32)

    # neck: 1x1 conv -> LayerNorm2d -> 3x3 conv -> LayerNorm2d  (all NHWC here)
    y = pallas_linear(x.reshape(-1, dim).astype(COMPUTE_DTYPE), params["neck_conv1_w"])
    y = pallas_layernorm(y, params["neck_ln1_g"], params["neck_ln1_b"])
    y = y.reshape(B, nh_p, nw_p, oc)
    # TODO(synk): the 3x3 neck conv still goes through an im2col buffer instead
    # of 9 accumulated in-kernel taps; neck traffic is small so this is minor.
    cols = im2col_3x3(y)
    y = pallas_linear(cols, params["neck_conv2_w"])
    y = pallas_layernorm(y, params["neck_ln2_g"], params["neck_ln2_b"])
    y = y.reshape(B, nh_p, nw_p, oc)

    # return NCHW f32 to match the torch module
    return jnp.transpose(y, (0, 3, 1, 2)).astype(jnp.float32)


# ----------------------------------------------------------------------------
# Deterministic parameter init (shapes follow the module __init__; weights are
# stored as (in, out), i.e. torch Linear weight transposed; convs pre-flattened;
# matmul weights in bf16, biases / LN params / pos_embed in f32).  The LoRA
# A/B matrices are additionally pre-packed into rank-padded augmented matrices
# used by the fused qkv+LoRA kernel.
# ----------------------------------------------------------------------------
def init_params(key, cfg):
    dim = cfg["embed_dim"]
    p = cfg["patch_size"]
    C = cfg["in_chans"]
    tok = cfg["img_size"] // p
    hd = dim // cfg["num_heads"]
    mlp_dim = int(dim * cfg["mlp_ratio"])
    r = cfg["r"]
    oc = cfg["out_chans"]
    rpad = max(128, ((2 * r + 127) // 128) * 128)   # pad LoRA rank dim to lanes

    keys = iter(jax.random.split(key, 8 + 12 * cfg["depth"]))

    def rnd(shape, scale=0.02, dtype=COMPUTE_DTYPE):
        return (scale * jax.random.normal(next(keys), shape, jnp.float32)).astype(dtype)

    params = {
        "patch_w": rnd((C * p * p, dim)),
        "patch_b": jnp.zeros((dim,), jnp.float32),
        "pos_embed": rnd((1, tok, tok, dim), dtype=jnp.float32),
        "neck_conv1_w": rnd((dim, oc)),                           # 1x1 conv, no bias
        "neck_ln1_g": jnp.ones((oc,), jnp.float32),
        "neck_ln1_b": jnp.zeros((oc,), jnp.float32),
        "neck_conv2_w": rnd((3, 3, oc, oc)).reshape(9 * oc, oc),  # 3x3 conv, no bias
        "neck_ln2_g": jnp.ones((oc,), jnp.float32),
        "neck_ln2_b": jnp.zeros((oc,), jnp.float32),
        "blocks": [],
    }
    for i in range(cfg["depth"]):
        ws = 0 if i in cfg["global_attn_indexes"] else cfg["window_size"]
        in_sz = tok if ws == 0 else ws

        # LoRA (non-zero B so the LoRA path is actually exercised)
        la_q = rnd((dim, r), scale=1.0 / math.sqrt(dim))
        lb_q = rnd((r, dim))
        la_v = rnd((dim, r), scale=1.0 / math.sqrt(dim))
        lb_v = rnd((r, dim))
        a_aug = jnp.zeros((dim, rpad), COMPUTE_DTYPE)
        a_aug = a_aug.at[:, :r].set(la_q).at[:, r:2 * r].set(la_v)
        b_aug = jnp.zeros((rpad, 3 * dim), COMPUTE_DTYPE)
        b_aug = b_aug.at[:r, :dim].set(lb_q).at[r:2 * r, 2 * dim:].set(lb_v)

        bp = {
            "norm1_g": jnp.ones((dim,), jnp.float32),
            "norm1_b": jnp.zeros((dim,), jnp.float32),
            "norm2_g": jnp.ones((dim,), jnp.float32),
            "norm2_b": jnp.zeros((dim,), jnp.float32),
            "qkv_w": rnd((dim, 3 * dim)),
            "qkv_b": jnp.zeros((3 * dim,), jnp.float32),
            "proj_w": rnd((dim, dim)),
            "proj_b": jnp.zeros((dim,), jnp.float32),
            "rel_pos_h": rnd((2 * in_sz - 1, hd)),
            "rel_pos_w": rnd((2 * in_sz - 1, hd)),
            "lora_a_q": la_q, "lora_b_q": lb_q,
            "lora_a_v": la_v, "lora_b_v": lb_v,
            "lora_a_aug": a_aug, "lora_b_aug": b_aug,
            "lin1_w": rnd((dim, mlp_dim)),
            "lin1_b": jnp.zeros((mlp_dim,), jnp.float32),
            "lin2_w": rnd((mlp_dim, dim)),
            "lin2_b": jnp.zeros((dim,), jnp.float32),
        }
        params["blocks"].append(bp)
    return params


# ----------------------------------------------------------------------------
if __name__ == "__main__":
    # Small config consistent with the SAM-B encoder structure (scaled down):
    # windowed + global attention, rel-pos, LoRA on qkv, conv/LN neck.
    cfg = dict(
        img_size=64, patch_size=16, in_chans=3,
        embed_dim=32, depth=3, num_heads=4, mlp_ratio=4.0,
        out_chans=16, window_size=2, global_attn_indexes=(2,), r=4,
    )

    key = jax.random.PRNGKey(0)
    pkey, xkey = jax.random.split(key)
    params = init_params(pkey, cfg)

    x = jax.random.normal(xkey, (2, 3, cfg["img_size"], cfg["img_size"]), jnp.float32)

    fwd = jax.jit(partial(lora_sam_encoder_forward, cfg=cfg))
    out = fwd(x, params)
    jax.block_until_ready(out)

    tok = cfg["img_size"] // cfg["patch_size"]
    assert out.shape == (2, cfg["out_chans"], tok, tok), out.shape
    assert bool(jnp.all(jnp.isfinite(out)))
    print("KERNEL_OK")
</pallas_src>

<mosaic_0001>
module attributes {stable_mosaic.version = 11 : i64} {
  func.func @_linear_kernel(%arg0: i32, %arg1: i32, %arg2: memref<32x768xbf16, #tpu.memory_space<vmem>>, %arg3: memref<768x32xbf16, #tpu.memory_space<vmem>>, %arg4: memref<1x32xf32, #tpu.memory_space<vmem>>, %arg5: memref<32x32xbf16, #tpu.memory_space<vmem>>) attributes {dimension_semantics = [#tpu.dimension_semantics<arbitrary>, #tpu.dimension_semantics<parallel>], iteration_bounds = array<i64: 1, 1>, scalar_prefetch = 0 : i64, scratch_operands = 0 : i64, tpu.core_type = #tpu.core_type<tc>, window_params = [{transform_indices = @transform_0, window_bounds = array<i64: 32, 768>}, {transform_indices = @transform_1, window_bounds = array<i64: 768, 32>}, {transform_indices = @transform_2, window_bounds = array<i64: 1, 32>}, {transform_indices = @transform_3, window_bounds = array<i64: 32, 32>}]} {
    %c0 = arith.constant 0 : index
    %c0_0 = arith.constant 0 : index
    %0 = vector.load %arg2[%c0, %c0_0] : memref<32x768xbf16, #tpu.memory_space<vmem>>, vector<32x768xbf16>
    %c0_1 = arith.constant 0 : index
    %c0_2 = arith.constant 0 : index
    %1 = vector.load %arg3[%c0_1, %c0_2] : memref<768x32xbf16, #tpu.memory_space<vmem>>, vector<768x32xbf16>
    %cst = arith.constant dense<0.000000e+00> : vector<32x32xf32>
    %2 = tpu.matmul %0, %1, %cst {dimension_numbers = #tpu.dot_dimension_numbers<[1], [0], [0], [1], [0, 0, 1, 1], [], []>} : vector<32x768xbf16>, vector<768x32xbf16>, vector<32x32xf32> -> vector<32x32xf32>
    %c0_3 = arith.constant 0 : index
    %c0_4 = arith.constant 0 : index
    %3 = vector.load %arg4[%c0_3, %c0_4] : memref<1x32xf32, #tpu.memory_space<vmem>>, vector<1x32xf32>
    %4 = vector.broadcast %3 : vector<1x32xf32> to vector<32x32xf32>
    %5 = arith.addf %2, %4 : vector<32x32xf32>
    %6 = arith.truncf %5 : vector<32x32xf32> to vector<32x32xbf16>
    %c0_5 = arith.constant 0 : index
    %c0_6 = arith.constant 0 : index
    %7 = vector.load %arg5[%c0_5, %c0_6] : memref<32x32xbf16, #tpu.memory_space<vmem>>, vector<32x32xbf16>
    tpu.vector_store %arg5[%c0_5, %c0_6], %6 {strides = array<i32>} : memref<32x32xbf16, #tpu.memory_space<vmem>>, vector<32x32xbf16>,
    return
  }
  func.func @transform_0(%arg0: i32, %arg1: i32) -> (i32, i32) {
    %c0_i32 = arith.constant 0 : i32
    %c0_i32_0 = arith.constant 0 : i32
    return %arg1, %c0_i32 : i32, i32
  }
  func.func @transform_1(%arg0: i32, %arg1: i32) -> (i32, i32) {
    %c0_i32 = arith.constant 0 : i32
    %c0_i32_0 = arith.constant 0 : i32
    return %c0_i32, %arg0 : i32, i32
  }
  func.func @transform_2(%arg0: i32, %arg1: i32) -> (i32, i32) {
    %c0_i32 = arith.constant 0 : i32
    %c0_i32_0 = arith.constant 0 : i32
    return %c0_i32, %arg0 : i32, i32
  }
  func.func @transform_3(%arg0: i32, %arg1: i32) -> (i32, i32) {
    %c0_i32 = arith.constant 0 : i32
    return %arg1, %arg0 : i32, i32
  }
}

module attributes {stable_mosaic.version = 11 : i64} {
  func.func @_layernorm_kernel(%arg0: i32, %arg1: memref<32x32xf32, #tpu.memory_space<vmem>>, %arg2: memref<1x32xf32, #tpu.memory_space<vmem>>, %arg3: memref<1x32xf32, #tpu.memory_space<vmem>>, %arg4: memref<32x32xbf16, #tpu.memory_space<vmem>>) attributes {dimension_semantics = [#tpu.dimension_semantics<parallel>], iteration_bounds = array<i64: 1>, scalar_prefetch = 0 : i64, scratch_operands = 0 : i64, tpu.core_type = #tpu.core_type<tc>, window_params = [{transform_indices = @transform_0, window_bounds = array<i64: 32, 32>}, {pipeline_mode = #tpu.pipeline_mode<synchronous>, transform_indices = @transform_1, window_bounds = array<i64: 1, 32>}, {pipeline_mode = #tpu.pipeline_mode<synchronous>, transform_indices = @transform_2, window_bounds = array<i64: 1, 32>}, {transform_indices = @transform_3, window_bounds = array<i64: 32, 32>}]} {
    %c0 = arith.constant 0 : index
    %c0_0 = arith.constant 0 : index
    %0 = vector.load %arg1[%c0, %c0_0] : memref<32x32xf32, #tpu.memory_space<vmem>>, vector<32x32xf32>
    %cst = arith.constant dense<0.000000e+00> : vector<32xf32>
    %1 = vector.multi_reduction <add>, %0, %cst [1] : vector<32x32xf32> to vector<32xf32>
    %2 = vector.shape_cast %1 : vector<32xf32> to vector<32x1xf32>
    %cst_1 = arith.constant 3.200000e+01 : f32
    %3 = vector.broadcast %cst_1 : f32 to vector<32x1xf32>
    %4 = arith.divf %2, %3 : vector<32x1xf32>
    %5 = vector.broadcast %4 : vector<32x1xf32> to vector<32x32xf32>
    %6 = arith.subf %0, %5 : vector<32x32xf32>
    %7 = arith.mulf %6, %6 : vector<32x32xf32>
    %cst_2 = arith.constant dense<0.000000e+00> : vector<32xf32>
    %8 = vector.multi_reduction <add>, %7, %cst_2 [1] : vector<32x32xf32> to vector<32xf32>
    %9 = vector.shape_cast %8 : vector<32xf32> to vector<32x1xf32>
    %cst_3 = arith.constant 3.200000e+01 : f32
    %10 = vector.broadcast %cst_3 : f32 to vector<32x1xf32>
    %11 = arith.divf %9, %10 : vector<32x1xf32>
    %12 = vector.broadcast %4 : vector<32x1xf32> to vector<32x32xf32>
    %13 = arith.subf %0, %12 : vector<32x32xf32>
    %cst_4 = arith.constant 9.99999997E-7 : f32
    %14 = vector.broadcast %cst_4 : f32 to vector<32x1xf32>
    %15 = arith.addf %11, %14 : vector<32x1xf32>
    %16 = math.rsqrt %15 : vector<32x1xf32>
    %17 = vector.broadcast %16 : vector<32x1xf32> to vector<32x32xf32>
    %18 = arith.mulf %13, %17 : vector<32x32xf32>
    %c0_5 = arith.constant 0 : index
    %c0_6 = arith.constant 0 : index
    %19 = vector.load %arg2[%c0_5, %c0_6] : memref<1x32xf32, #tpu.memory_space<vmem>>, vector<1x32xf32>
    %20 = vector.broadcast %19 : vector<1x32xf32> to vector<32x32xf32>
    %21 = arith.mulf %18, %20 : vector<32x32xf32>
    %c0_7 = arith.constant 0 : index
    %c0_8 = arith.constant 0 : index
    %22 = vector.load %arg3[%c0_7, %c0_8] : memref<1x32xf32, #tpu.memory_space<vmem>>, vector<1x32xf32>
    %23 = vector.broadcast %22 : vector<1x32xf32> to vector<32x32xf32>
    %24 = arith.addf %21, %23 : vector<32x32xf32>
    %25 = arith.truncf %24 : vector<32x32xf32> to vector<32x32xbf16>
    %c0_9 = arith.constant 0 : index
    %c0_10 = arith.constant 0 : index
    %26 = vector.load %arg4[%c0_9, %c0_10] : memref<32x32xbf16, #tpu.memory_space<vmem>>, vector<32x32xbf16>
    tpu.vector_store %arg4[%c0_9, %c0_10], %25 {strides = array<i32>} : memref<32x32xbf16, #tpu.memory_space<vmem>>, vector<32x32xbf16>,
    return
  }
  func.func @transform_0(%arg0: i32) -> (i32, i32) {
    %c0_i32 = arith.constant 0 : i32
    %c0_i32_0 = arith.constant 0 : i32
    return %arg0, %c0_i32 : i32, i32
  }
  func.func @transform_1(%arg0: i32) -> (i32, i32) {
    %c0_i32 = arith.constant 0 : i32
    %c0_i32_0 = arith.constant 0 : i32
    %c0_i32_1 = arith.constant 0 : i32
    return %c0_i32, %c0_i32_0 : i32, i32
  }
  func.func @transform_2(%arg0: i32) -> (i32, i32) {
    %c0_i32 = arith.constant 0 : i32
    %c0_i32_0 = arith.constant 0 : i32
    %c0_i32_1 = arith.constant 0 : i32
    return %c0_i32, %c0_i32_0 : i32, i32
  }
  func.func @transform_3(%arg0: i32) -> (i32, i32) {
    %c0_i32 = arith.constant 0 : i32
    %c0_i32_0 = arith.constant 0 : i32
    return %arg0, %c0_i32 : i32, i32
  }
}

module attributes {stable_mosaic.version = 11 : i64} {
  func.func @_qkv_lora_kernel(%arg0: i32, %arg1: memref<32x32xbf16, #tpu.memory_space<vmem>>, %arg2: memref<32x96xbf16, #tpu.memory_space<vmem>>, %arg3: memref<1x96xf32, #tpu.memory_space<vmem>>, %arg4: memref<32x128xbf16, #tpu.memory_space<vmem>>, %arg5: memref<128x96xbf16, #tpu.memory_space<vmem>>, %arg6: memref<32x96xbf16, #tpu.memory_space<vmem>>) attributes {dimension_semantics = [#tpu.dimension_semantics<parallel>], iteration_bounds = array<i64: 1>, scalar_prefetch = 0 : i64, scratch_operands = 0 : i64, tpu.core_type = #tpu.core_type<tc>, window_params = [{transform_indices = @transform_0, window_bounds = array<i64: 32, 32>}, {pipeline_mode = #tpu.pipeline_mode<synchronous>, transform_indices = @transform_1, window_bounds = array<i64: 32, 96>}, {pipeline_mode = #tpu.pipeline_mode<synchronous>, transform_indices = @transform_2, window_bounds = array<i64: 1, 96>}, {pipeline_mode = #tpu.pipeline_mode<synchronous>, transform_indices = @transform_3, window_bounds = array<i64: 32, 128>}, {pipeline_mode = #tpu.pipeline_mode<synchronous>, transform_indices = @transform_4, window_bounds = array<i64: 128, 96>}, {transform_indices = @transform_5, window_bounds = array<i64: 32, 96>}]} {
    %c0 = arith.constant 0 : index
    %c0_0 = arith.constant 0 : index
    %0 = vector.load %arg1[%c0, %c0_0] : memref<32x32xbf16, #tpu.memory_space<vmem>>, vector<32x32xbf16>
    %c0_1 = arith.constant 0 : index
    %c0_2 = arith.constant 0 : index
    %1 = vector.load %arg2[%c0_1, %c0_2] : memref<32x96xbf16, #tpu.memory_space<vmem>>, vector<32x96xbf16>
    %cst = arith.constant dense<0.000000e+00> : vector<32x96xf32>
    %2 = tpu.matmul %0, %1, %cst {dimension_numbers = #tpu.dot_dimension_numbers<[1], [0], [0], [1], [0, 0, 1, 1], [], []>} : vector<32x32xbf16>, vector<32x96xbf16>, vector<32x96xf32> -> vector<32x96xf32>
    %c0_3 = arith.constant 0 : index
    %c0_4 = arith.constant 0 : index
    %3 = vector.load %arg3[%c0_3, %c0_4] : memref<1x96xf32, #tpu.memory_space<vmem>>, vector<1x96xf32>
    %4 = vector.broadcast %3 : vector<1x96xf32> to vector<32x96xf32>
    %5 = arith.addf %2, %4 : vector<32x96xf32>
    %c0_5 = arith.constant 0 : index
    %c0_6 = arith.constant 0 : index
    %6 = vector.load %arg4[%c0_5, %c0_6] : memref<32x128xbf16, #tpu.memory_space<vmem>>, vector<32x128xbf16>
    %cst_7 = arith.constant dense<0.000000e+00> : vector<32x128xf32>
    %7 = tpu.matmul %0, %6, %cst_7 {dimension_numbers = #tpu.dot_dimension_numbers<[1], [0], [0], [1], [0, 0, 1, 1], [], []>} : vector<32x32xbf16>, vector<32x128xbf16>, vector<32x128xf32> -> vector<32x128xf32>
    %8 = arith.truncf %7 : vector<32x128xf32> to vector<32x128xbf16>
    %c0_8 = arith.constant 0 : index
    %c0_9 = arith.constant 0 : index
    %9 = vector.load %arg5[%c0_8, %c0_9] : memref<128x96xbf16, #tpu.memory_space<vmem>>, vector<128x96xbf16>
    %cst_10 = arith.constant dense<0.000000e+00> : vector<32x96xf32>
    %10 = tpu.matmul %8, %9, %cst_10 {dimension_numbers = #tpu.dot_dimension_numbers<[1], [0], [0], [1], [0, 0, 1, 1], [], []>} : vector<32x128xbf16>, vector<128x96xbf16>, vector<32x96xf32> -> vector<32x96xf32>
    %11 = arith.addf %5, %10 : vector<32x96xf32>
    %12 = arith.truncf %11 : vector<32x96xf32> to vector<32x96xbf16>
    %c0_11 = arith.constant 0 : index
    %c0_12 = arith.constant 0 : index
    %13 = vector.load %arg6[%c0_11, %c0_12] : memref<32x96xbf16, #tpu.memory_space<vmem>>, vector<32x96xbf16>
    tpu.vector_store %arg6[%c0_11, %c0_12], %12 {strides = array<i32>} : memref<32x96xbf16, #tpu.memory_space<vmem>>, vector<32x96xbf16>,
    return
  }
  func.func @transform_0(%arg0: i32) -> (i32, i32) {
    %c0_i32 = arith.constant 0 : i32
    %c0_i32_0 = arith.constant 0 : i32
    return %arg0, %c0_i32 : i32, i32
  }
  func.func @transform_1(%arg0: i32) -> (i32, i32) {
    %c0_i32 = arith.constant 0 : i32
    %c0_i32_0 = arith.constant 0 : i32
    %c0_i32_1 = arith.constant 0 : i32
    return %c0_i32, %c0_i32_0 : i32, i32
  }
  func.func @transform_2(%arg0: i32) -> (i32, i32) {
    %c0_i32 = arith.constant 0 : i32
    %c0_i32_0 = arith.constant 0 : i32
    %c0_i32_1 = arith.constant 0 : i32
    return %c0_i32, %c0_i32_0 : i32, i32
  }
  func.func @transform_3(%arg0: i32) -> (i32, i32) {
    %c0_i32 = arith.constant 0 : i32
    %c0_i32_0 = arith.constant 0 : i32
    %c0_i32_1 = arith.constant 0 : i32
    return %c0_i32, %c0_i32_0 : i32, i32
  }
  func.func @transform_4(%arg0: i32) -> (i32, i32) {
    %c0_i32 = arith.constant 0 : i32
    %c0_i32_0 = arith.constant 0 : i32
    %c0_i32_1 = arith.constant 0 : i32
    return %c0_i32, %c0_i32_0 : i32, i32
  }
  func.func @transform_5(%arg0: i32) -> (i32, i32) {
    %c0_i32 = arith.constant 0 : i32
    %c0_i32_0 = arith.constant 0 : i32
    return %arg0, %c0_i32 : i32, i32
  }
}

module attributes {stable_mosaic.version = 11 : i64} {
  func.func @_attn_kernel(%arg0: i32, %arg1: i32, %arg2: memref<32x4x12xbf16, #tpu.memory_space<vmem>>, %arg3: memref<32x12x4xbf16, #tpu.memory_space<vmem>>, %arg4: memref<32x4x8xbf16, #tpu.memory_space<vmem>>, %arg5: memref<32x4x8xbf16, #tpu.memory_space<vmem>>) attributes {dimension_semantics = [#tpu.dimension_semantics<parallel>, #tpu.dimension_semantics<parallel>], iteration_bounds = array<i64: 1, 1>, scalar_prefetch = 0 : i64, scratch_operands = 0 : i64, tpu.core_type = #tpu.core_type<tc>, window_params = [{transform_indices = @transform_0, window_bounds = array<i64: 32, 4, 12>}, {transform_indices = @transform_1, window_bounds = array<i64: 32, 12, 4>}, {transform_indices = @transform_2, window_bounds = array<i64: 32, 4, 8>}, {transform_indices = @transform_3, window_bounds = array<i64: 32, 4, 8>}]} {
    %c0 = arith.constant 0 : index
    %c0_0 = arith.constant 0 : index
    %c0_1 = arith.constant 0 : index
    %0 = vector.load %arg2[%c0, %c0_0, %c0_1] : memref<32x4x12xbf16, #tpu.memory_space<vmem>>, vector<32x4x12xbf16>
    %c0_2 = arith.constant 0 : index
    %c0_3 = arith.constant 0 : index
    %c0_4 = arith.constant 0 : index
    %1 = vector.load %arg3[%c0_2, %c0_3, %c0_4] : memref<32x12x4xbf16, #tpu.memory_space<vmem>>, vector<32x12x4xbf16>
    "tpu.trace_start"() <{level = 10 : i32, message = "bqd,bdk->bqk"}> : () -> ()
    %cst = arith.constant dense<0.000000e+00> : vector<32x4x4xf32>
    %2 = tpu.matmul %0, %1, %cst {dimension_numbers = #tpu.dot_dimension_numbers<[2], [1], [1], [2], [0, 0, 0, 1, 1, 2], [0], [0]>} : vector<32x4x12xbf16>, vector<32x12x4xbf16>, vector<32x4x4xf32> -> vector<32x4x4xf32>
    "tpu.trace_stop"() : () -> ()
    %cst_5 = arith.constant dense<0xFF800000> : vector<32x4xf32>
    %3 = vector.multi_reduction <maximumf>, %2, %cst_5 [2] : vector<32x4x4xf32> to vector<32x4xf32>
    %4 = vector.shape_cast %3 : vector<32x4xf32> to vector<32x4x1xf32>
    %5 = vector.broadcast %4 : vector<32x4x1xf32> to vector<32x4x4xf32>
    %6 = arith.subf %2, %5 : vector<32x4x4xf32>
    %7 = math.exp %6 : vector<32x4x4xf32>
    %cst_6 = arith.constant dense<0.000000e+00> : vector<32x4xf32>
    %8 = vector.multi_reduction <add>, %7, %cst_6 [2] : vector<32x4x4xf32> to vector<32x4xf32>
    %9 = vector.shape_cast %8 : vector<32x4xf32> to vector<32x4x1xf32>
    %10 = tpu.reciprocal %9 {approx = true} : vector<32x4x1xf32> -> vector<32x4x1xf32>
    %11 = vector.broadcast %10 : vector<32x4x1xf32> to vector<32x4x4xf32>
    %12 = arith.mulf %7, %11 : vector<32x4x4xf32>
    %13 = arith.truncf %12 : vector<32x4x4xf32> to vector<32x4x4xbf16>
    %c0_7 = arith.constant 0 : index
    %c0_8 = arith.constant 0 : index
    %c0_9 = arith.constant 0 : index
    %14 = vector.load %arg4[%c0_7, %c0_8, %c0_9] : memref<32x4x8xbf16, #tpu.memory_space<vmem>>, vector<32x4x8xbf16>
    "tpu.trace_start"() <{level = 10 : i32, message = "bqk,bkd->bqd"}> : () -> ()
    %cst_10 = arith.constant dense<0.000000e+00> : vector<32x4x8xf32>
    %15 = tpu.matmul %13, %14, %cst_10 {dimension_numbers = #tpu.dot_dimension_numbers<[2], [1], [1], [2], [0, 0, 0, 1, 1, 2], [0], [0]>} : vector<32x4x4xbf16>, vector<32x4x8xbf16>, vector<32x4x8xf32> -> vector<32x4x8xf32>
    "tpu.trace_stop"() : () -> ()
    %16 = arith.truncf %15 : vector<32x4x8xf32> to vector<32x4x8xbf16>
    %c0_11 = arith.constant 0 : index
    %c0_12 = arith.constant 0 : index
    %c0_13 = arith.constant 0 : index
    %17 = vector.load %arg5[%c0_11, %c0_12, %c0_13] : memref<32x4x8xbf16, #tpu.memory_space<vmem>>, vector<32x4x8xbf16>
    tpu.vector_store %arg5[%c0_11, %c0_12, %c0_13], %16 {strides = array<i32>} : memref<32x4x8xbf16, #tpu.memory_space<vmem>>, vector<32x4x8xbf16>,
    return
  }
  func.func @transform_0(%arg0: i32, %arg1: i32) -> (i32, i32, i32) {
    %c0_i32 = arith.constant 0 : i32
    %c0_i32_0 = arith.constant 0 : i32
    return %arg0, %arg1, %c0_i32 : i32, i32, i32
  }
  func.func @transform_1(%arg0: i32, %arg1: i32) -> (i32, i32, i32) {
    %c0_i32 = arith.constant 0 : i32
    %c0_i32_0 = arith.constant 0 : i32
    %c0_i32_1 = arith.constant 0 : i32
    return %arg0, %c0_i32, %c0_i32_0 : i32, i32, i32
  }
  func.func @transform_2(%arg0: i32, %arg1: i32) -> (i32, i32, i32) {
    %c0_i32 = arith.constant 0 : i32
    %c0_i32_0 = arith.constant 0 : i32
    %c0_i32_1 = arith.constant 0 : i32
    return %arg0, %c0_i32, %c0_i32_0 : i32, i32, i32
  }
  func.func @transform_3(%arg0: i32, %arg1: i32) -> (i32, i32, i32) {
    %c0_i32 = arith.constant 0 : i32
    %c0_i32_0 = arith.constant 0 : i32
    return %arg0, %arg1, %c0_i32 : i32, i32, i32
  }
}

module attributes {stable_mosaic.version = 11 : i64} {
  func.func @_linear_kernel(%arg0: i32, %arg1: i32, %arg2: memref<32x32xbf16, #tpu.memory_space<vmem>>, %arg3: memref<32x128xbf16, #tpu.memory_space<vmem>>, %arg4: memref<1x128xf32, #tpu.memory_space<vmem>>, %arg5: memref<32x128xbf16, #tpu.memory_space<vmem>>) attributes {dimension_semantics = [#tpu.dimension_semantics<arbitrary>, #tpu.dimension_semantics<parallel>], iteration_bounds = array<i64: 1, 1>, scalar_prefetch = 0 : i64, scratch_operands = 0 : i64, tpu.core_type = #tpu.core_type<tc>, window_params = [{transform_indices = @transform_0, window_bounds = array<i64: 32, 32>}, {transform_indices = @transform_1, window_bounds = array<i64: 32, 128>}, {transform_indices = @transform_2, window_bounds = array<i64: 1, 128>}, {transform_indices = @transform_3, window_bounds = array<i64: 32, 128>}]} {
    %c0 = arith.constant 0 : index
    %c0_0 = arith.constant 0 : index
    %0 = vector.load %arg2[%c0, %c0_0] : memref<32x32xbf16, #tpu.memory_space<vmem>>, vector<32x32xbf16>
    %c0_1 = arith.constant 0 : index
    %c0_2 = arith.constant 0 : index
    %1 = vector.load %arg3[%c0_1, %c0_2] : memref<32x128xbf16, #tpu.memory_space<vmem>>, vector<32x128xbf16>
    %cst = arith.constant dense<0.000000e+00> : vector<32x128xf32>
    %2 = tpu.matmul %0, %1, %cst {dimension_numbers = #tpu.dot_dimension_numbers<[1], [0], [0], [1], [0, 0, 1, 1], [], []>} : vector<32x32xbf16>, vector<32x128xbf16>, vector<32x128xf32> -> vector<32x128xf32>
    %c0_3 = arith.constant 0 : index
    %c0_4 = arith.constant 0 : index
    %3 = vector.load %arg4[%c0_3, %c0_4] : memref<1x128xf32, #tpu.memory_space<vmem>>, vector<1x128xf32>
    %4 = vector.broadcast %3 : vector<1x128xf32> to vector<32x128xf32>
    %5 = arith.addf %2, %4 : vector<32x128xf32>
    %cst_5 = arith.constant 5.000000e-01 : f32
    %6 = vector.broadcast %cst_5 : f32 to vector<32x128xf32>
    %7 = arith.mulf %6, %5 : vector<32x128xf32>
    %cst_6 = arith.constant 0.707106769 : f32
    %8 = vector.broadcast %cst_6 : f32 to vector<32x128xf32>
    %9 = arith.mulf %5, %8 : vector<32x128xf32>
    %10 = math.erf %9 : vector<32x128xf32>
    %cst_7 = arith.constant 1.000000e+00 : f32
    %11 = vector.broadcast %cst_7 : f32 to vector<32x128xf32>
    %12 = arith.addf %11, %10 : vector<32x128xf32>
    %13 = arith.mulf %7, %12 : vector<32x128xf32>
    %14 = arith.truncf %13 : vector<32x128xf32> to vector<32x128xbf16>
    %c0_8 = arith.constant 0 : index
    %c0_9 = arith.constant 0 : index
    %15 = vector.load %arg5[%c0_8, %c0_9] : memref<32x128xbf16, #tpu.memory_space<vmem>>, vector<32x128xbf16>
    tpu.vector_store %arg5[%c0_8, %c0_9], %14 {strides = array<i32>} : memref<32x128xbf16, #tpu.memory_space<vmem>>, vector<32x128xbf16>,
    return
  }
  func.func @transform_0(%arg0: i32, %arg1: i32) -> (i32, i32) {
    %c0_i32 = arith.constant 0 : i32
    %c0_i32_0 = arith.constant 0 : i32
    return %arg1, %c0_i32 : i32, i32
  }
  func.func @transform_1(%arg0: i32, %arg1: i32) -> (i32, i32) {
    %c0_i32 = arith.constant 0 : i32
    %c0_i32_0 = arith.constant 0 : i32
    return %c0_i32, %arg0 : i32, i32
  }
  func.func @transform_2(%arg0: i32, %arg1: i32) -> (i32, i32) {
    %c0_i32 = arith.constant 0 : i32
    %c0_i32_0 = arith.constant 0 : i32
    return %c0_i32, %arg0 : i32, i32
  }
  func.func @transform_3(%arg0: i32, %arg1: i32) -> (i32, i32) {
    %c0_i32 = arith.constant 0 : i32
    return %arg1, %arg0 : i32, i32
  }
}

module attributes {stable_mosaic.version = 11 : i64} {
  func.func @_linear_kernel(%arg0: i32, %arg1: i32, %arg2: memref<32x32xbf16, #tpu.memory_space<vmem>>, %arg3: memref<32x32xbf16, #tpu.memory_space<vmem>>, %arg4: memref<1x32xf32, #tpu.memory_space<vmem>>, %arg5: memref<32x32xbf16, #tpu.memory_space<vmem>>) attributes {dimension_semantics = [#tpu.dimension_semantics<arbitrary>, #tpu.dimension_semantics<parallel>], iteration_bounds = array<i64: 1, 1>, scalar_prefetch = 0 : i64, scratch_operands = 0 : i64, tpu.core_type = #tpu.core_type<tc>, window_params = [{transform_indices = @transform_0, window_bounds = array<i64: 32, 32>}, {transform_indices = @transform_1, window_bounds = array<i64: 32, 32>}, {transform_indices = @transform_2, window_bounds = array<i64: 1, 32>}, {transform_indices = @transform_3, window_bounds = array<i64: 32, 32>}]} {
    %c0 = arith.constant 0 : index
    %c0_0 = arith.constant 0 : index
    %0 = vector.load %arg2[%c0, %c0_0] : memref<32x32xbf16, #tpu.memory_space<vmem>>, vector<32x32xbf16>
    %c0_1 = arith.constant 0 : index
    %c0_2 = arith.constant 0 : index
    %1 = vector.load %arg3[%c0_1, %c0_2] : memref<32x32xbf16, #tpu.memory_space<vmem>>, vector<32x32xbf16>
    %cst = arith.constant dense<0.000000e+00> : vector<32x32xf32>
    %2 = tpu.matmul %0, %1, %cst {dimension_numbers = #tpu.dot_dimension_numbers<[1], [0], [0], [1], [0, 0, 1, 1], [], []>} : vector<32x32xbf16>, vector<32x32xbf16>, vector<32x32xf32> -> vector<32x32xf32>
    %c0_3 = arith.constant 0 : index
    %c0_4 = arith.constant 0 : index
    %3 = vector.load %arg4[%c0_3, %c0_4] : memref<1x32xf32, #tpu.memory_space<vmem>>, vector<1x32xf32>
    %4 = vector.broadcast %3 : vector<1x32xf32> to vector<32x32xf32>
    %5 = arith.addf %2, %4 : vector<32x32xf32>
    %6 = arith.truncf %5 : vector<32x32xf32> to vector<32x32xbf16>
    %c0_5 = arith.constant 0 : index
    %c0_6 = arith.constant 0 : index
    %7 = vector.load %arg5[%c0_5, %c0_6] : memref<32x32xbf16, #tpu.memory_space<vmem>>, vector<32x32xbf16>
    tpu.vector_store %arg5[%c0_5, %c0_6], %6 {strides = array<i32>} : memref<32x32xbf16, #tpu.memory_space<vmem>>, vector<32x32xbf16>,
    return
  }
  func.func @transform_0(%arg0: i32, %arg1: i32) -> (i32, i32) {
    %c0_i32 = arith.constant 0 : i32
    %c0_i32_0 = arith.constant 0 : i32
    return %arg1, %c0_i32 : i32, i32
  }
  func.func @transform_1(%arg0: i32, %arg1: i32) -> (i32, i32) {
    %c0_i32 = arith.constant 0 : i32
    %c0_i32_0 = arith.constant 0 : i32
    return %c0_i32, %arg0 : i32, i32
  }
  func.func @transform_2(%arg0: i32, %arg1: i32) -> (i32, i32) {
    %c0_i32 = arith.constant 0 : i32
    %c0_i32_0 = arith.constant 0 : i32
    return %c0_i32, %arg0 : i32, i32
  }
  func.func @transform_3(%arg0: i32, %arg1: i32) -> (i32, i32) {
    %c0_i32 = arith.constant 0 : i32
    return %arg1, %arg0 : i32, i32
  }
}

module attributes {stable_mosaic.version = 11 : i64} {
  func.func @_add_layernorm_kernel(%arg0: i32, %arg1: memref<32x32xf32, #tpu.memory_space<vmem>>, %arg2: memref<32x32xbf16, #tpu.memory_space<vmem>>, %arg3: memref<1x32xf32, #tpu.memory_space<vmem>>, %arg4: memref<1x32xf32, #tpu.memory_space<vmem>>, %arg5: memref<32x32xf32, #tpu.memory_space<vmem>>, %arg6: memref<32x32xbf16, #tpu.memory_space<vmem>>) attributes {dimension_semantics = [#tpu.dimension_semantics<parallel>], iteration_bounds = array<i64: 1>, scalar_prefetch = 0 : i64, scratch_operands = 0 : i64, tpu.core_type = #tpu.core_type<tc>, window_params = [{transform_indices = @transform_0, window_bounds = array<i64: 32, 32>}, {transform_indices = @transform_1, window_bounds = array<i64: 32, 32>}, {pipeline_mode = #tpu.pipeline_mode<synchronous>, transform_indices = @transform_2, window_bounds = array<i64: 1, 32>}, {pipeline_mode = #tpu.pipeline_mode<synchronous>, transform_indices = @transform_3, window_bounds = array<i64: 1, 32>}, {transform_indices = @transform_4, window_bounds = array<i64: 32, 32>}, {transform_indices = @transform_5, window_bounds = array<i64: 32, 32>}]} {
    %c0 = arith.constant 0 : index
    %c0_0 = arith.constant 0 : index
    %0 = vector.load %arg1[%c0, %c0_0] : memref<32x32xf32, #tpu.memory_space<vmem>>, vector<32x32xf32>
    %c0_1 = arith.constant 0 : index
    %c0_2 = arith.constant 0 : index
    %1 = vector.load %arg2[%c0_1, %c0_2] : memref<32x32xbf16, #tpu.memory_space<vmem>>, vector<32x32xbf16>
    %2 = arith.extf %1 : vector<32x32xbf16> to vector<32x32xf32>
    %3 = arith.addf %0, %2 : vector<32x32xf32>
    %c0_3 = arith.constant 0 : index
    %c0_4 = arith.constant 0 : index
    %4 = vector.load %arg5[%c0_3, %c0_4] : memref<32x32xf32, #tpu.memory_space<vmem>>, vector<32x32xf32>
    tpu.vector_store %arg5[%c0_3, %c0_4], %3 {strides = array<i32>} : memref<32x32xf32, #tpu.memory_space<vmem>>, vector<32x32xf32>,
    %cst = arith.constant dense<0.000000e+00> : vector<32xf32>
    %5 = vector.multi_reduction <add>, %3, %cst [1] : vector<32x32xf32> to vector<32xf32>
    %6 = vector.shape_cast %5 : vector<32xf32> to vector<32x1xf32>
    %cst_5 = arith.constant 3.200000e+01 : f32
    %7 = vector.broadcast %cst_5 : f32 to vector<32x1xf32>
    %8 = arith.divf %6, %7 : vector<32x1xf32>
    %9 = vector.broadcast %8 : vector<32x1xf32> to vector<32x32xf32>
    %10 = arith.subf %3, %9 : vector<32x32xf32>
    %11 = arith.mulf %10, %10 : vector<32x32xf32>
    %cst_6 = arith.constant dense<0.000000e+00> : vector<32xf32>
    %12 = vector.multi_reduction <add>, %11, %cst_6 [1] : vector<32x32xf32> to vector<32xf32>
    %13 = vector.shape_cast %12 : vector<32xf32> to vector<32x1xf32>
    %cst_7 = arith.constant 3.200000e+01 : f32
    %14 = vector.broadcast %cst_7 : f32 to vector<32x1xf32>
    %15 = arith.divf %13, %14 : vector<32x1xf32>
    %16 = vector.broadcast %8 : vector<32x1xf32> to vector<32x32xf32>
    %17 = arith.subf %3, %16 : vector<32x32xf32>
    %cst_8 = arith.constant 9.99999997E-7 : f32
    %18 = vector.broadcast %cst_8 : f32 to vector<32x1xf32>
    %19 = arith.addf %15, %18 : vector<32x1xf32>
    %20 = math.rsqrt %19 : vector<32x1xf32>
    %21 = vector.broadcast %20 : vector<32x1xf32> to vector<32x32xf32>
    %22 = arith.mulf %17, %21 : vector<32x32xf32>
    %c0_9 = arith.constant 0 : index
    %c0_10 = arith.constant 0 : index
    %23 = vector.load %arg3[%c0_9, %c0_10] : memref<1x32xf32, #tpu.memory_space<vmem>>, vector<1x32xf32>
    %24 = vector.broadcast %23 : vector<1x32xf32> to vector<32x32xf32>
    %25 = arith.mulf %22, %24 : vector<32x32xf32>
    %c0_11 = arith.constant 0 : index
    %c0_12 = arith.constant 0 : index
    %26 = vector.load %arg4[%c0_11, %c0_12] : memref<1x32xf32, #tpu.memory_space<vmem>>, vector<1x32xf32>
    %27 = vector.broadcast %26 : vector<1x32xf32> to vector<32x32xf32>
    %28 = arith.addf %25, %27 : vector<32x32xf32>
    %29 = arith.truncf %28 : vector<32x32xf32> to vector<32x32xbf16>
    %c0_13 = arith.constant 0 : index
    %c0_14 = arith.constant 0 : index
    %30 = vector.load %arg6[%c0_13, %c0_14] : memref<32x32xbf16, #tpu.memory_space<vmem>>, vector<32x32xbf16>
    tpu.vector_store %arg6[%c0_13, %c0_14], %29 {strides = array<i32>} : memref<32x32xbf16, #tpu.memory_space<vmem>>, vector<32x32xbf16>,
    return
  }
  func.func @transform_0(%arg0: i32) -> (i32, i32) {
    %c0_i32 = arith.constant 0 : i32
    %c0_i32_0 = arith.constant 0 : i32
    return %arg0, %c0_i32 : i32, i32
  }
  func.func @transform_1(%arg0: i32) -> (i32, i32) {
    %c0_i32 = arith.constant 0 : i32
    %c0_i32_0 = arith.constant 0 : i32
    return %arg0, %c0_i32 : i32, i32
  }
  func.func @transform_2(%arg0: i32) -> (i32, i32) {
    %c0_i32 = arith.constant 0 : i32
    %c0_i32_0 = arith.constant 0 : i32
    %c0_i32_1 = arith.constant 0 : i32
    return %c0_i32, %c0_i32_0 : i32, i32
  }
  func.func @transform_3(%arg0: i32) -> (i32, i32) {
    %c0_i32 = arith.constant 0 : i32
    %c0_i32_0 = arith.constant 0 : i32
    %c0_i32_1 = arith.constant 0 : i32
    return %c0_i32, %c0_i32_0 : i32, i32
  }
  func.func @transform_4(%arg0: i32) -> (i32, i32) {
    %c0_i32 = arith.constant 0 : i32
    %c0_i32_0 = arith.constant 0 : i32
    return %arg0, %c0_i32 : i32, i32
  }
  func.func @transform_5(%arg0: i32) -> (i32, i32) {
    %c0_i32 = arith.constant 0 : i32
    %c0_i32_0 = arith.constant 0 : i32
    return %arg0, %c0_i32 : i32, i32
  }
}

module attributes {stable_mosaic.version = 11 : i64} {
  func.func @_linear_kernel(%arg0: i32, %arg1: i32, %arg2: memref<32x128xbf16, #tpu.memory_space<vmem>>, %arg3: memref<128x32xbf16, #tpu.memory_space<vmem>>, %arg4: memref<1x32xf32, #tpu.memory_space<vmem>>, %arg5: memref<32x32xbf16, #tpu.memory_space<vmem>>) attributes {dimension_semantics = [#tpu.dimension_semantics<arbitrary>, #tpu.dimension_semantics<parallel>], iteration_bounds = array<i64: 1, 1>, scalar_prefetch = 0 : i64, scratch_operands = 0 : i64, tpu.core_type = #tpu.core_type<tc>, window_params = [{transform_indices = @transform_0, window_bounds = array<i64: 32, 128>}, {transform_indices = @transform_1, window_bounds = array<i64: 128, 32>}, {transform_indices = @transform_2, window_bounds = array<i64: 1, 32>}, {transform_indices = @transform_3, window_bounds = array<i64: 32, 32>}]} {
    %c0 = arith.constant 0 : index
    %c0_0 = arith.constant 0 : index
    %0 = vector.load %arg2[%c0, %c0_0] : memref<32x128xbf16, #tpu.memory_space<vmem>>, vector<32x128xbf16>
    %c0_1 = arith.constant 0 : index
    %c0_2 = arith.constant 0 : index
    %1 = vector.load %arg3[%c0_1, %c0_2] : memref<128x32xbf16, #tpu.memory_space<vmem>>, vector<128x32xbf16>
    %cst = arith.constant dense<0.000000e+00> : vector<32x32xf32>
    %2 = tpu.matmul %0, %1, %cst {dimension_numbers = #tpu.dot_dimension_numbers<[1], [0], [0], [1], [0, 0, 1, 1], [], []>} : vector<32x128xbf16>, vector<128x32xbf16>, vector<32x32xf32> -> vector<32x32xf32>
    %c0_3 = arith.constant 0 : index
    %c0_4 = arith.constant 0 : index
    %3 = vector.load %arg4[%c0_3, %c0_4] : memref<1x32xf32, #tpu.memory_space<vmem>>, vector<1x32xf32>
    %4 = vector.broadcast %3 : vector<1x32xf32> to vector<32x32xf32>
    %5 = arith.addf %2, %4 : vector<32x32xf32>
    %6 = arith.truncf %5 : vector<32x32xf32> to vector<32x32xbf16>
    %c0_5 = arith.constant 0 : index
    %c0_6 = arith.constant 0 : index
    %7 = vector.load %arg5[%c0_5, %c0_6] : memref<32x32xbf16, #tpu.memory_space<vmem>>, vector<32x32xbf16>
    tpu.vector_store %arg5[%c0_5, %c0_6], %6 {strides = array<i32>} : memref<32x32xbf16, #tpu.memory_space<vmem>>, vector<32x32xbf16>,
    return
  }
  func.func @transform_0(%arg0: i32, %arg1: i32) -> (i32, i32) {
    %c0_i32 = arith.constant 0 : i32
    %c0_i32_0 = arith.constant 0 : i32
    return %arg1, %c0_i32 : i32, i32
  }
  func.func @transform_1(%arg0: i32, %arg1: i32) -> (i32, i32) {
    %c0_i32 = arith.constant 0 : i32
    %c0_i32_0 = arith.constant 0 : i32
    return %c0_i32, %arg0 : i32, i32
  }
  func.func @transform_2(%arg0: i32, %arg1: i32) -> (i32, i32) {
    %c0_i32 = arith.constant 0 : i32
    %c0_i32_0 = arith.constant 0 : i32
    return %c0_i32, %arg0 : i32, i32
  }
  func.func @transform_3(%arg0: i32, %arg1: i32) -> (i32, i32) {
    %c0_i32 = arith.constant 0 : i32
    return %arg1, %arg0 : i32, i32
  }
}

module attributes {stable_mosaic.version = 11 : i64} {
  func.func @_attn_kernel(%arg0: i32, %arg1: i32, %arg2: memref<8x16x16xbf16, #tpu.memory_space<vmem>>, %arg3: memref<8x16x16xbf16, #tpu.memory_space<vmem>>, %arg4: memref<8x16x8xbf16, #tpu.memory_space<vmem>>, %arg5: memref<8x16x8xbf16, #tpu.memory_space<vmem>>) attributes {dimension_semantics = [#tpu.dimension_semantics<parallel>, #tpu.dimension_semantics<parallel>], iteration_bounds = array<i64: 1, 1>, scalar_prefetch = 0 : i64, scratch_operands = 0 : i64, tpu.core_type = #tpu.core_type<tc>, window_params = [{transform_indices = @transform_0, window_bounds = array<i64: 8, 16, 16>}, {transform_indices = @transform_1, window_bounds = array<i64: 8, 16, 16>}, {transform_indices = @transform_2, window_bounds = array<i64: 8, 16, 8>}, {transform_indices = @transform_3, window_bounds = array<i64: 8, 16, 8>}]} {
    %c0 = arith.constant 0 : index
    %c0_0 = arith.constant 0 : index
    %c0_1 = arith.constant 0 : index
    %0 = vector.load %arg2[%c0, %c0_0, %c0_1] : memref<8x16x16xbf16, #tpu.memory_space<vmem>>, vector<8x16x16xbf16>
    %c0_2 = arith.constant 0 : index
    %c0_3 = arith.constant 0 : index
    %c0_4 = arith.constant 0 : index
    %1 = vector.load %arg3[%c0_2, %c0_3, %c0_4] : memref<8x16x16xbf16, #tpu.memory_space<vmem>>, vector<8x16x16xbf16>
    "tpu.trace_start"() <{level = 10 : i32, message = "bqd,bdk->bqk"}> : () -> ()
    %cst = arith.constant dense<0.000000e+00> : vector<8x16x16xf32>
    %2 = tpu.matmul %0, %1, %cst {dimension_numbers = #tpu.dot_dimension_numbers<[2], [1], [1], [2], [0, 0, 0, 1, 1, 2], [0], [0]>} : vector<8x16x16xbf16>, vector<8x16x16xbf16>, vector<8x16x16xf32> -> vector<8x16x16xf32>
    "tpu.trace_stop"() : () -> ()
    %cst_5 = arith.constant dense<0xFF800000> : vector<8x16xf32>
    %3 = vector.multi_reduction <maximumf>, %2, %cst_5 [2] : vector<8x16x16xf32> to vector<8x16xf32>
    %4 = vector.shape_cast %3 : vector<8x16xf32> to vector<8x16x1xf32>
    %5 = vector.broadcast %4 : vector<8x16x1xf32> to vector<8x16x16xf32>
    %6 = arith.subf %2, %5 : vector<8x16x16xf32>
    %7 = math.exp %6 : vector<8x16x16xf32>
    %cst_6 = arith.constant dense<0.000000e+00> : vector<8x16xf32>
    %8 = vector.multi_reduction <add>, %7, %cst_6 [2] : vector<8x16x16xf32> to vector<8x16xf32>
    %9 = vector.shape_cast %8 : vector<8x16xf32> to vector<8x16x1xf32>
    %10 = tpu.reciprocal %9 {approx = true} : vector<8x16x1xf32> -> vector<8x16x1xf32>
    %11 = vector.broadcast %10 : vector<8x16x1xf32> to vector<8x16x16xf32>
    %12 = arith.mulf %7, %11 : vector<8x16x16xf32>
    %13 = arith.truncf %12 : vector<8x16x16xf32> to vector<8x16x16xbf16>
    %c0_7 = arith.constant 0 : index
    %c0_8 = arith.constant 0 : index
    %c0_9 = arith.constant 0 : index
    %14 = vector.load %arg4[%c0_7, %c0_8, %c0_9] : memref<8x16x8xbf16, #tpu.memory_space<vmem>>, vector<8x16x8xbf16>
    "tpu.trace_start"() <{level = 10 : i32, message = "bqk,bkd->bqd"}> : () -> ()
    %cst_10 = arith.constant dense<0.000000e+00> : vector<8x16x8xf32>
    %15 = tpu.matmul %13, %14, %cst_10 {dimension_numbers = #tpu.dot_dimension_numbers<[2], [1], [1], [2], [0, 0, 0, 1, 1, 2], [0], [0]>} : vector<8x16x16xbf16>, vector<8x16x8xbf16>, vector<8x16x8xf32> -> vector<8x16x8xf32>
    "tpu.trace_stop"() : () -> ()
    %16 = arith.truncf %15 : vector<8x16x8xf32> to vector<8x16x8xbf16>
    %c0_11 = arith.constant 0 : index
    %c0_12 = arith.constant 0 : index
    %c0_13 = arith.constant 0 : index
    %17 = vector.load %arg5[%c0_11, %c0_12, %c0_13] : memref<8x16x8xbf16, #tpu.memory_space<vmem>>, vector<8x16x8xbf16>
    tpu.vector_store %arg5[%c0_11, %c0_12, %c0_13], %16 {strides = array<i32>} : memref<8x16x8xbf16, #tpu.memory_space<vmem>>, vector<8x16x8xbf16>,
    return
  }
  func.func @transform_0(%arg0: i32, %arg1: i32) -> (i32, i32, i32) {
    %c0_i32 = arith.constant 0 : i32
    %c0_i32_0 = arith.constant 0 : i32
    return %arg0, %arg1, %c0_i32 : i32, i32, i32
  }
  func.func @transform_1(%arg0: i32, %arg1: i32) -> (i32, i32, i32) {
    %c0_i32 = arith.constant 0 : i32
    %c0_i32_0 = arith.constant 0 : i32
    %c0_i32_1 = arith.constant 0 : i32
    return %arg0, %c0_i32, %c0_i32_0 : i32, i32, i32
  }
  func.func @transform_2(%arg0: i32, %arg1: i32) -> (i32, i32, i32) {
    %c0_i32 = arith.constant 0 : i32
    %c0_i32_0 = arith.constant 0 : i32
    %c0_i32_1 = arith.constant 0 : i32
    return %arg0, %c0_i32, %c0_i32_0 : i32, i32, i32
  }
  func.func @transform_3(%arg0: i32, %arg1: i32) -> (i32, i32, i32) {
    %c0_i32 = arith.constant 0 : i32
    %c0_i32_0 = arith.constant 0 : i32
    return %arg0, %arg1, %c0_i32 : i32, i32, i32
  }
}

module attributes {stable_mosaic.version = 11 : i64} {
  func.func @_linear_kernel(%arg0: i32, %arg1: i32, %arg2: memref<32x32xbf16, #tpu.memory_space<vmem>>, %arg3: memref<32x16xbf16, #tpu.memory_space<vmem>>, %arg4: memref<1x16xf32, #tpu.memory_space<vmem>>, %arg5: memref<32x16xbf16, #tpu.memory_space<vmem>>) attributes {dimension_semantics = [#tpu.dimension_semantics<arbitrary>, #tpu.dimension_semantics<parallel>], iteration_bounds = array<i64: 1, 1>, scalar_prefetch = 0 : i64, scratch_operands = 0 : i64, tpu.core_type = #tpu.core_type<tc>, window_params = [{transform_indices = @transform_0, window_bounds = array<i64: 32, 32>}, {transform_indices = @transform_1, window_bounds = array<i64: 32, 16>}, {transform_indices = @transform_2, window_bounds = array<i64: 1, 16>}, {transform_indices = @transform_3, window_bounds = array<i64: 32, 16>}]} {
    %c0 = arith.constant 0 : index
    %c0_0 = arith.constant 0 : index
    %0 = vector.load %arg2[%c0, %c0_0] : memref<32x32xbf16, #tpu.memory_space<vmem>>, vector<32x32xbf16>
    %c0_1 = arith.constant 0 : index
    %c0_2 = arith.constant 0 : index
    %1 = vector.load %arg3[%c0_1, %c0_2] : memref<32x16xbf16, #tpu.memory_space<vmem>>, vector<32x16xbf16>
    %cst = arith.constant dense<0.000000e+00> : vector<32x16xf32>
    %2 = tpu.matmul %0, %1, %cst {dimension_numbers = #tpu.dot_dimension_numbers<[1], [0], [0], [1], [0, 0, 1, 1], [], []>} : vector<32x32xbf16>, vector<32x16xbf16>, vector<32x16xf32> -> vector<32x16xf32>
    %c0_3 = arith.constant 0 : index
    %c0_4 = arith.constant 0 : index
    %3 = vector.load %arg4[%c0_3, %c0_4] : memref<1x16xf32, #tpu.memory_space<vmem>>, vector<1x16xf32>
    %4 = vector.broadcast %3 : vector<1x16xf32> to vector<32x16xf32>
    %5 = arith.addf %2, %4 : vector<32x16xf32>
    %6 = arith.truncf %5 : vector<32x16xf32> to vector<32x16xbf16>
    %c0_5 = arith.constant 0 : index
    %c0_6 = arith.constant 0 : index
    %7 = vector.load %arg5[%c0_5, %c0_6] : memref<32x16xbf16, #tpu.memory_space<vmem>>, vector<32x16xbf16>
    tpu.vector_store %arg5[%c0_5, %c0_6], %6 {strides = array<i32>} : memref<32x16xbf16, #tpu.memory_space<vmem>>, vector<32x16xbf16>,
    return
  }
  func.func @transform_0(%arg0: i32, %arg1: i32) -> (i32, i32) {
    %c0_i32 = arith.constant 0 : i32
    %c0_i32_0 = arith.constant 0 : i32
    return %arg1, %c0_i32 : i32, i32
  }
  func.func @transform_1(%arg0: i32, %arg1: i32) -> (i32, i32) {
    %c0_i32 = arith.constant 0 : i32
    %c0_i32_0 = arith.constant 0 : i32
    return %c0_i32, %arg0 : i32, i32
  }
  func.func @transform_2(%arg0: i32, %arg1: i32) -> (i32, i32) {
    %c0_i32 = arith.constant 0 : i32
    %c0_i32_0 = arith.constant 0 : i32
    return %c0_i32, %arg0 : i32, i32
  }
  func.func @transform_3(%arg0: i32, %arg1: i32) -> (i32, i32) {
    %c0_i32 = arith.constant 0 : i32
    return %arg1, %arg0 : i32, i32
  }
}

module attributes {stable_mosaic.version = 11 : i64} {
  func.func @_layernorm_kernel(%arg0: i32, %arg1: memref<32x16xbf16, #tpu.memory_space<vmem>>, %arg2: memref<1x16xf32, #tpu.memory_space<vmem>>, %arg3: memref<1x16xf32, #tpu.memory_space<vmem>>, %arg4: memref<32x16xbf16, #tpu.memory_space<vmem>>) attributes {dimension_semantics = [#tpu.dimension_semantics<parallel>], iteration_bounds = array<i64: 1>, scalar_prefetch = 0 : i64, scratch_operands = 0 : i64, tpu.core_type = #tpu.core_type<tc>, window_params = [{transform_indices = @transform_0, window_bounds = array<i64: 32, 16>}, {pipeline_mode = #tpu.pipeline_mode<synchronous>, transform_indices = @transform_1, window_bounds = array<i64: 1, 16>}, {pipeline_mode = #tpu.pipeline_mode<synchronous>, transform_indices = @transform_2, window_bounds = array<i64: 1, 16>}, {transform_indices = @transform_3, window_bounds = array<i64: 32, 16>}]} {
    %c0 = arith.constant 0 : index
    %c0_0 = arith.constant 0 : index
    %0 = vector.load %arg1[%c0, %c0_0] : memref<32x16xbf16, #tpu.memory_space<vmem>>, vector<32x16xbf16>
    %1 = arith.extf %0 : vector<32x16xbf16> to vector<32x16xf32>
    %cst = arith.constant dense<0.000000e+00> : vector<32xf32>
    %2 = vector.multi_reduction <add>, %1, %cst [1] : vector<32x16xf32> to vector<32xf32>
    %3 = vector.shape_cast %2 : vector<32xf32> to vector<32x1xf32>
    %cst_1 = arith.constant 1.600000e+01 : f32
    %4 = vector.broadcast %cst_1 : f32 to vector<32x1xf32>
    %5 = arith.divf %3, %4 : vector<32x1xf32>
    %6 = vector.broadcast %5 : vector<32x1xf32> to vector<32x16xf32>
    %7 = arith.subf %1, %6 : vector<32x16xf32>
    %8 = arith.mulf %7, %7 : vector<32x16xf32>
    %cst_2 = arith.constant dense<0.000000e+00> : vector<32xf32>
    %9 = vector.multi_reduction <add>, %8, %cst_2 [1] : vector<32x16xf32> to vector<32xf32>
    %10 = vector.shape_cast %9 : vector<32xf32> to vector<32x1xf32>
    %cst_3 = arith.constant 1.600000e+01 : f32
    %11 = vector.broadcast %cst_3 : f32 to vector<32x1xf32>
    %12 = arith.divf %10, %11 : vector<32x1xf32>
    %13 = vector.broadcast %5 : vector<32x1xf32> to vector<32x16xf32>
    %14 = arith.subf %1, %13 : vector<32x16xf32>
    %cst_4 = arith.constant 9.99999997E-7 : f32
    %15 = vector.broadcast %cst_4 : f32 to vector<32x1xf32>
    %16 = arith.addf %12, %15 : vector<32x1xf32>
    %17 = math.rsqrt %16 : vector<32x1xf32>
    %18 = vector.broadcast %17 : vector<32x1xf32> to vector<32x16xf32>
    %19 = arith.mulf %14, %18 : vector<32x16xf32>
    %c0_5 = arith.constant 0 : index
    %c0_6 = arith.constant 0 : index
    %20 = vector.load %arg2[%c0_5, %c0_6] : memref<1x16xf32, #tpu.memory_space<vmem>>, vector<1x16xf32>
    %21 = vector.broadcast %20 : vector<1x16xf32> to vector<32x16xf32>
    %22 = arith.mulf %19, %21 : vector<32x16xf32>
    %c0_7 = arith.constant 0 : index
    %c0_8 = arith.constant 0 : index
    %23 = vector.load %arg3[%c0_7, %c0_8] : memref<1x16xf32, #tpu.memory_space<vmem>>, vector<1x16xf32>
    %24 = vector.broadcast %23 : vector<1x16xf32> to vector<32x16xf32>
    %25 = arith.addf %22, %24 : vector<32x16xf32>
    %26 = arith.truncf %25 : vector<32x16xf32> to vector<32x16xbf16>
    %c0_9 = arith.constant 0 : index
    %c0_10 = arith.constant 0 : index
    %27 = vector.load %arg4[%c0_9, %c0_10] : memref<32x16xbf16, #tpu.memory_space<vmem>>, vector<32x16xbf16>
    tpu.vector_store %arg4[%c0_9, %c0_10], %26 {strides = array<i32>} : memref<32x16xbf16, #tpu.memory_space<vmem>>, vector<32x16xbf16>,
    return
  }
  func.func @transform_0(%arg0: i32) -> (i32, i32) {
    %c0_i32 = arith.constant 0 : i32
    %c0_i32_0 = arith.constant 0 : i32
    return %arg0, %c0_i32 : i32, i32
  }
  func.func @transform_1(%arg0: i32) -> (i32, i32) {
    %c0_i32 = arith.constant 0 : i32
    %c0_i32_0 = arith.constant 0 : i32
    %c0_i32_1 = arith.constant 0 : i32
    return %c0_i32, %c0_i32_0 : i32, i32
  }
  func.func @transform_2(%arg0: i32) -> (i32, i32) {
    %c0_i32 = arith.constant 0 : i32
    %c0_i32_0 = arith.constant 0 : i32
    %c0_i32_1 = arith.constant 0 : i32
    return %c0_i32, %c0_i32_0 : i32, i32
  }
  func.func @transform_3(%arg0: i32) -> (i32, i32) {
    %c0_i32 = arith.constant 0 : i32
    %c0_i32_0 = arith.constant 0 : i32
    return %arg0, %c0_i32 : i32, i32
  }
}

module attributes {stable_mosaic.version = 11 : i64} {
  func.func @_linear_kernel(%arg0: i32, %arg1: i32, %arg2: memref<32x144xbf16, #tpu.memory_space<vmem>>, %arg3: memref<144x16xbf16, #tpu.memory_space<vmem>>, %arg4: memref<1x16xf32, #tpu.memory_space<vmem>>, %arg5: memref<32x16xbf16, #tpu.memory_space<vmem>>) attributes {dimension_semantics = [#tpu.dimension_semantics<arbitrary>, #tpu.dimension_semantics<parallel>], iteration_bounds = array<i64: 1, 1>, scalar_prefetch = 0 : i64, scratch_operands = 0 : i64, tpu.core_type = #tpu.core_type<tc>, window_params = [{transform_indices = @transform_0, window_bounds = array<i64: 32, 144>}, {transform_indices = @transform_1, window_bounds = array<i64: 144, 16>}, {transform_indices = @transform_2, window_bounds = array<i64: 1, 16>}, {transform_indices = @transform_3, window_bounds = array<i64: 32, 16>}]} {
    %c0 = arith.constant 0 : index
    %c0_0 = arith.constant 0 : index
    %0 = vector.load %arg2[%c0, %c0_0] : memref<32x144xbf16, #tpu.memory_space<vmem>>, vector<32x144xbf16>
    %c0_1 = arith.constant 0 : index
    %c0_2 = arith.constant 0 : index
    %1 = vector.load %arg3[%c0_1, %c0_2] : memref<144x16xbf16, #tpu.memory_space<vmem>>, vector<144x16xbf16>
    %cst = arith.constant dense<0.000000e+00> : vector<32x16xf32>
    %2 = tpu.matmul %0, %1, %cst {dimension_numbers = #tpu.dot_dimension_numbers<[1], [0], [0], [1], [0, 0, 1, 1], [], []>} : vector<32x144xbf16>, vector<144x16xbf16>, vector<32x16xf32> -> vector<32x16xf32>
    %c0_3 = arith.constant 0 : index
    %c0_4 = arith.constant 0 : index
    %3 = vector.load %arg4[%c0_3, %c0_4] : memref<1x16xf32, #tpu.memory_space<vmem>>, vector<1x16xf32>
    %4 = vector.broadcast %3 : vector<1x16xf32> to vector<32x16xf32>
    %5 = arith.addf %2, %4 : vector<32x16xf32>
    %6 = arith.truncf %5 : vector<32x16xf32> to vector<32x16xbf16>
    %c0_5 = arith.constant 0 : index
    %c0_6 = arith.constant 0 : index
    %7 = vector.load %arg5[%c0_5, %c0_6] : memref<32x16xbf16, #tpu.memory_space<vmem>>, vector<32x16xbf16>
    tpu.vector_store %arg5[%c0_5, %c0_6], %6 {strides = array<i32>} : memref<32x16xbf16, #tpu.memory_space<vmem>>, vector<32x16xbf16>,
    return
  }
  func.func @transform_0(%arg0: i32, %arg1: i32) -> (i32, i32) {
    %c0_i32 = arith.constant 0 : i32
    %c0_i32_0 = arith.constant 0 : i32
    return %arg1, %c0_i32 : i32, i32
  }
  func.func @transform_1(%arg0: i32, %arg1: i32) -> (i32, i32) {
    %c0_i32 = arith.constant 0 : i32
    %c0_i32_0 = arith.constant 0 : i32
    return %c0_i32, %arg0 : i32, i32
  }
  func.func @transform_2(%arg0: i32, %arg1: i32) -> (i32, i32) {
    %c0_i32 = arith.constant 0 : i32
    %c0_i32_0 = arith.constant 0 : i32
    return %c0_i32, %arg0 : i32, i32
  }
  func.func @transform_3(%arg0: i32, %arg1: i32) -> (i32, i32) {
    %c0_i32 = arith.constant 0 : i32
    return %arg1, %arg0 : i32, i32
  }
}

</mosaic_0001>

<llo_original>
// kernel: lora_sam_encoder_forward.26
$region0: #{lora_sam_encoder_forward.26}
  #allocation0 [shape = 'u32[]', space=smem, size = 0x4, offset = 0x4, fixed_abs, tag = 'smem constant byte address 0x4 - core index']
  #allocation1 [shape = 'u32[72,128]{1,0:T(1,128)}', space=vmem, size = 0x9000, scoped, tag = 'internal scratch']
  %s0 = inlined_call_operand.vmem [shape: bf16[32,768], index: 0, kind: input, shape index: {}]
  %s1 = inlined_call_operand.vmem [shape: bf16[768,32], index: 1, kind: input, shape index: {}]
  %s2 = inlined_call_operand.vmem [shape: f32[1,32], index: 2, kind: input, shape index: {}]
  %s3 = inlined_call_operand.vmem [shape: bf16[32,32], index: 3, kind: output, shape index: {}]
  %s4 = sld [smem:[#allocation0]]
  $region22: #{lora_sam_encoder_forward.26} parent=0
    _
  %s6 = ssub.s32 1, %s4
  %s7 = scalar_select 0, %s6, %s4
  // Predicated region
  $region2: #{lora_sam_encoder_forward.26} parent=0 // pred_check
    _
  $region3: #{lora_sam_encoder_forward.26} parent=0 // pred_check_branch
    %9 = sbr.rel (0) target = $region5
  $region4: #{lora_sam_encoder_forward.26} parent=0 // pred_region
    _
  $region5: #{lora_sam_encoder_forward.26} parent=0 // pred_fallthru
    _
  // Predicated region
  $region6: #{lora_sam_encoder_forward.26} parent=0 // pred_check
    _
  $region7: #{lora_sam_encoder_forward.26} parent=0 // pred_check_branch
    %11 = sbr.rel (0) target = $region9
  $region8: #{lora_sam_encoder_forward.26} parent=0 // pred_region
    _
  $region9: #{lora_sam_encoder_forward.26} parent=0 // pred_fallthru
    _
  // Predicated region
  $region10: #{lora_sam_encoder_forward.26} parent=0 // pred_check
    _
  $region11: #{lora_sam_encoder_forward.26} parent=0 // pred_check_branch
    %13 = sbr.rel (0) target = $region13
  $region12: #{lora_sam_encoder_forward.26} parent=0 // pred_region
    _
  $region13: #{lora_sam_encoder_forward.26} parent=0 // pred_fallthru
    _
  %v14 = vld [vmem:[%s0] sm:$0xff]
  %v15 = vld [vmem:[%s0 + $0x8] sm:$0xff]
  %v16 = vld [vmem:[%s0 + $0x10] sm:$0xff]
  %v17 = vld [vmem:[%s0 + $0x18] sm:$0xff]
  %v18 = vld [vmem:[%s0 + $0x20] sm:$0xff]
  %v19 = vld [vmem:[%s0 + $0x28] sm:$0xff]
  %v20 = vld [vmem:[%s0 + $0x30] sm:$0xff]
  %v21 = vld [vmem:[%s0 + $0x38] sm:$0xff]
  %v22 = vld [vmem:[%s0 + $0x40] sm:$0xff]
  %v23 = vld [vmem:[%s0 + $0x48] sm:$0xff]
  %v24 = vld [vmem:[%s0 + $0x50] sm:$0xff]
  %v25 = vld [vmem:[%s0 + $0x58] sm:$0xff]
  %v26 = vld [vmem:[%s1] sm:$0xf]
  %v27 = vld [vmem:[%s1 + $0x4] sm:$0xf]
  %v28 = vld [vmem:[%s1 + $0x8] sm:$0xf]
  %v29 = vld [vmem:[%s1 + $0xc] sm:$0xf]
  %v30 = vld [vmem:[%s1 + $0x10] sm:$0xf]
  %v31 = vld [vmem:[%s1 + $0x14] sm:$0xf]
  %v32 = vld [vmem:[%s1 + $0x18] sm:$0xf]
  %v33 = vld [vmem:[%s1 + $0x1c] sm:$0xf]
  %v34 = vld [vmem:[%s1 + $0x20] sm:$0xf]
  %v35 = vld [vmem:[%s1 + $0x24] sm:$0xf]
  %v36 = vld [vmem:[%s1 + $0x28] sm:$0xf]
  %v37 = vld [vmem:[%s1 + $0x2c] sm:$0xf]
  %v38 = vld [vmem:[%s1 + $0x30] sm:$0xf]
  %v39 = vld [vmem:[%s1 + $0x34] sm:$0xf]
  %v40 = vld [vmem:[%s1 + $0x38] sm:$0xf]
  %v41 = vld [vmem:[%s1 + $0x3c] sm:$0xf]
  %v42 = vld [vmem:[%s1 + $0x40] sm:$0xf]
  %v43 = vld [vmem:[%s1 + $0x44] sm:$0xf]
  %v44 = vld [vmem:[%s1 + $0x48] sm:$0xf]
  %v45 = vld [vmem:[%s1 + $0x4c] sm:$0xf]
  %v46 = vld [vmem:[%s1 + $0x50] sm:$0xf]
  %v47 = vld [vmem:[%s1 + $0x54] sm:$0xf]
  %v48 = vld [vmem:[%s1 + $0x58] sm:$0xf]
  %v49 = vld [vmem:[%s1 + $0x5c] sm:$0xf]
  %v50 = vld [vmem:[%s1 + $0x60] sm:$0xf]
  %v51 = vld [vmem:[%s1 + $0x64] sm:$0xf]
  %v52 = vld [vmem:[%s1 + $0x68] sm:$0xf]
  %v53 = vld [vmem:[%s1 + $0x6c] sm:$0xf]
  %v54 = vld [vmem:[%s1 + $0x70] sm:$0xf]
  %v55 = vld [vmem:[%s1 + $0x74] sm:$0xf]
  %v56 = vld [vmem:[%s1 + $0x78] sm:$0xf]
  %v57 = vld [vmem:[%s1 + $0x7c] sm:$0xf]
  %v58 = vld [vmem:[%s1 + $0x80] sm:$0xf]
  %v59 = vld [vmem:[%s1 + $0x84] sm:$0xf]
  %v60 = vld [vmem:[%s1 + $0x88] sm:$0xf]
  %v61 = vld [vmem:[%s1 + $0x8c] sm:$0xf]
  %v62 = vld [vmem:[%s1 + $0x90] sm:$0xf]
  %v63 = vld [vmem:[%s1 + $0x94] sm:$0xf]
  %v64 = vld [vmem:[%s1 + $0x98] sm:$0xf]
  %v65 = vld [vmem:[%s1 + $0x9c] sm:$0xf]
  %v66 = vld [vmem:[%s1 + $0xa0] sm:$0xf]
  %v67 = vld [vmem:[%s1 + $0xa4] sm:$0xf]
  %v68 = vld [vmem:[%s1 + $0xa8] sm:$0xf]
  %v69 = vld [vmem:[%s1 + $0xac] sm:$0xf]
  %v70 = vld [vmem:[%s1 + $0xb0] sm:$0xf]
  %v71 = vld [vmem:[%s1 + $0xb4] sm:$0xf]
  %v72 = vld [vmem:[%s1 + $0xb8] sm:$0xf]
  %v73 = vld [vmem:[%s1 + $0xbc] sm:$0xf]
  %v74 = vld [vmem:[%s1 + $0xc0] sm:$0xf]
  %v75 = vld [vmem:[%s1 + $0xc4] sm:$0xf]
  %v76 = vld [vmem:[%s1 + $0xc8] sm:$0xf]
  %v77 = vld [vmem:[%s1 + $0xcc] sm:$0xf]
  %v78 = vld [vmem:[%s1 + $0xd0] sm:$0xf]
  %v79 = vld [vmem:[%s1 + $0xd4] sm:$0xf]
  %v80 = vld [vmem:[%s1 + $0xd8] sm:$0xf]
  %v81 = vld [vmem:[%s1 + $0xdc] sm:$0xf]
  %v82 = vld [vmem:[%s1 + $0xe0] sm:$0xf]
  %v83 = vld [vmem:[%s1 + $0xe4] sm:$0xf]
  %v84 = vld [vmem:[%s1 + $0xe8] sm:$0xf]
  %v85 = vld [vmem:[%s1 + $0xec] sm:$0xf]
  %v86 = vld [vmem:[%s1 + $0xf0] sm:$0xf]
  %v87 = vld [vmem:[%s1 + $0xf4] sm:$0xf]
  %v88 = vld [vmem:[%s1 + $0xf8] sm:$0xf]
  %v89 = vld [vmem:[%s1 + $0xfc] sm:$0xf]
  %v90 = vld [vmem:[%s1 + $0x100] sm:$0xf]
  %v91 = vld [vmem:[%s1 + $0x104] sm:$0xf]
  %v92 = vld [vmem:[%s1 + $0x108] sm:$0xf]
  %v93 = vld [vmem:[%s1 + $0x10c] sm:$0xf]
  %v94 = vld [vmem:[%s1 + $0x110] sm:$0xf]
  %v95 = vld [vmem:[%s1 + $0x114] sm:$0xf]
  %v96 = vld [vmem:[%s1 + $0x118] sm:$0xf]
  %v97 = vld [vmem:[%s1 + $0x11c] sm:$0xf]
  %v98 = vld [vmem:[%s1 + $0x120] sm:$0xf]
  %v99 = vld [vmem:[%s1 + $0x124] sm:$0xf]
  %v100 = vld [vmem:[%s1 + $0x128] sm:$0xf]
  %v101 = vld [vmem:[%s1 + $0x12c] sm:$0xf]
  %v102 = vld [vmem:[%s1 + $0x130] sm:$0xf]
  %v103 = vld [vmem:[%s1 + $0x134] sm:$0xf]
  %v104 = vld [vmem:[%s1 + $0x138] sm:$0xf]
  %v105 = vld [vmem:[%s1 + $0x13c] sm:$0xf]
  %v106 = vld [vmem:[%s1 + $0x140] sm:$0xf]
  %v107 = vld [vmem:[%s1 + $0x144] sm:$0xf]
  %v108 = vld [vmem:[%s1 + $0x148] sm:$0xf]
  %v109 = vld [vmem:[%s1 + $0x14c] sm:$0xf]
  %v110 = vld [vmem:[%s1 + $0x150] sm:$0xf]
  %v111 = vld [vmem:[%s1 + $0x154] sm:$0xf]
  %v112 = vld [vmem:[%s1 + $0x158] sm:$0xf]
  %v113 = vld [vmem:[%s1 + $0x15c] sm:$0xf]
  %v114 = vld [vmem:[%s1 + $0x160] sm:$0xf]
  %v115 = vld [vmem:[%s1 + $0x164] sm:$0xf]
  %v116 = vld [vmem:[%s1 + $0x168] sm:$0xf]
  %v117 = vld [vmem:[%s1 + $0x16c] sm:$0xf]
  %v118 = vld [vmem:[%s1 + $0x170] sm:$0xf]
  %v119 = vld [vmem:[%s1 + $0x174] sm:$0xf]
  %v120 = vld [vmem:[%s1 + $0x178] sm:$0xf]
  %v121 = vld [vmem:[%s1 + $0x17c] sm:$0xf]
  %v122 = vld [vmem:[%s2] sm:$0x1]
  %v124 = vperm.slane %v122, 0
  %v138 = vunpack.c.l.b16 %v14
  %v139 = vunpack.c.h.b16 %v14
  %v140 = vunpack.c.l.b16 %v15
  %v141 = vunpack.c.h.b16 %v15
  %v142 = vunpack.c.l.b16 %v16
  %v143 = vunpack.c.h.b16 %v16
  %v144 = vunpack.c.l.b16 %v17
  %v145 = vunpack.c.h.b16 %v17
  %v146 = vunpack.c.l.b16 %v18
  %v147 = vunpack.c.h.b16 %v18
  %v148 = vunpack.c.l.b16 %v19
  %v149 = vunpack.c.h.b16 %v19
  %v150 = vunpack.c.l.b16 %v20
  %v151 = vunpack.c.h.b16 %v20
  %v152 = vunpack.c.l.b16 %v21
  %v153 = vunpack.c.h.b16 %v21
  %v154 = vunpack.c.l.b16 %v22
  %v155 = vunpack.c.h.b16 %v22
  %v156 = vunpack.c.l.b16 %v23
  %v157 = vunpack.c.h.b16 %v23
  %v158 = vunpack.c.l.b16 %v24
  %v159 = vunpack.c.h.b16 %v24
  %v160 = vunpack.c.l.b16 %v25
  %v161 = vunpack.c.h.b16 %v25
  %v162 = vpack.c.b16 %v144, %v138
  %v163 = vpack.c.b16 %v145, %v139
  %v164 = vpack.c.b16 %v146, %v140
  %v165 = vpack.c.b16 %v147, %v141
  %v166 = vpack.c.b16 %v148, %v142
  %v167 = vpack.c.b16 %v149, %v143
  %v168 = vpack.c.b16 %v156, %v150
  %v169 = vpack.c.b16 %v157, %v151
  %v170 = vpack.c.b16 %v158, %v152
  %v171 = vpack.c.b16 %v159, %v153
  %v172 = vpack.c.b16 %v160, %v154
  %v173 = vpack.c.b16 %v161, %v155
  %v282 = vunpack.c.l.b16 %v26
  %v283 = vunpack.c.l.b16 %v27
  %v284 = vunpack.c.l.b16 %v28
  %v285 = vunpack.c.l.b16 %v29
  %v286 = vunpack.c.l.b16 %v30
  %v287 = vunpack.c.l.b16 %v31
  %v288 = vunpack.c.l.b16 %v32
  %v289 = vunpack.c.l.b16 %v33
  %v290 = vunpack.c.l.b16 %v34
  %v291 = vunpack.c.l.b16 %v35
  %v292 = vunpack.c.l.b16 %v36
  %v293 = vunpack.c.l.b16 %v37
  %v294 = vunpack.c.l.b16 %v38
  %v295 = vunpack.c.l.b16 %v39
  %v296 = vunpack.c.l.b16 %v40
  %v297 = vunpack.c.l.b16 %v41
  %v298 = vunpack.c.l.b16 %v42
  %v299 = vunpack.c.l.b16 %v43
  %v300 = vunpack.c.l.b16 %v44
  %v301 = vunpack.c.l.b16 %v45
  %v302 = vunpack.c.l.b16 %v46
  %v303 = vunpack.c.l.b16 %v47
  %v304 = vunpack.c.l.b16 %v48
  %v305 = vunpack.c.l.b16 %v49
  %v306 = vunpack.c.l.b16 %v50
  %v307 = vunpack.c.l.b16 %v51
  %v308 = vunpack.c.l.b16 %v52
  %v309 = vunpack.c.l.b16 %v53
  %v310 = vunpack.c.l.b16 %v54
  %v311 = vunpack.c.l.b16 %v55
  %v312 = vunpack.c.l.b16 %v56
  %v313 = vunpack.c.l.b16 %v57
  %v314 = vunpack.c.l.b16 %v58
  %v315 = vunpack.c.l.b16 %v59
  %v316 = vunpack.c.l.b16 %v60
  %v317 = vunpack.c.l.b16 %v61
  %v318 = vunpack.c.l.b16 %v62
  %v319 = vunpack.c.l.b16 %v63
  %v320 = vunpack.c.l.b16 %v64
  %v321 = vunpack.c.l.b16 %v65
  %v322 = vunpack.c.l.b16 %v66
  %v323 = vunpack.c.l.b16 %v67
  %v324 = vunpack.c.l.b16 %v68
  %v325 = vunpack.c.l.b16 %v69
  %v326 = vunpack.c.l.b16 %v70
  %v327 = vunpack.c.l.b16 %v71
  %v328 = vunpack.c.l.b16 %v72
  %v329 = vunpack.c.l.b16 %v73
  %v330 = vunpack.c.l.b16 %v74
  %v331 = vunpack.c.l.b16 %v75
  %v332 = vunpack.c.l.b16 %v76
  %v333 = vunpack.c.l.b16 %v77
  %v334 = vunpack.c.l.b16 %v78
  %v335 = vunpack.c.l.b16 %v79
  %v336 = vunpack.c.l.b16 %v80
  %v337 = vunpack.c.l.b16 %v81
  %v338 = vunpack.c.l.b16 %v82
  %v339 = vunpack.c.l.b16 %v83
  %v340 = vunpack.c.l.b16 %v84
  %v341 = vunpack.c.l.b16 %v85
  %v342 = vunpack.c.l.b16 %v86
  %v343 = vunpack.c.l.b16 %v87
  %v344 = vunpack.c.l.b16 %v88
  %v345 = vunpack.c.l.b16 %v89
  %v346 = vunpack.c.l.b16 %v90
  %v347 = vunpack.c.l.b16 %v91
  %v348 = vunpack.c.l.b16 %v92
  %v349 = vunpack.c.l.b16 %v93
  %v350 = vunpack.c.l.b16 %v94
  %v351 = vunpack.c.l.b16 %v95
  %v352 = vunpack.c.l.b16 %v96
  %v353 = vunpack.c.l.b16 %v97
  %v354 = vunpack.c.l.b16 %v98
  %v355 = vunpack.c.l.b16 %v99
  %v356 = vunpack.c.l.b16 %v100
  %v357 = vunpack.c.l.b16 %v101
  %v358 = vunpack.c.l.b16 %v102
  %v359 = vunpack.c.l.b16 %v103
  %v360 = vunpack.c.l.b16 %v104
  %v361 = vunpack.c.l.b16 %v105
  %v362 = vunpack.c.l.b16 %v106
  %v363 = vunpack.c.l.b16 %v107
  %v364 = vunpack.c.l.b16 %v108
  %v365 = vunpack.c.l.b16 %v109
  %v366 = vunpack.c.l.b16 %v110
  %v367 = vunpack.c.l.b16 %v111
  %v368 = vunpack.c.l.b16 %v112
  %v369 = vunpack.c.l.b16 %v113
  %v370 = vunpack.c.l.b16 %v114
  %v371 = vunpack.c.l.b16 %v115
  %v372 = vunpack.c.l.b16 %v116
  %v373 = vunpack.c.l.b16 %v117
  %v374 = vunpack.c.l.b16 %v118
  %v375 = vunpack.c.l.b16 %v119
  %v376 = vunpack.c.l.b16 %v120
  %v377 = vunpack.c.l.b16 %v121
  %v378 = vpack.c.b16 %v283, %v282
  %v379 = vpack.c.b16 %v285, %v284
  %v380 = vpack.c.b16 %v287, %v286
  %v381 = vpack.c.b16 %v289, %v288
  %v382 = vpack.c.b16 %v291, %v290
  %v383 = vpack.c.b16 %v293, %v292
  %v384 = vpack.c.b16 %v295, %v294
  %v385 = vpack.c.b16 %v297, %v296
  %v386 = vpack.c.b16 %v299, %v298
  %v387 = vpack.c.b16 %v301, %v300
  %v388 = vpack.c.b16 %v303, %v302
  %v389 = vpack.c.b16 %v305, %v304
  %v390 = vpack.c.b16 %v307, %v306
  %v391 = vpack.c.b16 %v309, %v308
  %v392 = vpack.c.b16 %v311, %v310
  %v393 = vpack.c.b16 %v313, %v312
  %v394 = vpack.c.b16 %v315, %v314
  %v395 = vpack.c.b16 %v317, %v316
  %v396 = vpack.c.b16 %v319, %v318
  %v397 = vpack.c.b16 %v321, %v320
  %v398 = vpack.c.b16 %v323, %v322
  %v399 = vpack.c.b16 %v325, %v324
  %v400 = vpack.c.b16 %v327, %v326
  %v401 = vpack.c.b16 %v329, %v328
  %v402 = vpack.c.b16 %v331, %v330
  %v403 = vpack.c.b16 %v333, %v332
  %v404 = vpack.c.b16 %v335, %v334
  %v405 = vpack.c.b16 %v337, %v336
  %v406 = vpack.c.b16 %v339, %v338
  %v407 = vpack.c.b16 %v341, %v340
  %v408 = vpack.c.b16 %v343, %v342
  %v409 = vpack.c.b16 %v345, %v344
  %v410 = vpack.c.b16 %v347, %v346
  %v411 = vpack.c.b16 %v349, %v348
  %v412 = vpack.c.b16 %v351, %v350
  %v413 = vpack.c.b16 %v353, %v352
  %v414 = vpack.c.b16 %v355, %v354
  %v415 = vpack.c.b16 %v357, %v356
  %v416 = vpack.c.b16 %v359, %v358
  %v417 = vpack.c.b16 %v361, %v360
  %v418 = vpack.c.b16 %v363, %v362
  %v419 = vpack.c.b16 %v365, %v364
  %v420 = vpack.c.b16 %v367, %v366
  %v421 = vpack.c.b16 %v369, %v368
  %v422 = vpack.c.b16 %v371, %v370
  %v423 = vpack.c.b16 %v373, %v372
  %v424 = vpack.c.b16 %v375, %v374
  %v425 = vpack.c.b16 %v377, %v376
  %474 = vmatpush.bf16.msra.mxu0 %v385
  %475 = vmatpush.bf16.msra.mxu0 %v384
  %476 = vmatpush.bf16.msra.mxu0 %v383
  %477 = vmatpush.bf16.msra.mxu0 %v382
  %478 = vmatpush.bf16.msra.mxu0 %v381
  %479 = vmatpush.bf16.msra.mxu0 %v380
  %480 = vmatpush.bf16.msra.mxu0 %v379
  %481 = vmatpush.bf16.msra.mxu0 %v378
  %482 = vmatmul.bf16.gmra.mxu0 %v162
  %v483 = vpop.f32.mrf.mxu0
  %v484 = vadd.f32 %v124, %v483
  %v485 = vpop.f32.mrf.mxu0
  %v486 = vadd.f32 %v124, %v485
  %487 = vmatmul.bf16.gmra.mxu0 %v168
  %v488 = vpop.f32.mrf.mxu0
  %v489 = vadd.f32 %v124, %v488
  %v490 = vpop.f32.mrf.mxu0
  %v491 = vadd.f32 %v124, %v490
  %492 = vdwg.mxu0
  %493 = vmatpush.bf16.msra.mxu0 %v393
  %494 = vmatpush.bf16.msra.mxu0 %v392
  %495 = vmatpush.bf16.msra.mxu0 %v391
  %496 = vmatpush.bf16.msra.mxu0 %v390
  %497 = vmatpush.bf16.msra.mxu0 %v389
  %498 = vmatpush.bf16.msra.mxu0 %v388
  %499 = vmatpush.bf16.msra.mxu0 %v387
  %500 = vmatpush.bf16.msra.mxu0 %v386
  %501 = vmatmul.bf16.gmra.mxu0 %v163
  %v502 = vpop.f32.mrf.mxu0
  %v503 = vadd.f32 %v484, %v502
  %v504 = vpop.f32.mrf.mxu0
  %v505 = vadd.f32 %v486, %v504
  %506 = vmatmul.bf16.gmra.mxu0 %v169
  %v507 = vpop.f32.mrf.mxu0
  %v508 = vadd.f32 %v489, %v507
  %v509 = vpop.f32.mrf.mxu0
  %v510 = vadd.f32 %v491, %v509
  %511 = vdwg.mxu0
  %512 = vmatpush.bf16.msra.mxu0 %v401
  %513 = vmatpush.bf16.msra.mxu0 %v400
  %514 = vmatpush.bf16.msra.mxu0 %v399
  %515 = vmatpush.bf16.msra.mxu0 %v398
  %516 = vmatpush.bf16.msra.mxu0 %v397
  %517 = vmatpush.bf16.msra.mxu0 %v396
  %518 = vmatpush.bf16.msra.mxu0 %v395
  %519 = vmatpush.bf16.msra.mxu0 %v394
  %520 = vmatmul.bf16.gmra.mxu0 %v164
  %v521 = vpop.f32.mrf.mxu0
  %v522 = vadd.f32 %v503, %v521
  %v523 = vpop.f32.mrf.mxu0
  %v524 = vadd.f32 %v505, %v523
  %525 = vmatmul.bf16.gmra.mxu0 %v170
  %v526 = vpop.f32.mrf.mxu0
  %v527 = vadd.f32 %v508, %v526
  %v528 = vpop.f32.mrf.mxu0
  %v529 = vadd.f32 %v510, %v528
  %530 = vdwg.mxu0
  %531 = vmatpush.bf16.msra.mxu0 %v409
  %532 = vmatpush.bf16.msra.mxu0 %v408
  %533 = vmatpush.bf16.msra.mxu0 %v407
  %534 = vmatpush.bf16.msra.mxu0 %v406
  %535 = vmatpush.bf16.msra.mxu0 %v405
  %536 = vmatpush.bf16.msra.mxu0 %v404
  %537 = vmatpush.bf16.msra.mxu0 %v403
  %538 = vmatpush.bf16.msra.mxu0 %v402
  %539 = vmatmul.bf16.gmra.mxu0 %v165
  %v540 = vpop.f32.mrf.mxu0
  %v541 = vadd.f32 %v522, %v540
  %v542 = vpop.f32.mrf.mxu0
  %v543 = vadd.f32 %v524, %v542
  %544 = vmatmul.bf16.gmra.mxu0 %v171
  %v545 = vpop.f32.mrf.mxu0
  %v546 = vadd.f32 %v527, %v545
  %v547 = vpop.f32.mrf.mxu0
  %v548 = vadd.f32 %v529, %v547
  %549 = vdwg.mxu0
  %550 = vmatpush.bf16.msra.mxu0 %v417
  %551 = vmatpush.bf16.msra.mxu0 %v416
  %552 = vmatpush.bf16.msra.mxu0 %v415
  %553 = vmatpush.bf16.msra.mxu0 %v414
  %554 = vmatpush.bf16.msra.mxu0 %v413
  %555 = vmatpush.bf16.msra.mxu0 %v412
  %556 = vmatpush.bf16.msra.mxu0 %v411
  %557 = vmatpush.bf16.msra.mxu0 %v410
  %558 = vmatmul.bf16.gmra.mxu0 %v166
  %v559 = vpop.f32.mrf.mxu0
  %v560 = vadd.f32 %v541, %v559
  %v561 = vpop.f32.mrf.mxu0
  %v562 = vadd.f32 %v543, %v561
  %563 = vmatmul.bf16.gmra.mxu0 %v172
  %v564 = vpop.f32.mrf.mxu0
  %v565 = vadd.f32 %v546, %v564
  %v566 = vpop.f32.mrf.mxu0
  %v567 = vadd.f32 %v548, %v566
  %568 = vdwg.mxu0
  %569 = vmatpush.bf16.msra.mxu0 %v425
  %570 = vmatpush.bf16.msra.mxu0 %v424
  %571 = vmatpush.bf16.msra.mxu0 %v423
  %572 = vmatpush.bf16.msra.mxu0 %v422
  %573 = vmatpush.bf16.msra.mxu0 %v421
  %574 = vmatpush.bf16.msra.mxu0 %v420
  %575 = vmatpush.bf16.msra.mxu0 %v419
  %576 = vmatpush.bf16.msra.mxu0 %v418
  %577 = vmatmul.bf16.gmra.mxu0 %v167
  %v578 = vpop.f32.mrf.mxu0
  %v579 = vadd.f32 %v560, %v578
  %v580 = vpop.f32.mrf.mxu0
  %v581 = vadd.f32 %v562, %v580
  %582 = vmatmul.bf16.gmra.mxu0 %v173
  %v583 = vpop.f32.mrf.mxu0
  %v584 = vadd.f32 %v565, %v583
  %v585 = vpop.f32.mrf.mxu0
  %v586 = vadd.f32 %v567, %v585
  %587 = vdwg.mxu0
  %v588 = vpack.c.bf16 %v579, %v579
  %v589 = vpack.c.bf16 %v581, %v581
  %v590 = vpack.c.bf16 %v584, %v584
  %v591 = vpack.c.bf16 %v586, %v586
  %vm592 = vcmask 257024
  %593 = vst.msk [vmem:[%s3] sm:$0xf] %vm592, %v588
  %594 = vst.msk [vmem:[%s3 + $0x4] sm:$0xf] %vm592, %v589
  %595 = vst.msk [vmem:[%s3 + $0x8] sm:$0xf] %vm592, %v590
  %596 = vst.msk [vmem:[%s3 + $0xc] sm:$0xf] %vm592, %v591
  // Predicated region
  $region14: #{lora_sam_encoder_forward.26} parent=0 // pred_check
    _
  $region15: #{lora_sam_encoder_forward.26} parent=0 // pred_check_branch
    %598 = sbr.rel (0) target = $region17
  $region16: #{lora_sam_encoder_forward.26} parent=0 // pred_region
    _
  $region17: #{lora_sam_encoder_forward.26} parent=0 // pred_fallthru
    _
  // Predicated region
  $region18: #{lora_sam_encoder_forward.26} parent=0 // pred_check
    _
  $region19: #{lora_sam_encoder_forward.26} parent=0 // pred_check_branch
    %600 = sbr.rel (0) target = $region21
  $region20: #{lora_sam_encoder_forward.26} parent=0 // pred_region
    _
  $region21: #{lora_sam_encoder_forward.26} parent=0 // pred_fallthru
    _

// kernel: lora_sam_encoder_forward.27
$region0: #{lora_sam_encoder_forward.27}
  #allocation0 [shape = 'u32[]', space=smem, size = 0x4, offset = 0x4, fixed_abs, tag = 'smem constant byte address 0x4 - core index']
  #allocation1 [shape = 'u32[72,128]{1,0:T(1,128)}', space=vmem, size = 0x9000, scoped, tag = 'internal scratch']
  %s0 = inlined_call_operand.vmem [shape: f32[32,32], index: 0, kind: input, shape index: {}]
  %s1 = inlined_call_operand.vmem [shape: f32[1,32], index: 1, kind: input, shape index: {}]
  %s2 = inlined_call_operand.vmem [shape: f32[1,32], index: 2, kind: input, shape index: {}]
  %s3 = inlined_call_operand.vmem [shape: bf16[32,32], index: 3, kind: output, shape index: {}]
  %s4 = sld [smem:[#allocation0]]
  $region22: #{lora_sam_encoder_forward.27} parent=0
    _
  %s6 = ssub.s32 1, %s4
  %s7 = scalar_select 0, %s6, %s4
  // Predicated region
  $region2: #{lora_sam_encoder_forward.27} parent=0 // pred_check
    _
  $region3: #{lora_sam_encoder_forward.27} parent=0 // pred_check_branch
    %9 = sbr.rel (0) target = $region5
  $region4: #{lora_sam_encoder_forward.27} parent=0 // pred_region
    _
  $region5: #{lora_sam_encoder_forward.27} parent=0 // pred_fallthru
    _
  // Predicated region
  $region6: #{lora_sam_encoder_forward.27} parent=0 // pred_check
    _
  $region7: #{lora_sam_encoder_forward.27} parent=0 // pred_check_branch
    %11 = sbr.rel (0) target = $region9
  $region8: #{lora_sam_encoder_forward.27} parent=0 // pred_region
    _
  $region9: #{lora_sam_encoder_forward.27} parent=0 // pred_fallthru
    _
  // Predicated region
  $region10: #{lora_sam_encoder_forward.27} parent=0 // pred_check
    _
  $region11: #{lora_sam_encoder_forward.27} parent=0 // pred_check_branch
    %13 = sbr.rel (0) target = $region13
  $region12: #{lora_sam_encoder_forward.27} parent=0 // pred_region
    _
  $region13: #{lora_sam_encoder_forward.27} parent=0 // pred_fallthru
    _
  %v14 = vld [vmem:[%s0] sm:$0xff]
  %v15 = vld [vmem:[%s0 + $0x8] sm:$0xff]
  %v16 = vld [vmem:[%s0 + $0x10] sm:$0xff]
  %v17 = vld [vmem:[%s0 + $0x18] sm:$0xff]
  %vm18 = vcmask 261120
  %v19 = vsel %vm18, %v14, 0.0
  %20 = vadd.xlane.f32.xlu0 %v19
  %v21 = vpop.xlane.xlu0 %20
  %v22 = vsel %vm18, %v15, 0.0
  %23 = vadd.xlane.f32.xlu0 %v22
  %v24 = vpop.xlane.xlu0 %23
  %v25 = vsel %vm18, %v16, 0.0
  %26 = vadd.xlane.f32.xlu0 %v25
  %v27 = vpop.xlane.xlu0 %26
  %v28 = vsel %vm18, %v17, 0.0
  %29 = vadd.xlane.f32.xlu0 %v28
  %v30 = vpop.xlane.xlu0 %29
  %v31 = vrcp.pop 32.0
  %v32 = vmul.f32 32.0, %v31
  %v33 = vsub.f32 1.0, %v32
  %v34 = vmul.f32 %v31, %v33
  %v35 = vadd.f32 %v31, %v34
  %vm36 = vweird.f32 %v31
  %v37 = vsel %vm36, %v31, %v35
  %v38 = vmul.f32 %v21, %v37
  %v39 = vmul.f32 %v24, %v37
  %v40 = vmul.f32 %v27, %v37
  %v41 = vmul.f32 %v30, %v37
  %v42 = vsub.f32 %v14, %v38
  %v43 = vsub.f32 %v15, %v39
  %v44 = vsub.f32 %v16, %v40
  %v45 = vsub.f32 %v17, %v41
  %v46 = vmul.f32 %v42, %v42
  %v47 = vmul.f32 %v43, %v43
  %v48 = vmul.f32 %v44, %v44
  %v49 = vmul.f32 %v45, %v45
  %v50 = vsel %vm18, %v46, 0.0
  %51 = vadd.xlane.f32.xlu0 %v50
  %v52 = vpop.xlane.xlu0 %51
  %v53 = vsel %vm18, %v47, 0.0
  %54 = vadd.xlane.f32.xlu0 %v53
  %v55 = vpop.xlane.xlu0 %54
  %v56 = vsel %vm18, %v48, 0.0
  %57 = vadd.xlane.f32.xlu0 %v56
  %v58 = vpop.xlane.xlu0 %57
  %v59 = vsel %vm18, %v49, 0.0
  %60 = vadd.xlane.f32.xlu0 %v59
  %v61 = vpop.xlane.xlu0 %60
  %v62 = vmul.f32 %v52, %v37
  %v63 = vmul.f32 %v55, %v37
  %v64 = vmul.f32 %v58, %v37
  %v65 = vmul.f32 %v61, %v37
  %v66 = vadd.f32 %v62, 1e-06
  %v67 = vadd.f32 %v63, 1e-06
  %v68 = vadd.f32 %v64, 1e-06
  %v69 = vadd.f32 %v65, 1e-06
  %v70 = vrsqrt.pop %v66
  %v71 = vmul.f32 %v70, %v66
  %v72 = vmul.f32 %v71, %v70
  %v73 = vmul.f32 0.5, %v72
  %v74 = vsub.f32 1.5, %v73
  %v75 = vmul.f32 %v70, %v74
  %vm76 = vweird.f32 %v66
  %vm77 = vweird.f32 %v70
  %vm78 = vmor %vm76, %vm77
  %v79 = vsel %vm78, %v70, %v75
  %v80 = vrsqrt.pop %v67
  %v81 = vmul.f32 %v80, %v67
  %v82 = vmul.f32 %v81, %v80
  %v83 = vmul.f32 0.5, %v82
  %v84 = vsub.f32 1.5, %v83
  %v85 = vmul.f32 %v80, %v84
  %vm86 = vweird.f32 %v67
  %vm87 = vweird.f32 %v80
  %vm88 = vmor %vm86, %vm87
  %v89 = vsel %vm88, %v80, %v85
  %v90 = vrsqrt.pop %v68
  %v91 = vmul.f32 %v90, %v68
  %v92 = vmul.f32 %v91, %v90
  %v93 = vmul.f32 0.5, %v92
  %v94 = vsub.f32 1.5, %v93
  %v95 = vmul.f32 %v90, %v94
  %vm96 = vweird.f32 %v68
  %vm97 = vweird.f32 %v90
  %vm98 = vmor %vm96, %vm97
  %v99 = vsel %vm98, %v90, %v95
  %v100 = vrsqrt.pop %v69
  %v101 = vmul.f32 %v100, %v69
  %v102 = vmul.f32 %v101, %v100
  %v103 = vmul.f32 0.5, %v102
  %v104 = vsub.f32 1.5, %v103
  %v105 = vmul.f32 %v100, %v104
  %vm106 = vweird.f32 %v69
  %vm107 = vweird.f32 %v100
  %vm108 = vmor %vm106, %vm107
  %v109 = vsel %vm108, %v100, %v105
  %v110 = vmul.f32 %v42, %v79
  %v111 = vmul.f32 %v43, %v89
  %v112 = vmul.f32 %v44, %v99
  %v113 = vmul.f32 %v45, %v109
  %v114 = vld [vmem:[%s1] sm:$0x1]
  %v116 = vperm.slane %v114, 0
  %v118 = vmul.f32 %v110, %v116
  %v119 = vmul.f32 %v111, %v116
  %v120 = vmul.f32 %v112, %v116
  %v121 = vmul.f32 %v113, %v116
  %v122 = vld [vmem:[%s2] sm:$0x1]
  %v124 = vperm.slane %v122, 0
  %v126 = vadd.f32 %v118, %v124
  %v127 = vadd.f32 %v119, %v124
  %v128 = vadd.f32 %v120, %v124
  %v129 = vadd.f32 %v121, %v124
  %v130 = vpack.c.bf16 %v126, %v126
  %v131 = vpack.c.bf16 %v127, %v127
  %v132 = vpack.c.bf16 %v128, %v128
  %v133 = vpack.c.bf16 %v129, %v129
  %vm134 = vcmask 257024
  %135 = vst.msk [vmem:[%s3] sm:$0xf] %vm134, %v130
  %136 = vst.msk [vmem:[%s3 + $0x4] sm:$0xf] %vm134, %v131
  %137 = vst.msk [vmem:[%s3 + $0x8] sm:$0xf] %vm134, %v132
  %138 = vst.msk [vmem:[%s3 + $0xc] sm:$0xf] %vm134, %v133
  // Predicated region
  $region14: #{lora_sam_encoder_forward.27} parent=0 // pred_check
    _
  $region15: #{lora_sam_encoder_forward.27} parent=0 // pred_check_branch
    %140 = sbr.rel (0) target = $region17
  $region16: #{lora_sam_encoder_forward.27} parent=0 // pred_region
    _
  $region17: #{lora_sam_encoder_forward.27} parent=0 // pred_fallthru
    _
  // Predicated region
  $region18: #{lora_sam_encoder_forward.27} parent=0 // pred_check
    _
  $region19: #{lora_sam_encoder_forward.27} parent=0 // pred_check_branch
    %142 = sbr.rel (0) target = $region21
  $region20: #{lora_sam_encoder_forward.27} parent=0 // pred_region
    _
  $region21: #{lora_sam_encoder_forward.27} parent=0 // pred_fallthru
    _

// kernel: lora_sam_encoder_forward.28
$region0: #{lora_sam_encoder_forward.28}
  #allocation0 [shape = 'u32[]', space=smem, size = 0x4, offset = 0x4, fixed_abs, tag = 'smem constant byte address 0x4 - core index']
  #allocation1 [shape = 'u32[72,128]{1,0:T(1,128)}', space=vmem, size = 0x9000, scoped, tag = 'internal scratch']
  %s0 = inlined_call_operand.vmem [shape: bf16[32,32], index: 0, kind: input, shape index: {}]
  %s1 = inlined_call_operand.vmem [shape: bf16[32,96], index: 1, kind: input, shape index: {}]
  %s2 = inlined_call_operand.vmem [shape: f32[1,96], index: 2, kind: input, shape index: {}]
  %s3 = inlined_call_operand.vmem [shape: bf16[32,128], index: 3, kind: input, shape index: {}]
  %s4 = inlined_call_operand.vmem [shape: bf16[128,96], index: 4, kind: input, shape index: {}]
  %s5 = inlined_call_operand.vmem [shape: bf16[32,96], index: 5, kind: output, shape index: {}]
  %s6 = sld [smem:[#allocation0]]
  $region30: #{lora_sam_encoder_forward.28} parent=0
    _
  %s8 = ssub.s32 1, %s6
  %s9 = scalar_select 0, %s8, %s6
  // Predicated region
  $region2: #{lora_sam_encoder_forward.28} parent=0 // pred_check
    _
  $region3: #{lora_sam_encoder_forward.28} parent=0 // pred_check_branch
    %11 = sbr.rel (0) target = $region5
  $region4: #{lora_sam_encoder_forward.28} parent=0 // pred_region
    _
  $region5: #{lora_sam_encoder_forward.28} parent=0 // pred_fallthru
    _
  // Predicated region
  $region6: #{lora_sam_encoder_forward.28} parent=0 // pred_check
    _
  $region7: #{lora_sam_encoder_forward.28} parent=0 // pred_check_branch
    %13 = sbr.rel (0) target = $region9
  $region8: #{lora_sam_encoder_forward.28} parent=0 // pred_region
    _
  $region9: #{lora_sam_encoder_forward.28} parent=0 // pred_fallthru
    _
  // Predicated region
  $region10: #{lora_sam_encoder_forward.28} parent=0 // pred_check
    _
  $region11: #{lora_sam_encoder_forward.28} parent=0 // pred_check_branch
    %15 = sbr.rel (0) target = $region13
  $region12: #{lora_sam_encoder_forward.28} parent=0 // pred_region
    _
  $region13: #{lora_sam_encoder_forward.28} parent=0 // pred_fallthru
    _
  // Predicated region
  $region14: #{lora_sam_encoder_forward.28} parent=0 // pred_check
    _
  $region15: #{lora_sam_encoder_forward.28} parent=0 // pred_check_branch
    %17 = sbr.rel (0) target = $region17
  $region16: #{lora_sam_encoder_forward.28} parent=0 // pred_region
    _
  $region17: #{lora_sam_encoder_forward.28} parent=0 // pred_fallthru
    _
  // Predicated region
  $region18: #{lora_sam_encoder_forward.28} parent=0 // pred_check
    _
  $region19: #{lora_sam_encoder_forward.28} parent=0 // pred_check_branch
    %19 = sbr.rel (0) target = $region21
  $region20: #{lora_sam_encoder_forward.28} parent=0 // pred_region
    _
  $region21: #{lora_sam_encoder_forward.28} parent=0 // pred_fallthru
    _
  %v21 = vld [vmem:[%s0] sm:$0xf]
  %v22 = vld [vmem:[%s0 + $0x4] sm:$0xf]
  %v23 = vld [vmem:[%s0 + $0x8] sm:$0xf]
  %v24 = vld [vmem:[%s0 + $0xc] sm:$0xf]
  %v25 = vld [vmem:[%s1] sm:$0xf]
  %v26 = vld [vmem:[%s1 + $0x4] sm:$0xf]
  %v27 = vld [vmem:[%s1 + $0x8] sm:$0xf]
  %v28 = vld [vmem:[%s1 + $0xc] sm:$0xf]
  %v29 = vld [vmem:[%s2] sm:$0x1]
  %v31 = vperm.slane %v29, 0
  %v37 = vunpack.c.l.b16 %v21
  %v38 = vunpack.c.l.b16 %v22
  %v39 = vunpack.c.l.b16 %v23
  %v40 = vunpack.c.l.b16 %v24
  %v41 = vpack.c.b16 %v38, %v37
  %v42 = vpack.c.b16 %v40, %v39
  %v47 = vunpack.c.l.b16 %v25
  %v48 = vunpack.c.l.b16 %v26
  %v49 = vunpack.c.l.b16 %v27
  %v50 = vunpack.c.l.b16 %v28
  %v51 = vpack.c.b16 %v48, %v47
  %v52 = vpack.c.b16 %v50, %v49
  %vm55 = vcmask 261120
  %v57 = vsel %vm55, %v41, 0
  %v60 = vsel %vm55, %v42, 0
  %62 = vmatpush.bf16.msra.mxu0 0
  %63 = vmatpush.bf16.msra.mxu0 0
  %64 = vmatpush.bf16.msra.mxu0 0
  %65 = vmatpush.bf16.msra.mxu0 0
  %66 = vmatpush.bf16.msra.mxu0 0
  %67 = vmatpush.bf16.msra.mxu0 0
  %68 = vmatpush.bf16.msra.mxu0 %v52
  %69 = vmatpush.bf16.msra.mxu0 %v51
  %70 = vmatmul.bf16.gmra.mxu0 %v57
  %v71 = vpop.f32.mrf.mxu0
  %v72 = vadd.f32 %v31, %v71
  %v73 = vpop.f32.mrf.mxu0
  %v74 = vadd.f32 %v31, %v73
  %75 = vmatmul.bf16.gmra.mxu0 %v60
  %v76 = vpop.f32.mrf.mxu0
  %v77 = vadd.f32 %v31, %v76
  %v78 = vpop.f32.mrf.mxu0
  %v79 = vadd.f32 %v31, %v78
  %80 = vdwg.mxu0
  %v81 = vld [vmem:[%s3] sm:$0xf]
  %v82 = vld [vmem:[%s3 + $0x4] sm:$0xf]
  %v83 = vld [vmem:[%s3 + $0x8] sm:$0xf]
  %v84 = vld [vmem:[%s3 + $0xc] sm:$0xf]
  %v89 = vunpack.c.l.b16 %v81
  %v90 = vunpack.c.l.b16 %v82
  %v91 = vunpack.c.l.b16 %v83
  %v92 = vunpack.c.l.b16 %v84
  %v93 = vpack.c.b16 %v90, %v89
  %v94 = vpack.c.b16 %v92, %v91
  %97 = vmatpush.bf16.msra.mxu0 0
  %98 = vmatpush.bf16.msra.mxu0 0
  %99 = vmatpush.bf16.msra.mxu0 0
  %100 = vmatpush.bf16.msra.mxu0 0
  %101 = vmatpush.bf16.msra.mxu0 0
  %102 = vmatpush.bf16.msra.mxu0 0
  %103 = vmatpush.bf16.msra.mxu0 %v94
  %104 = vmatpush.bf16.msra.mxu0 %v93
  %105 = vmatmul.bf16.gmra.mxu0 %v57
  %v106 = vpop.f32.mrf.mxu0
  %v107 = vadd.f32 0.0, %v106
  %v108 = vpop.f32.mrf.mxu0
  %v109 = vadd.f32 0.0, %v108
  %110 = vmatmul.bf16.gmra.mxu0 %v60
  %v111 = vpop.f32.mrf.mxu0
  %v112 = vadd.f32 0.0, %v111
  %v113 = vpop.f32.mrf.mxu0
  %v114 = vadd.f32 0.0, %v113
  %115 = vdwg.mxu0
  %v116 = vpack.c.bf16 %v109, %v107
  %v117 = vpack.c.bf16 %v114, %v112
  %v118 = vld [vmem:[%s4] sm:$0xf]
  %v119 = vld [vmem:[%s4 + $0x4] sm:$0xf]
  %v120 = vld [vmem:[%s4 + $0x8] sm:$0xf]
  %v121 = vld [vmem:[%s4 + $0xc] sm:$0xf]
  %v122 = vld [vmem:[%s4 + $0x10] sm:$0xf]
  %v123 = vld [vmem:[%s4 + $0x14] sm:$0xf]
  %v124 = vld [vmem:[%s4 + $0x18] sm:$0xf]
  %v125 = vld [vmem:[%s4 + $0x1c] sm:$0xf]
  %v126 = vld [vmem:[%s4 + $0x20] sm:$0xf]
  %v127 = vld [vmem:[%s4 + $0x24] sm:$0xf]
  %v128 = vld [vmem:[%s4 + $0x28] sm:$0xf]
  %v129 = vld [vmem:[%s4 + $0x2c] sm:$0xf]
  %v130 = vld [vmem:[%s4 + $0x30] sm:$0xf]
  %v131 = vld [vmem:[%s4 + $0x34] sm:$0xf]
  %v132 = vld [vmem:[%s4 + $0x38] sm:$0xf]
  %v133 = vld [vmem:[%s4 + $0x3c] sm:$0xf]
  %v150 = vunpack.c.l.b16 %v118
  %v151 = vunpack.c.l.b16 %v119
  %v152 = vunpack.c.l.b16 %v120
  %v153 = vunpack.c.l.b16 %v121
  %v154 = vunpack.c.l.b16 %v122
  %v155 = vunpack.c.l.b16 %v123
  %v156 = vunpack.c.l.b16 %v124
  %v157 = vunpack.c.l.b16 %v125
  %v158 = vunpack.c.l.b16 %v126
  %v159 = vunpack.c.l.b16 %v127
  %v160 = vunpack.c.l.b16 %v128
  %v161 = vunpack.c.l.b16 %v129
  %v162 = vunpack.c.l.b16 %v130
  %v163 = vunpack.c.l.b16 %v131
  %v164 = vunpack.c.l.b16 %v132
  %v165 = vunpack.c.l.b16 %v133
  %v166 = vpack.c.b16 %v151, %v150
  %v167 = vpack.c.b16 %v153, %v152
  %v168 = vpack.c.b16 %v155, %v154
  %v169 = vpack.c.b16 %v157, %v156
  %v170 = vpack.c.b16 %v159, %v158
  %v171 = vpack.c.b16 %v161, %v160
  %v172 = vpack.c.b16 %v163, %v162
  %v173 = vpack.c.b16 %v165, %v164
  %182 = vmatpush.bf16.msra.mxu0 %v173
  %183 = vmatpush.bf16.msra.mxu0 %v172
  %184 = vmatpush.bf16.msra.mxu0 %v171
  %185 = vmatpush.bf16.msra.mxu0 %v170
  %186 = vmatpush.bf16.msra.mxu0 %v169
  %187 = vmatpush.bf16.msra.mxu0 %v168
  %188 = vmatpush.bf16.msra.mxu0 %v167
  %189 = vmatpush.bf16.msra.mxu0 %v166
  %190 = vmatmul.bf16.gmra.mxu0 %v116
  %v191 = vpop.f32.mrf.mxu0
  %v192 = vadd.f32 0.0, %v191
  %v193 = vpop.f32.mrf.mxu0
  %v194 = vadd.f32 0.0, %v193
  %195 = vmatmul.bf16.gmra.mxu0 %v117
  %v196 = vpop.f32.mrf.mxu0
  %v197 = vadd.f32 0.0, %v196
  %v198 = vpop.f32.mrf.mxu0
  %v199 = vadd.f32 0.0, %v198
  %200 = vdwg.mxu0
  %v201 = vadd.f32 %v72, %v192
  %v202 = vadd.f32 %v74, %v194
  %v203 = vadd.f32 %v77, %v197
  %v204 = vadd.f32 %v79, %v199
  %v205 = vpack.c.bf16 %v201, %v201
  %v206 = vpack.c.bf16 %v202, %v202
  %v207 = vpack.c.bf16 %v203, %v203
  %v208 = vpack.c.bf16 %v204, %v204
  %vm209 = vcmask 781312
  %210 = vst.msk [vmem:[%s5] sm:$0xf] %vm209, %v205
  %211 = vst.msk [vmem:[%s5 + $0x4] sm:$0xf] %vm209, %v206
  %212 = vst.msk [vmem:[%s5 + $0x8] sm:$0xf] %vm209, %v207
  %213 = vst.msk [vmem:[%s5 + $0xc] sm:$0xf] %vm209, %v208
  // Predicated region
  $region22: #{lora_sam_encoder_forward.28} parent=0 // pred_check
    _
  $region23: #{lora_sam_encoder_forward.28} parent=0 // pred_check_branch
    %215 = sbr.rel (0) target = $region25
  $region24: #{lora_sam_encoder_forward.28} parent=0 // pred_region
    _
  $region25: #{lora_sam_encoder_forward.28} parent=0 // pred_fallthru
    _
  // Predicated region
  $region26: #{lora_sam_encoder_forward.28} parent=0 // pred_check
    _
  $region27: #{lora_sam_encoder_forward.28} parent=0 // pred_check_branch
    %217 = sbr.rel (0) target = $region29
  $region28: #{lora_sam_encoder_forward.28} parent=0 // pred_region
    _
  $region29: #{lora_sam_encoder_forward.28} parent=0 // pred_fallthru
    _

// kernel: lora_sam_encoder_forward.32
$region0: #{lora_sam_encoder_forward.32}
  #allocation0 [shape = 'u32[]', space=smem, size = 0x4, offset = 0x4, fixed_abs, tag = 'smem constant byte address 0x4 - core index']
  #allocation1 [shape = 'u32[72,128]{1,0:T(1,128)}', space=vmem, size = 0x9000, scoped, tag = 'internal scratch']
  %s0 = inlined_call_operand.vmem [shape: bf16[32,32], index: 0, kind: input, shape index: {}]
  %s1 = inlined_call_operand.vmem [shape: bf16[32,128], index: 1, kind: input, shape index: {}]
  %s2 = inlined_call_operand.vmem [shape: f32[1,128], index: 2, kind: input, shape index: {}]
  %s3 = inlined_call_operand.vmem [shape: bf16[32,128], index: 3, kind: output, shape index: {}]
  %s4 = sld [smem:[#allocation0]]
  $region22: #{lora_sam_encoder_forward.32} parent=0
    _
  %s6 = ssub.s32 1, %s4
  %s7 = scalar_select 0, %s6, %s4
  // Predicated region
  $region2: #{lora_sam_encoder_forward.32} parent=0 // pred_check
    _
  $region3: #{lora_sam_encoder_forward.32} parent=0 // pred_check_branch
    %9 = sbr.rel (0) target = $region5
  $region4: #{lora_sam_encoder_forward.32} parent=0 // pred_region
    _
  $region5: #{lora_sam_encoder_forward.32} parent=0 // pred_fallthru
    _
  // Predicated region
  $region6: #{lora_sam_encoder_forward.32} parent=0 // pred_check
    _
  $region7: #{lora_sam_encoder_forward.32} parent=0 // pred_check_branch
    %11 = sbr.rel (0) target = $region9
  $region8: #{lora_sam_encoder_forward.32} parent=0 // pred_region
    _
  $region9: #{lora_sam_encoder_forward.32} parent=0 // pred_fallthru
    _
  // Predicated region
  $region10: #{lora_sam_encoder_forward.32} parent=0 // pred_check
    _
  $region11: #{lora_sam_encoder_forward.32} parent=0 // pred_check_branch
    %13 = sbr.rel (0) target = $region13
  $region12: #{lora_sam_encoder_forward.32} parent=0 // pred_region
    _
  $region13: #{lora_sam_encoder_forward.32} parent=0 // pred_fallthru
    _
  %v15 = vld [vmem:[%s0] sm:$0xf]
  %v16 = vld [vmem:[%s0 + $0x4] sm:$0xf]
  %v17 = vld [vmem:[%s0 + $0x8] sm:$0xf]
  %v18 = vld [vmem:[%s0 + $0xc] sm:$0xf]
  %v19 = vld [vmem:[%s1] sm:$0xf]
  %v20 = vld [vmem:[%s1 + $0x4] sm:$0xf]
  %v21 = vld [vmem:[%s1 + $0x8] sm:$0xf]
  %v22 = vld [vmem:[%s1 + $0xc] sm:$0xf]
  %v23 = vld [vmem:[%s2] sm:$0x1]
  %v25 = vperm.slane %v23, 0
  %v31 = vunpack.c.l.b16 %v15
  %v32 = vunpack.c.l.b16 %v16
  %v33 = vunpack.c.l.b16 %v17
  %v34 = vunpack.c.l.b16 %v18
  %v35 = vpack.c.b16 %v32, %v31
  %v36 = vpack.c.b16 %v34, %v33
  %v41 = vunpack.c.l.b16 %v19
  %v42 = vunpack.c.l.b16 %v20
  %v43 = vunpack.c.l.b16 %v21
  %v44 = vunpack.c.l.b16 %v22
  %v45 = vpack.c.b16 %v42, %v41
  %v46 = vpack.c.b16 %v44, %v43
  %vm49 = vcmask 261120
  %v51 = vsel %vm49, %v35, 0
  %v54 = vsel %vm49, %v36, 0
  %56 = vmatpush.bf16.msra.mxu0 0
  %57 = vmatpush.bf16.msra.mxu0 0
  %58 = vmatpush.bf16.msra.mxu0 0
  %59 = vmatpush.bf16.msra.mxu0 0
  %60 = vmatpush.bf16.msra.mxu0 0
  %61 = vmatpush.bf16.msra.mxu0 0
  %62 = vmatpush.bf16.msra.mxu0 %v46
  %63 = vmatpush.bf16.msra.mxu0 %v45
  %64 = vmatmul.bf16.gmra.mxu0 %v51
  %v65 = vpop.f32.mrf.mxu0
  %v66 = vadd.f32 %v25, %v65
  %v67 = vpop.f32.mrf.mxu0
  %v68 = vadd.f32 %v25, %v67
  %69 = vmatmul.bf16.gmra.mxu0 %v54
  %v70 = vpop.f32.mrf.mxu0
  %v71 = vadd.f32 %v25, %v70
  %v72 = vpop.f32.mrf.mxu0
  %v73 = vadd.f32 %v25, %v72
  %74 = vdwg.mxu0
  %v75 = vmul.f32 %v66, 0.5
  %v76 = vmul.f32 %v68, 0.5
  %v77 = vmul.f32 %v71, 0.5
  %v78 = vmul.f32 %v73, 0.5
  %v79 = vmul.f32 %v66, 0.70710677
  %v80 = vmul.f32 %v68, 0.70710677
  %v81 = vmul.f32 %v71, 0.70710677
  %v82 = vmul.f32 %v73, 0.70710677
  %v83 = vmul.f32 %v79, %v79
  %v84 = vmin.f32 16.0, %v83
  %v85 = vmul.f32 %v84, 2.1237322e-06
  %v86 = vadd.f32 %v85, 0.00028619796
  %v87 = vmul.f32 %v84, %v86
  %v88 = vadd.f32 %v87, 0.0036580483
  %v89 = vmul.f32 %v84, %v88
  %v90 = vadd.f32 %v89, 0.05243302
  %v91 = vmul.f32 %v84, %v90
  %v92 = vadd.f32 %v91, 0.18741608
  %v93 = vmul.f32 %v84, %v92
  %v94 = vadd.f32 %v93, 1.1283791
  %v95 = vmul.f32 %v79, %v94
  %v96 = vmul.f32 %v84, 3.8918573e-05
  %v97 = vadd.f32 %v96, 0.001143296
  %v98 = vmul.f32 %v84, %v97
  %v99 = vadd.f32 %v98, 0.014752088
  %v100 = vmul.f32 %v84, %v99
  %v101 = vadd.f32 %v100, 0.112945676
  %v102 = vmul.f32 %v84, %v101
  %v103 = vadd.f32 %v102, 0.4994258
  %v104 = vmul.f32 %v84, %v103
  %v105 = vadd.f32 %v104, 1.0
  %v106 = vrcp.pop %v105
  %v107 = vmul.f32 %v105, %v106
  %v108 = vsub.f32 1.0, %v107
  %v109 = vmul.f32 %v106, %v108
  %v110 = vadd.f32 %v106, %v109
  %vm111 = vweird.f32 %v105
  %vm112 = vweird.f32 %v106
  %vm113 = vmor %vm111, %vm112
  %v114 = vsel %vm113, %v106, %v110
  %v115 = vand.u32 2147483647, %v105
  %vm116 = vcmp.eq.f32.partialorder %v115, 8.507059e+37
  %v117 = vand.u32 %v105, 2147483648
  %v118 = vor.u32 1.1754944e-38, %v117
  %v119 = vsel %vm116, %v118, %v114
  %v120 = vmul.f32 %v95, %v119
  %v121 = vmin.f32 %v120, 1.0
  %v122 = vmax.f32 %v121, -1.0
  %v123 = vmul.f32 %v80, %v80
  %v124 = vmin.f32 16.0, %v123
  %v125 = vmul.f32 %v124, 2.1237322e-06
  %v126 = vadd.f32 %v125, 0.00028619796
  %v127 = vmul.f32 %v124, %v126
  %v128 = vadd.f32 %v127, 0.0036580483
  %v129 = vmul.f32 %v124, %v128
  %v130 = vadd.f32 %v129, 0.05243302
  %v131 = vmul.f32 %v124, %v130
  %v132 = vadd.f32 %v131, 0.18741608
  %v133 = vmul.f32 %v124, %v132
  %v134 = vadd.f32 %v133, 1.1283791
  %v135 = vmul.f32 %v80, %v134
  %v136 = vmul.f32 %v124, 3.8918573e-05
  %v137 = vadd.f32 %v136, 0.001143296
  %v138 = vmul.f32 %v124, %v137
  %v139 = vadd.f32 %v138, 0.014752088
  %v140 = vmul.f32 %v124, %v139
  %v141 = vadd.f32 %v140, 0.112945676
  %v142 = vmul.f32 %v124, %v141
  %v143 = vadd.f32 %v142, 0.4994258
  %v144 = vmul.f32 %v124, %v143
  %v145 = vadd.f32 %v144, 1.0
  %v146 = vrcp.pop %v145
  %v147 = vmul.f32 %v145, %v146
  %v148 = vsub.f32 1.0, %v147
  %v149 = vmul.f32 %v146, %v148
  %v150 = vadd.f32 %v146, %v149
  %vm151 = vweird.f32 %v145
  %vm152 = vweird.f32 %v146
  %vm153 = vmor %vm151, %vm152
  %v154 = vsel %vm153, %v146, %v150
  %v155 = vand.u32 2147483647, %v145
  %vm156 = vcmp.eq.f32.partialorder %v155, 8.507059e+37
  %v157 = vand.u32 %v145, 2147483648
  %v158 = vor.u32 1.1754944e-38, %v157
  %v159 = vsel %vm156, %v158, %v154
  %v160 = vmul.f32 %v135, %v159
  %v161 = vmin.f32 %v160, 1.0
  %v162 = vmax.f32 %v161, -1.0
  %v163 = vmul.f32 %v81, %v81
  %v164 = vmin.f32 16.0, %v163
  %v165 = vmul.f32 %v164, 2.1237322e-06
  %v166 = vadd.f32 %v165, 0.00028619796
  %v167 = vmul.f32 %v164, %v166
  %v168 = vadd.f32 %v167, 0.0036580483
  %v169 = vmul.f32 %v164, %v168
  %v170 = vadd.f32 %v169, 0.05243302
  %v171 = vmul.f32 %v164, %v170
  %v172 = vadd.f32 %v171, 0.18741608
  %v173 = vmul.f32 %v164, %v172
  %v174 = vadd.f32 %v173, 1.1283791
  %v175 = vmul.f32 %v81, %v174
  %v176 = vmul.f32 %v164, 3.8918573e-05
  %v177 = vadd.f32 %v176, 0.001143296
  %v178 = vmul.f32 %v164, %v177
  %v179 = vadd.f32 %v178, 0.014752088
  %v180 = vmul.f32 %v164, %v179
  %v181 = vadd.f32 %v180, 0.112945676
  %v182 = vmul.f32 %v164, %v181
  %v183 = vadd.f32 %v182, 0.4994258
  %v184 = vmul.f32 %v164, %v183
  %v185 = vadd.f32 %v184, 1.0
  %v186 = vrcp.pop %v185
  %v187 = vmul.f32 %v185, %v186
  %v188 = vsub.f32 1.0, %v187
  %v189 = vmul.f32 %v186, %v188
  %v190 = vadd.f32 %v186, %v189
  %vm191 = vweird.f32 %v185
  %vm192 = vweird.f32 %v186
  %vm193 = vmor %vm191, %vm192
  %v194 = vsel %vm193, %v186, %v190
  %v195 = vand.u32 2147483647, %v185
  %vm196 = vcmp.eq.f32.partialorder %v195, 8.507059e+37
  %v197 = vand.u32 %v185, 2147483648
  %v198 = vor.u32 1.1754944e-38, %v197
  %v199 = vsel %vm196, %v198, %v194
  %v200 = vmul.f32 %v175, %v199
  %v201 = vmin.f32 %v200, 1.0
  %v202 = vmax.f32 %v201, -1.0
  %v203 = vmul.f32 %v82, %v82
  %v204 = vmin.f32 16.0, %v203
  %v205 = vmul.f32 %v204, 2.1237322e-06
  %v206 = vadd.f32 %v205, 0.00028619796
  %v207 = vmul.f32 %v204, %v206
  %v208 = vadd.f32 %v207, 0.0036580483
  %v209 = vmul.f32 %v204, %v208
  %v210 = vadd.f32 %v209, 0.05243302
  %v211 = vmul.f32 %v204, %v210
  %v212 = vadd.f32 %v211, 0.18741608
  %v213 = vmul.f32 %v204, %v212
  %v214 = vadd.f32 %v213, 1.1283791
  %v215 = vmul.f32 %v82, %v214
  %v216 = vmul.f32 %v204, 3.8918573e-05
  %v217 = vadd.f32 %v216, 0.001143296
  %v218 = vmul.f32 %v204, %v217
  %v219 = vadd.f32 %v218, 0.014752088
  %v220 = vmul.f32 %v204, %v219
  %v221 = vadd.f32 %v220, 0.112945676
  %v222 = vmul.f32 %v204, %v221
  %v223 = vadd.f32 %v222, 0.4994258
  %v224 = vmul.f32 %v204, %v223
  %v225 = vadd.f32 %v224, 1.0
  %v226 = vrcp.pop %v225
  %v227 = vmul.f32 %v225, %v226
  %v228 = vsub.f32 1.0, %v227
  %v229 = vmul.f32 %v226, %v228
  %v230 = vadd.f32 %v226, %v229
  %vm231 = vweird.f32 %v225
  %vm232 = vweird.f32 %v226
  %vm233 = vmor %vm231, %vm232
  %v234 = vsel %vm233, %v226, %v230
  %v235 = vand.u32 2147483647, %v225
  %vm236 = vcmp.eq.f32.partialorder %v235, 8.507059e+37
  %v237 = vand.u32 %v225, 2147483648
  %v238 = vor.u32 1.1754944e-38, %v237
  %v239 = vsel %vm236, %v238, %v234
  %v240 = vmul.f32 %v215, %v239
  %v241 = vmin.f32 %v240, 1.0
  %v242 = vmax.f32 %v241, -1.0
  %v243 = vadd.f32 %v122, 1.0
  %v244 = vadd.f32 %v162, 1.0
  %v245 = vadd.f32 %v202, 1.0
  %v246 = vadd.f32 %v242, 1.0
  %v247 = vmul.f32 %v75, %v243
  %v248 = vmul.f32 %v76, %v244
  %v249 = vmul.f32 %v77, %v245
  %v250 = vmul.f32 %v78, %v246
  %v251 = vpack.c.bf16 %v247, %v247
  %v252 = vpack.c.bf16 %v248, %v248
  %v253 = vpack.c.bf16 %v249, %v249
  %v254 = vpack.c.bf16 %v250, %v250
  %255 = vst [vmem:[%s3] sm:$0xf] %v251
  %256 = vst [vmem:[%s3 + $0x4] sm:$0xf] %v252
  %257 = vst [vmem:[%s3 + $0x8] sm:$0xf] %v253
  %258 = vst [vmem:[%s3 + $0xc] sm:$0xf] %v254
  // Predicated region
  $region14: #{lora_sam_encoder_forward.32} parent=0 // pred_check
    _
  $region15: #{lora_sam_encoder_forward.32} parent=0 // pred_check_branch
    %260 = sbr.rel (0) target = $region17
  $region16: #{lora_sam_encoder_forward.32} parent=0 // pred_region
    _
  $region17: #{lora_sam_encoder_forward.32} parent=0 // pred_fallthru
    _
  // Predicated region
  $region18: #{lora_sam_encoder_forward.32} parent=0 // pred_check
    _
  $region19: #{lora_sam_encoder_forward.32} parent=0 // pred_check_branch
    %262 = sbr.rel (0) target = $region21
  $region20: #{lora_sam_encoder_forward.32} parent=0 // pred_region
    _
  $region21: #{lora_sam_encoder_forward.32} parent=0 // pred_fallthru
    _

// kernel: lora_sam_encoder_forward.30
$region0: #{lora_sam_encoder_forward.30}
  #allocation0 [shape = 'u32[]', space=smem, size = 0x4, offset = 0x4, fixed_abs, tag = 'smem constant byte address 0x4 - core index']
  #allocation1 [shape = 'u32[72,128]{1,0:T(1,128)}', space=vmem, size = 0x9000, scoped, tag = 'internal scratch']
  %s0 = inlined_call_operand.vmem [shape: bf16[32,32], index: 0, kind: input, shape index: {}]
  %s1 = inlined_call_operand.vmem [shape: bf16[32,32], index: 1, kind: input, shape index: {}]
  %s2 = inlined_call_operand.vmem [shape: f32[1,32], index: 2, kind: input, shape index: {}]
  %s3 = inlined_call_operand.vmem [shape: bf16[32,32], index: 3, kind: output, shape index: {}]
  %s4 = sld [smem:[#allocation0]]
  $region22: #{lora_sam_encoder_forward.30} parent=0
    _
  %s6 = ssub.s32 1, %s4
  %s7 = scalar_select 0, %s6, %s4
  // Predicated region
  $region2: #{lora_sam_encoder_forward.30} parent=0 // pred_check
    _
  $region3: #{lora_sam_encoder_forward.30} parent=0 // pred_check_branch
    %9 = sbr.rel (0) target = $region5
  $region4: #{lora_sam_encoder_forward.30} parent=0 // pred_region
    _
  $region5: #{lora_sam_encoder_forward.30} parent=0 // pred_fallthru
    _
  // Predicated region
  $region6: #{lora_sam_encoder_forward.30} parent=0 // pred_check
    _
  $region7: #{lora_sam_encoder_forward.30} parent=0 // pred_check_branch
    %11 = sbr.rel (0) target = $region9
  $region8: #{lora_sam_encoder_forward.30} parent=0 // pred_region
    _
  $region9: #{lora_sam_encoder_forward.30} parent=0 // pred_fallthru
    _
  // Predicated region
  $region10: #{lora_sam_encoder_forward.30} parent=0 // pred_check
    _
  $region11: #{lora_sam_encoder_forward.30} parent=0 // pred_check_branch
    %13 = sbr.rel (0) target = $region13
  $region12: #{lora_sam_encoder_forward.30} parent=0 // pred_region
    _
  $region13: #{lora_sam_encoder_forward.30} parent=0 // pred_fallthru
    _
  %v15 = vld [vmem:[%s0] sm:$0xf]
  %v16 = vld [vmem:[%s0 + $0x4] sm:$0xf]
  %v17 = vld [vmem:[%s0 + $0x8] sm:$0xf]
  %v18 = vld [vmem:[%s0 + $0xc] sm:$0xf]
  %v19 = vld [vmem:[%s1] sm:$0xf]
  %v20 = vld [vmem:[%s1 + $0x4] sm:$0xf]
  %v21 = vld [vmem:[%s1 + $0x8] sm:$0xf]
  %v22 = vld [vmem:[%s1 + $0xc] sm:$0xf]
  %v23 = vld [vmem:[%s2] sm:$0x1]
  %v25 = vperm.slane %v23, 0
  %v31 = vunpack.c.l.b16 %v15
  %v32 = vunpack.c.l.b16 %v16
  %v33 = vunpack.c.l.b16 %v17
  %v34 = vunpack.c.l.b16 %v18
  %v35 = vpack.c.b16 %v32, %v31
  %v36 = vpack.c.b16 %v34, %v33
  %v41 = vunpack.c.l.b16 %v19
  %v42 = vunpack.c.l.b16 %v20
  %v43 = vunpack.c.l.b16 %v21
  %v44 = vunpack.c.l.b16 %v22
  %v45 = vpack.c.b16 %v42, %v41
  %v46 = vpack.c.b16 %v44, %v43
  %vm49 = vcmask 261120
  %v51 = vsel %vm49, %v35, 0
  %v54 = vsel %vm49, %v36, 0
  %56 = vmatpush.bf16.msra.mxu0 0
  %57 = vmatpush.bf16.msra.mxu0 0
  %58 = vmatpush.bf16.msra.mxu0 0
  %59 = vmatpush.bf16.msra.mxu0 0
  %60 = vmatpush.bf16.msra.mxu0 0
  %61 = vmatpush.bf16.msra.mxu0 0
  %62 = vmatpush.bf16.msra.mxu0 %v46
  %63 = vmatpush.bf16.msra.mxu0 %v45
  %64 = vmatmul.bf16.gmra.mxu0 %v51
  %v65 = vpop.f32.mrf.mxu0
  %v66 = vadd.f32 %v25, %v65
  %v67 = vpop.f32.mrf.mxu0
  %v68 = vadd.f32 %v25, %v67
  %69 = vmatmul.bf16.gmra.mxu0 %v54
  %v70 = vpop.f32.mrf.mxu0
  %v71 = vadd.f32 %v25, %v70
  %v72 = vpop.f32.mrf.mxu0
  %v73 = vadd.f32 %v25, %v72
  %74 = vdwg.mxu0
  %v75 = vpack.c.bf16 %v66, %v66
  %v76 = vpack.c.bf16 %v68, %v68
  %v77 = vpack.c.bf16 %v71, %v71
  %v78 = vpack.c.bf16 %v73, %v73
  %vm79 = vcmask 257024
  %80 = vst.msk [vmem:[%s3] sm:$0xf] %vm79, %v75
  %81 = vst.msk [vmem:[%s3 + $0x4] sm:$0xf] %vm79, %v76
  %82 = vst.msk [vmem:[%s3 + $0x8] sm:$0xf] %vm79, %v77
  %83 = vst.msk [vmem:[%s3 + $0xc] sm:$0xf] %vm79, %v78
  // Predicated region
  $region14: #{lora_sam_encoder_forward.30} parent=0 // pred_check
    _
  $region15: #{lora_sam_encoder_forward.30} parent=0 // pred_check_branch
    %85 = sbr.rel (0) target = $region17
  $region16: #{lora_sam_encoder_forward.30} parent=0 // pred_region
    _
  $region17: #{lora_sam_encoder_forward.30} parent=0 // pred_fallthru
    _
  // Predicated region
  $region18: #{lora_sam_encoder_forward.30} parent=0 // pred_check
    _
  $region19: #{lora_sam_encoder_forward.30} parent=0 // pred_check_branch
    %87 = sbr.rel (0) target = $region21
  $region20: #{lora_sam_encoder_forward.30} parent=0 // pred_region
    _
  $region21: #{lora_sam_encoder_forward.30} parent=0 // pred_fallthru
    _

// kernel: lora_sam_encoder_forward.31
$region0: #{lora_sam_encoder_forward.31}
  #allocation0 [shape = 'u32[]', space=smem, size = 0x4, offset = 0x4, fixed_abs, tag = 'smem constant byte address 0x4 - core index']
  #allocation1 [shape = 'u32[72,128]{1,0:T(1,128)}', space=vmem, size = 0x9000, scoped, tag = 'internal scratch']
  %s0 = inlined_call_operand.vmem [shape: f32[32,32], index: 0, kind: input, shape index: {}]
  %s1 = inlined_call_operand.vmem [shape: bf16[32,32], index: 1, kind: input, shape index: {}]
  %s2 = inlined_call_operand.vmem [shape: f32[1,32], index: 2, kind: input, shape index: {}]
  %s3 = inlined_call_operand.vmem [shape: f32[1,32], index: 3, kind: input, shape index: {}]
  %s4 = inlined_call_operand.vmem [shape: f32[32,32], index: 4, kind: output, shape index: {0}]
  %s5 = inlined_call_operand.vmem [shape: bf16[32,32], index: 5, kind: output, shape index: {1}]
  %6 = xla_tuple %s4, %s5
  %s7 = sld [smem:[#allocation0]]
  $region34: #{lora_sam_encoder_forward.31} parent=0
    _
  %s9 = ssub.s32 1, %s7
  %s10 = scalar_select 0, %s9, %s7
  // Predicated region
  $region2: #{lora_sam_encoder_forward.31} parent=0 // pred_check
    _
  $region3: #{lora_sam_encoder_forward.31} parent=0 // pred_check_branch
    %12 = sbr.rel (0) target = $region5
  $region4: #{lora_sam_encoder_forward.31} parent=0 // pred_region
    _
  $region5: #{lora_sam_encoder_forward.31} parent=0 // pred_fallthru
    _
  // Predicated region
  $region6: #{lora_sam_encoder_forward.31} parent=0 // pred_check
    _
  $region7: #{lora_sam_encoder_forward.31} parent=0 // pred_check_branch
    %14 = sbr.rel (0) target = $region9
  $region8: #{lora_sam_encoder_forward.31} parent=0 // pred_region
    _
  $region9: #{lora_sam_encoder_forward.31} parent=0 // pred_fallthru
    _
  // Predicated region
  $region10: #{lora_sam_encoder_forward.31} parent=0 // pred_check
    _
  $region11: #{lora_sam_encoder_forward.31} parent=0 // pred_check_branch
    %16 = sbr.rel (0) target = $region13
  $region12: #{lora_sam_encoder_forward.31} parent=0 // pred_region
    _
  $region13: #{lora_sam_encoder_forward.31} parent=0 // pred_fallthru
    _
  // Predicated region
  $region14: #{lora_sam_encoder_forward.31} parent=0 // pred_check
    _
  $region15: #{lora_sam_encoder_forward.31} parent=0 // pred_check_branch
    %18 = sbr.rel (0) target = $region17
  $region16: #{lora_sam_encoder_forward.31} parent=0 // pred_region
    _
  $region17: #{lora_sam_encoder_forward.31} parent=0 // pred_fallthru
    _
  %v19 = vld [vmem:[%s0] sm:$0xff]
  %v20 = vld [vmem:[%s0 + $0x8] sm:$0xff]
  %v21 = vld [vmem:[%s0 + $0x10] sm:$0xff]
  %v22 = vld [vmem:[%s0 + $0x18] sm:$0xff]
  %v23 = vld [vmem:[%s1] sm:$0xf]
  %v24 = vld [vmem:[%s1 + $0x4] sm:$0xf]
  %v25 = vld [vmem:[%s1 + $0x8] sm:$0xf]
  %v26 = vld [vmem:[%s1 + $0xc] sm:$0xf]
  %v27 = vunpack.c.l.bf16 %v23
  %v28 = vunpack.c.l.bf16 %v24
  %v29 = vunpack.c.l.bf16 %v25
  %v30 = vunpack.c.l.bf16 %v26
  %v31 = vadd.f32 %v19, %v27
  %v32 = vadd.f32 %v20, %v28
  %v33 = vadd.f32 %v21, %v29
  %v34 = vadd.f32 %v22, %v30
  %vm35 = vcmask 261120
  %36 = vst.msk [vmem:[%s4] sm:$0xff] %vm35, %v31
  %37 = vst.msk [vmem:[%s4 + $0x8] sm:$0xff] %vm35, %v32
  %38 = vst.msk [vmem:[%s4 + $0x10] sm:$0xff] %vm35, %v33
  %39 = vst.msk [vmem:[%s4 + $0x18] sm:$0xff] %vm35, %v34
  %v40 = vsel %vm35, %v31, 0.0
  %41 = vadd.xlane.f32.xlu0 %v40
  %v42 = vpop.xlane.xlu0 %41
  %v43 = vsel %vm35, %v32, 0.0
  %44 = vadd.xlane.f32.xlu0 %v43
  %v45 = vpop.xlane.xlu0 %44
  %v46 = vsel %vm35, %v33, 0.0
  %47 = vadd.xlane.f32.xlu0 %v46
  %v48 = vpop.xlane.xlu0 %47
  %v49 = vsel %vm35, %v34, 0.0
  %50 = vadd.xlane.f32.xlu0 %v49
  %v51 = vpop.xlane.xlu0 %50
  %v52 = vrcp.pop 32.0
  %v53 = vmul.f32 32.0, %v52
  %v54 = vsub.f32 1.0, %v53
  %v55 = vmul.f32 %v52, %v54
  %v56 = vadd.f32 %v52, %v55
  %vm57 = vweird.f32 %v52
  %v58 = vsel %vm57, %v52, %v56
  %v59 = vmul.f32 %v42, %v58
  %v60 = vmul.f32 %v45, %v58
  %v61 = vmul.f32 %v48, %v58
  %v62 = vmul.f32 %v51, %v58
  %v63 = vsub.f32 %v31, %v59
  %v64 = vsub.f32 %v32, %v60
  %v65 = vsub.f32 %v33, %v61
  %v66 = vsub.f32 %v34, %v62
  %v67 = vmul.f32 %v63, %v63
  %v68 = vmul.f32 %v64, %v64
  %v69 = vmul.f32 %v65, %v65
  %v70 = vmul.f32 %v66, %v66
  %v71 = vsel %vm35, %v67, 0.0
  %72 = vadd.xlane.f32.xlu0 %v71
  %v73 = vpop.xlane.xlu0 %72
  %v74 = vsel %vm35, %v68, 0.0
  %75 = vadd.xlane.f32.xlu0 %v74
  %v76 = vpop.xlane.xlu0 %75
  %v77 = vsel %vm35, %v69, 0.0
  %78 = vadd.xlane.f32.xlu0 %v77
  %v79 = vpop.xlane.xlu0 %78
  %v80 = vsel %vm35, %v70, 0.0
  %81 = vadd.xlane.f32.xlu0 %v80
  %v82 = vpop.xlane.xlu0 %81
  %v83 = vmul.f32 %v73, %v58
  %v84 = vmul.f32 %v76, %v58
  %v85 = vmul.f32 %v79, %v58
  %v86 = vmul.f32 %v82, %v58
  %v87 = vadd.f32 %v83, 1e-06
  %v88 = vadd.f32 %v84, 1e-06
  %v89 = vadd.f32 %v85, 1e-06
  %v90 = vadd.f32 %v86, 1e-06
  %v91 = vrsqrt.pop %v87
  %v92 = vmul.f32 %v91, %v87
  %v93 = vmul.f32 %v92, %v91
  %v94 = vmul.f32 0.5, %v93
  %v95 = vsub.f32 1.5, %v94
  %v96 = vmul.f32 %v91, %v95
  %vm97 = vweird.f32 %v87
  %vm98 = vweird.f32 %v91
  %vm99 = vmor %vm97, %vm98
  %v100 = vsel %vm99, %v91, %v96
  %v101 = vrsqrt.pop %v88
  %v102 = vmul.f32 %v101, %v88
  %v103 = vmul.f32 %v102, %v101
  %v104 = vmul.f32 0.5, %v103
  %v105 = vsub.f32 1.5, %v104
  %v106 = vmul.f32 %v101, %v105
  %vm107 = vweird.f32 %v88
  %vm108 = vweird.f32 %v101
  %vm109 = vmor %vm107, %vm108
  %v110 = vsel %vm109, %v101, %v106
  %v111 = vrsqrt.pop %v89
  %v112 = vmul.f32 %v111, %v89
  %v113 = vmul.f32 %v112, %v111
  %v114 = vmul.f32 0.5, %v113
  %v115 = vsub.f32 1.5, %v114
  %v116 = vmul.f32 %v111, %v115
  %vm117 = vweird.f32 %v89
  %vm118 = vweird.f32 %v111
  %vm119 = vmor %vm117, %vm118
  %v120 = vsel %vm119, %v111, %v116
  %v121 = vrsqrt.pop %v90
  %v122 = vmul.f32 %v121, %v90
  %v123 = vmul.f32 %v122, %v121
  %v124 = vmul.f32 0.5, %v123
  %v125 = vsub.f32 1.5, %v124
  %v126 = vmul.f32 %v121, %v125
  %vm127 = vweird.f32 %v90
  %vm128 = vweird.f32 %v121
  %vm129 = vmor %vm127, %vm128
  %v130 = vsel %vm129, %v121, %v126
  %v131 = vmul.f32 %v63, %v100
  %v132 = vmul.f32 %v64, %v110
  %v133 = vmul.f32 %v65, %v120
  %v134 = vmul.f32 %v66, %v130
  %v135 = vld [vmem:[%s2] sm:$0x1]
  %v137 = vperm.slane %v135, 0
  %v139 = vmul.f32 %v131, %v137
  %v140 = vmul.f32 %v132, %v137
  %v141 = vmul.f32 %v133, %v137
  %v142 = vmul.f32 %v134, %v137
  %v143 = vld [vmem:[%s3] sm:$0x1]
  %v145 = vperm.slane %v143, 0
  %v147 = vadd.f32 %v139, %v145
  %v148 = vadd.f32 %v140, %v145
  %v149 = vadd.f32 %v141, %v145
  %v150 = vadd.f32 %v142, %v145
  %v151 = vpack.c.bf16 %v147, %v147
  %v152 = vpack.c.bf16 %v148, %v148
  %v153 = vpack.c.bf16 %v149, %v149
  %v154 = vpack.c.bf16 %v150, %v150
  %vm155 = vcmask 257024
  %156 = vst.msk [vmem:[%s5] sm:$0xf] %vm155, %v151
  %157 = vst.msk [vmem:[%s5 + $0x4] sm:$0xf] %vm155, %v152
  %158 = vst.msk [vmem:[%s5 + $0x8] sm:$0xf] %vm155, %v153
  %159 = vst.msk [vmem:[%s5 + $0xc] sm:$0xf] %vm155, %v154
  // Predicated region
  $region18: #{lora_sam_encoder_forward.31} parent=0 // pred_check
    _
  $region19: #{lora_sam_encoder_forward.31} parent=0 // pred_check_branch
    %161 = sbr.rel (0) target = $region21
  $region20: #{lora_sam_encoder_forward.31} parent=0 // pred_region
    _
  $region21: #{lora_sam_encoder_forward.31} parent=0 // pred_fallthru
    _
  // Predicated region
  $region22: #{lora_sam_encoder_forward.31} parent=0 // pred_check
    _
  $region23: #{lora_sam_encoder_forward.31} parent=0 // pred_check_branch
    %163 = sbr.rel (0) target = $region25
  $region24: #{lora_sam_encoder_forward.31} parent=0 // pred_region
    _
  $region25: #{lora_sam_encoder_forward.31} parent=0 // pred_fallthru
    _
  // Predicated region
  $region26: #{lora_sam_encoder_forward.31} parent=0 // pred_check
    _
  $region27: #{lora_sam_encoder_forward.31} parent=0 // pred_check_branch
    %165 = sbr.rel (0) target = $region29
  $region28: #{lora_sam_encoder_forward.31} parent=0 // pred_region
    _
  $region29: #{lora_sam_encoder_forward.31} parent=0 // pred_fallthru
    _
  // Predicated region
  $region30: #{lora_sam_encoder_forward.31} parent=0 // pred_check
    _
  $region31: #{lora_sam_encoder_forward.31} parent=0 // pred_check_branch
    %167 = sbr.rel (0) target = $region33
  $region32: #{lora_sam_encoder_forward.31} parent=0 // pred_region
    _
  $region33: #{lora_sam_encoder_forward.31} parent=0 // pred_fallthru
    _

// kernel: lora_sam_encoder_forward.33
$region0: #{lora_sam_encoder_forward.33}
  #allocation0 [shape = 'u32[]', space=smem, size = 0x4, offset = 0x4, fixed_abs, tag = 'smem constant byte address 0x4 - core index']
  #allocation1 [shape = 'u32[72,128]{1,0:T(1,128)}', space=vmem, size = 0x9000, scoped, tag = 'internal scratch']
  %s0 = inlined_call_operand.vmem [shape: bf16[32,128], index: 0, kind: input, shape index: {}]
  %s1 = inlined_call_operand.vmem [shape: bf16[128,32], index: 1, kind: input, shape index: {}]
  %s2 = inlined_call_operand.vmem [shape: f32[1,32], index: 2, kind: input, shape index: {}]
  %s3 = inlined_call_operand.vmem [shape: bf16[32,32], index: 3, kind: output, shape index: {}]
  %s4 = sld [smem:[#allocation0]]
  $region22: #{lora_sam_encoder_forward.33} parent=0
    _
  %s6 = ssub.s32 1, %s4
  %s7 = scalar_select 0, %s6, %s4
  // Predicated region
  $region2: #{lora_sam_encoder_forward.33} parent=0 // pred_check
    _
  $region3: #{lora_sam_encoder_forward.33} parent=0 // pred_check_branch
    %9 = sbr.rel (0) target = $region5
  $region4: #{lora_sam_encoder_forward.33} parent=0 // pred_region
    _
  $region5: #{lora_sam_encoder_forward.33} parent=0 // pred_fallthru
    _
  // Predicated region
  $region6: #{lora_sam_encoder_forward.33} parent=0 // pred_check
    _
  $region7: #{lora_sam_encoder_forward.33} parent=0 // pred_check_branch
    %11 = sbr.rel (0) target = $region9
  $region8: #{lora_sam_encoder_forward.33} parent=0 // pred_region
    _
  $region9: #{lora_sam_encoder_forward.33} parent=0 // pred_fallthru
    _
  // Predicated region
  $region10: #{lora_sam_encoder_forward.33} parent=0 // pred_check
    _
  $region11: #{lora_sam_encoder_forward.33} parent=0 // pred_check_branch
    %13 = sbr.rel (0) target = $region13
  $region12: #{lora_sam_encoder_forward.33} parent=0 // pred_region
    _
  $region13: #{lora_sam_encoder_forward.33} parent=0 // pred_fallthru
    _
  %v14 = vld [vmem:[%s0] sm:$0xf]
  %v15 = vld [vmem:[%s0 + $0x4] sm:$0xf]
  %v16 = vld [vmem:[%s0 + $0x8] sm:$0xf]
  %v17 = vld [vmem:[%s0 + $0xc] sm:$0xf]
  %v18 = vld [vmem:[%s1] sm:$0xf]
  %v19 = vld [vmem:[%s1 + $0x4] sm:$0xf]
  %v20 = vld [vmem:[%s1 + $0x8] sm:$0xf]
  %v21 = vld [vmem:[%s1 + $0xc] sm:$0xf]
  %v22 = vld [vmem:[%s1 + $0x10] sm:$0xf]
  %v23 = vld [vmem:[%s1 + $0x14] sm:$0xf]
  %v24 = vld [vmem:[%s1 + $0x18] sm:$0xf]
  %v25 = vld [vmem:[%s1 + $0x1c] sm:$0xf]
  %v26 = vld [vmem:[%s1 + $0x20] sm:$0xf]
  %v27 = vld [vmem:[%s1 + $0x24] sm:$0xf]
  %v28 = vld [vmem:[%s1 + $0x28] sm:$0xf]
  %v29 = vld [vmem:[%s1 + $0x2c] sm:$0xf]
  %v30 = vld [vmem:[%s1 + $0x30] sm:$0xf]
  %v31 = vld [vmem:[%s1 + $0x34] sm:$0xf]
  %v32 = vld [vmem:[%s1 + $0x38] sm:$0xf]
  %v33 = vld [vmem:[%s1 + $0x3c] sm:$0xf]
  %v34 = vld [vmem:[%s2] sm:$0x1]
  %v36 = vperm.slane %v34, 0
  %v42 = vunpack.c.l.b16 %v14
  %v43 = vunpack.c.l.b16 %v15
  %v44 = vunpack.c.l.b16 %v16
  %v45 = vunpack.c.l.b16 %v17
  %v46 = vpack.c.b16 %v43, %v42
  %v47 = vpack.c.b16 %v45, %v44
  %v66 = vunpack.c.l.b16 %v18
  %v67 = vunpack.c.l.b16 %v19
  %v68 = vunpack.c.l.b16 %v20
  %v69 = vunpack.c.l.b16 %v21
  %v70 = vunpack.c.l.b16 %v22
  %v71 = vunpack.c.l.b16 %v23
  %v72 = vunpack.c.l.b16 %v24
  %v73 = vunpack.c.l.b16 %v25
  %v74 = vunpack.c.l.b16 %v26
  %v75 = vunpack.c.l.b16 %v27
  %v76 = vunpack.c.l.b16 %v28
  %v77 = vunpack.c.l.b16 %v29
  %v78 = vunpack.c.l.b16 %v30
  %v79 = vunpack.c.l.b16 %v31
  %v80 = vunpack.c.l.b16 %v32
  %v81 = vunpack.c.l.b16 %v33
  %v82 = vpack.c.b16 %v67, %v66
  %v83 = vpack.c.b16 %v69, %v68
  %v84 = vpack.c.b16 %v71, %v70
  %v85 = vpack.c.b16 %v73, %v72
  %v86 = vpack.c.b16 %v75, %v74
  %v87 = vpack.c.b16 %v77, %v76
  %v88 = vpack.c.b16 %v79, %v78
  %v89 = vpack.c.b16 %v81, %v80
  %98 = vmatpush.bf16.msra.mxu0 %v89
  %99 = vmatpush.bf16.msra.mxu0 %v88
  %100 = vmatpush.bf16.msra.mxu0 %v87
  %101 = vmatpush.bf16.msra.mxu0 %v86
  %102 = vmatpush.bf16.msra.mxu0 %v85
  %103 = vmatpush.bf16.msra.mxu0 %v84
  %104 = vmatpush.bf16.msra.mxu0 %v83
  %105 = vmatpush.bf16.msra.mxu0 %v82
  %106 = vmatmul.bf16.gmra.mxu0 %v46
  %v107 = vpop.f32.mrf.mxu0
  %v108 = vadd.f32 %v36, %v107
  %v109 = vpop.f32.mrf.mxu0
  %v110 = vadd.f32 %v36, %v109
  %111 = vmatmul.bf16.gmra.mxu0 %v47
  %v112 = vpop.f32.mrf.mxu0
  %v113 = vadd.f32 %v36, %v112
  %v114 = vpop.f32.mrf.mxu0
  %v115 = vadd.f32 %v36, %v114
  %116 = vdwg.mxu0
  %v117 = vpack.c.bf16 %v108, %v108
  %v118 = vpack.c.bf16 %v110, %v110
  %v119 = vpack.c.bf16 %v113, %v113
  %v120 = vpack.c.bf16 %v115, %v115
  %vm121 = vcmask 257024
  %122 = vst.msk [vmem:[%s3] sm:$0xf] %vm121, %v117
  %123 = vst.msk [vmem:[%s3 + $0x4] sm:$0xf] %vm121, %v118
  %124 = vst.msk [vmem:[%s3 + $0x8] sm:$0xf] %vm121, %v119
  %125 = vst.msk [vmem:[%s3 + $0xc] sm:$0xf] %vm121, %v120
  // Predicated region
  $region14: #{lora_sam_encoder_forward.33} parent=0 // pred_check
    _
  $region15: #{lora_sam_encoder_forward.33} parent=0 // pred_check_branch
    %127 = sbr.rel (0) target = $region17
  $region16: #{lora_sam_encoder_forward.33} parent=0 // pred_region
    _
  $region17: #{lora_sam_encoder_forward.33} parent=0 // pred_fallthru
    _
  // Predicated region
  $region18: #{lora_sam_encoder_forward.33} parent=0 // pred_check
    _
  $region19: #{lora_sam_encoder_forward.33} parent=0 // pred_check_branch
    %129 = sbr.rel (0) target = $region21
  $region20: #{lora_sam_encoder_forward.33} parent=0 // pred_region
    _
  $region21: #{lora_sam_encoder_forward.33} parent=0 // pred_fallthru
    _

// kernel: lora_sam_encoder_forward.29
$region0: #{lora_sam_encoder_forward.29}
  #allocation0 [shape = 'u32[]', space=smem, size = 0x4, offset = 0x4, fixed_abs, tag = 'smem constant byte address 0x4 - core index']
  #allocation1 [shape = 'u32[72,128]{1,0:T(1,128)}', space=vmem, size = 0x9000, scoped, tag = 'internal scratch']
  %s0 = inlined_call_operand.vmem [shape: bf16[32,4,12], index: 0, kind: input, shape index: {}]
  %s1 = inlined_call_operand.vmem [shape: bf16[32,12,4], index: 1, kind: input, shape index: {}]
  %s2 = inlined_call_operand.vmem [shape: bf16[32,4,8], index: 2, kind: input, shape index: {}]
  %s3 = inlined_call_operand.vmem [shape: bf16[32,4,8], index: 3, kind: output, shape index: {}]
  %s4 = sld [smem:[#allocation0]]
  $region22: #{lora_sam_encoder_forward.29} parent=0
    _
  %s6 = ssub.s32 1, %s4
  %s7 = scalar_select 0, %s6, %s4
  // Predicated region
  $region2: #{lora_sam_encoder_forward.29} parent=0 // pred_check
    _
  $region3: #{lora_sam_encoder_forward.29} parent=0 // pred_check_branch
    %9 = sbr.rel (0) target = $region5
  $region4: #{lora_sam_encoder_forward.29} parent=0 // pred_region
    _
  $region5: #{lora_sam_encoder_forward.29} parent=0 // pred_fallthru
    _
  // Predicated region
  $region6: #{lora_sam_encoder_forward.29} parent=0 // pred_check
    _
  $region7: #{lora_sam_encoder_forward.29} parent=0 // pred_check_branch
    %11 = sbr.rel (0) target = $region9
  $region8: #{lora_sam_encoder_forward.29} parent=0 // pred_region
    _
  $region9: #{lora_sam_encoder_forward.29} parent=0 // pred_fallthru
    _
  // Predicated region
  $region10: #{lora_sam_encoder_forward.29} parent=0 // pred_check
    _
  $region11: #{lora_sam_encoder_forward.29} parent=0 // pred_check_branch
    %13 = sbr.rel (0) target = $region13
  $region12: #{lora_sam_encoder_forward.29} parent=0 // pred_region
    _
  $region13: #{lora_sam_encoder_forward.29} parent=0 // pred_fallthru
    _
  %v15 = vld [vmem:[%s0] sm:$0x3]
  %v16 = vld [vmem:[%s0 + $0x2] sm:$0x3]
  %v17 = vld [vmem:[%s0 + $0x4] sm:$0x3]
  %v18 = vld [vmem:[%s0 + $0x6] sm:$0x3]
  %v19 = vld [vmem:[%s0 + $0x8] sm:$0x3]
  %v20 = vld [vmem:[%s0 + $0xa] sm:$0x3]
  %v21 = vld [vmem:[%s0 + $0xc] sm:$0x3]
  %v22 = vld [vmem:[%s0 + $0xe] sm:$0x3]
  %v23 = vld [vmem:[%s0 + $0x10] sm:$0x3]
  %v24 = vld [vmem:[%s0 + $0x12] sm:$0x3]
  %v25 = vld [vmem:[%s0 + $0x14] sm:$0x3]
  %v26 = vld [vmem:[%s0 + $0x16] sm:$0x3]
  %v27 = vld [vmem:[%s0 + $0x18] sm:$0x3]
  %v28 = vld [vmem:[%s0 + $0x1a] sm:$0x3]
  %v29 = vld [vmem:[%s0 + $0x1c] sm:$0x3]
  %v30 = vld [vmem:[%s0 + $0x1e] sm:$0x3]
  %v31 = vld [vmem:[%s0 + $0x20] sm:$0x3]
  %v32 = vld [vmem:[%s0 + $0x22] sm:$0x3]
  %v33 = vld [vmem:[%s0 + $0x24] sm:$0x3]
  %v34 = vld [vmem:[%s0 + $0x26] sm:$0x3]
  %v35 = vld [vmem:[%s0 + $0x28] sm:$0x3]
  %v36 = vld [vmem:[%s0 + $0x2a] sm:$0x3]
  %v37 = vld [vmem:[%s0 + $0x2c] sm:$0x3]
  %v38 = vld [vmem:[%s0 + $0x2e] sm:$0x3]
  %v39 = vld [vmem:[%s0 + $0x30] sm:$0x3]
  %v40 = vld [vmem:[%s0 + $0x32] sm:$0x3]
  %v41 = vld [vmem:[%s0 + $0x34] sm:$0x3]
  %v42 = vld [vmem:[%s0 + $0x36] sm:$0x3]
  %v43 = vld [vmem:[%s0 + $0x38] sm:$0x3]
  %v44 = vld [vmem:[%s0 + $0x3a] sm:$0x3]
  %v45 = vld [vmem:[%s0 + $0x3c] sm:$0x3]
  %v46 = vld [vmem:[%s0 + $0x3e] sm:$0x3]
  %v47 = vld [vmem:[%s1] sm:$0xf]
  %v48 = vld [vmem:[%s1 + $0x4] sm:$0x3]
  %v49 = vld [vmem:[%s1 + $0x8] sm:$0xf]
  %v50 = vld [vmem:[%s1 + $0xc] sm:$0x3]
  %v51 = vld [vmem:[%s1 + $0x10] sm:$0xf]
  %v52 = vld [vmem:[%s1 + $0x14] sm:$0x3]
  %v53 = vld [vmem:[%s1 + $0x18] sm:$0xf]
  %v54 = vld [vmem:[%s1 + $0x1c] sm:$0x3]
  %v55 = vld [vmem:[%s1 + $0x20] sm:$0xf]
  %v56 = vld [vmem:[%s1 + $0x24] sm:$0x3]
  %v57 = vld [vmem:[%s1 + $0x28] sm:$0xf]
  %v58 = vld [vmem:[%s1 + $0x2c] sm:$0x3]
  %v59 = vld [vmem:[%s1 + $0x30] sm:$0xf]
  %v60 = vld [vmem:[%s1 + $0x34] sm:$0x3]
  %v61 = vld [vmem:[%s1 + $0x38] sm:$0xf]
  %v62 = vld [vmem:[%s1 + $0x3c] sm:$0x3]
  %v63 = vld [vmem:[%s1 + $0x40] sm:$0xf]
  %v64 = vld [vmem:[%s1 + $0x44] sm:$0x3]
  %v65 = vld [vmem:[%s1 + $0x48] sm:$0xf]
  %v66 = vld [vmem:[%s1 + $0x4c] sm:$0x3]
  %v67 = vld [vmem:[%s1 + $0x50] sm:$0xf]
  %v68 = vld [vmem:[%s1 + $0x54] sm:$0x3]
  %v69 = vld [vmem:[%s1 + $0x58] sm:$0xf]
  %v70 = vld [vmem:[%s1 + $0x5c] sm:$0x3]
  %v71 = vld [vmem:[%s1 + $0x60] sm:$0xf]
  %v72 = vld [vmem:[%s1 + $0x64] sm:$0x3]
  %v73 = vld [vmem:[%s1 + $0x68] sm:$0xf]
  %v74 = vld [vmem:[%s1 + $0x6c] sm:$0x3]
  %v75 = vld [vmem:[%s1 + $0x70] sm:$0xf]
  %v76 = vld [vmem:[%s1 + $0x74] sm:$0x3]
  %v77 = vld [vmem:[%s1 + $0x78] sm:$0xf]
  %v78 = vld [vmem:[%s1 + $0x7c] sm:$0x3]
  %v79 = vld [vmem:[%s1 + $0x80] sm:$0xf]
  %v80 = vld [vmem:[%s1 + $0x84] sm:$0x3]
  %v81 = vld [vmem:[%s1 + $0x88] sm:$0xf]
  %v82 = vld [vmem:[%s1 + $0x8c] sm:$0x3]
  %v83 = vld [vmem:[%s1 + $0x90] sm:$0xf]
  %v84 = vld [vmem:[%s1 + $0x94] sm:$0x3]
  %v85 = vld [vmem:[%s1 + $0x98] sm:$0xf]
  %v86 = vld [vmem:[%s1 + $0x9c] sm:$0x3]
  %v87 = vld [vmem:[%s1 + $0xa0] sm:$0xf]
  %v88 = vld [vmem:[%s1 + $0xa4] sm:$0x3]
  %v89 = vld [vmem:[%s1 + $0xa8] sm:$0xf]
  %v90 = vld [vmem:[%s1 + $0xac] sm:$0x3]
  %v91 = vld [vmem:[%s1 + $0xb0] sm:$0xf]
  %v92 = vld [vmem:[%s1 + $0xb4] sm:$0x3]
  %v93 = vld [vmem:[%s1 + $0xb8] sm:$0xf]
  %v94 = vld [vmem:[%s1 + $0xbc] sm:$0x3]
  %v95 = vld [vmem:[%s1 + $0xc0] sm:$0xf]
  %v96 = vld [vmem:[%s1 + $0xc4] sm:$0x3]
  %v97 = vld [vmem:[%s1 + $0xc8] sm:$0xf]
  %v98 = vld [vmem:[%s1 + $0xcc] sm:$0x3]
  %v99 = vld [vmem:[%s1 + $0xd0] sm:$0xf]
  %v100 = vld [vmem:[%s1 + $0xd4] sm:$0x3]
  %v101 = vld [vmem:[%s1 + $0xd8] sm:$0xf]
  %v102 = vld [vmem:[%s1 + $0xdc] sm:$0x3]
  %v103 = vld [vmem:[%s1 + $0xe0] sm:$0xf]
  %v104 = vld [vmem:[%s1 + $0xe4] sm:$0x3]
  %v105 = vld [vmem:[%s1 + $0xe8] sm:$0xf]
  %v106 = vld [vmem:[%s1 + $0xec] sm:$0x3]
  %v107 = vld [vmem:[%s1 + $0xf0] sm:$0xf]
  %v108 = vld [vmem:[%s1 + $0xf4] sm:$0x3]
  %v109 = vld [vmem:[%s1 + $0xf8] sm:$0xf]
  %v110 = vld [vmem:[%s1 + $0xfc] sm:$0x3]
  %v113 = vunpack.c.l.b16 %v47
  %v114 = vunpack.c.l.b16 %v48
  %v115 = vpack.c.b16 %v114, %v113
  %vm116 = vcmask 97280
  %v118 = vsel %vm116, %v15, 0
  %vm120 = vcmask 1045504
  %v122 = vsel %vm120, %v115, 0
  %124 = vmatpush.bf16.msra.mxu0 0
  %125 = vmatpush.bf16.msra.mxu0 0
  %126 = vmatpush.bf16.msra.mxu0 0
  %127 = vmatpush.bf16.msra.mxu0 0
  %128 = vmatpush.bf16.msra.mxu0 0
  %129 = vmatpush.bf16.msra.mxu0 0
  %130 = vmatpush.bf16.msra.mxu0 0
  %131 = vmatpush.bf16.msra.mxu0 %v122
  %132 = vmatmul.bf16.gmra.mxu0 %v118
  %v133 = vpop.f32.mrf.mxu0
  %v134 = vadd.f32 0.0, %v133
  %v135 = vpop.f32.mrf.mxu0
  %136 = vdwg.mxu0
  %v139 = vunpack.c.l.b16 %v49
  %v140 = vunpack.c.l.b16 %v50
  %v141 = vpack.c.b16 %v140, %v139
  %v143 = vsel %vm116, %v16, 0
  %v146 = vsel %vm120, %v141, 0
  %148 = vmatpush.bf16.msra.mxu0 0
  %149 = vmatpush.bf16.msra.mxu0 0
  %150 = vmatpush.bf16.msra.mxu0 0
  %151 = vmatpush.bf16.msra.mxu0 0
  %152 = vmatpush.bf16.msra.mxu0 0
  %153 = vmatpush.bf16.msra.mxu0 0
  %154 = vmatpush.bf16.msra.mxu0 0
  %155 = vmatpush.bf16.msra.mxu0 %v146
  %156 = vmatmul.bf16.gmra.mxu0 %v143
  %v157 = vpop.f32.mrf.mxu0
  %v158 = vadd.f32 0.0, %v157
  %v159 = vpop.f32.mrf.mxu0
  %160 = vdwg.mxu0
  %v163 = vunpack.c.l.b16 %v51
  %v164 = vunpack.c.l.b16 %v52
  %v165 = vpack.c.b16 %v164, %v163
  %v167 = vsel %vm116, %v17, 0
  %v170 = vsel %vm120, %v165, 0
  %172 = vmatpush.bf16.msra.mxu0 0
  %173 = vmatpush.bf16.msra.mxu0 0
  %174 = vmatpush.bf16.msra.mxu0 0
  %175 = vmatpush.bf16.msra.mxu0 0
  %176 = vmatpush.bf16.msra.mxu0 0
  %177 = vmatpush.bf16.msra.mxu0 0
  %178 = vmatpush.bf16.msra.mxu0 0
  %179 = vmatpush.bf16.msra.mxu0 %v170
  %180 = vmatmul.bf16.gmra.mxu0 %v167
  %v181 = vpop.f32.mrf.mxu0
  %v182 = vadd.f32 0.0, %v181
  %v183 = vpop.f32.mrf.mxu0
  %184 = vdwg.mxu0
  %v187 = vunpack.c.l.b16 %v53
  %v188 = vunpack.c.l.b16 %v54
  %v189 = vpack.c.b16 %v188, %v187
  %v191 = vsel %vm116, %v18, 0
  %v194 = vsel %vm120, %v189, 0
  %196 = vmatpush.bf16.msra.mxu0 0
  %197 = vmatpush.bf16.msra.mxu0 0
  %198 = vmatpush.bf16.msra.mxu0 0
  %199 = vmatpush.bf16.msra.mxu0 0
  %200 = vmatpush.bf16.msra.mxu0 0
  %201 = vmatpush.bf16.msra.mxu0 0
  %202 = vmatpush.bf16.msra.mxu0 0
  %203 = vmatpush.bf16.msra.mxu0 %v194
  %204 = vmatmul.bf16.gmra.mxu0 %v191
  %v205 = vpop.f32.mrf.mxu0
  %v206 = vadd.f32 0.0, %v205
  %v207 = vpop.f32.mrf.mxu0
  %208 = vdwg.mxu0
  %v211 = vunpack.c.l.b16 %v55
  %v212 = vunpack.c.l.b16 %v56
  %v213 = vpack.c.b16 %v212, %v211
  %v215 = vsel %vm116, %v19, 0
  %v218 = vsel %vm120, %v213, 0
  %220 = vmatpush.bf16.msra.mxu0 0
  %221 = vmatpush.bf16.msra.mxu0 0
  %222 = vmatpush.bf16.msra.mxu0 0
  %223 = vmatpush.bf16.msra.mxu0 0
  %224 = vmatpush.bf16.msra.mxu0 0
  %225 = vmatpush.bf16.msra.mxu0 0
  %226 = vmatpush.bf16.msra.mxu0 0
  %227 = vmatpush.bf16.msra.mxu0 %v218
  %228 = vmatmul.bf16.gmra.mxu0 %v215
  %v229 = vpop.f32.mrf.mxu0
  %v230 = vadd.f32 0.0, %v229
  %v231 = vpop.f32.mrf.mxu0
  %232 = vdwg.mxu0
  %v235 = vunpack.c.l.b16 %v57
  %v236 = vunpack.c.l.b16 %v58
  %v237 = vpack.c.b16 %v236, %v235
  %v239 = vsel %vm116, %v20, 0
  %v242 = vsel %vm120, %v237, 0
  %244 = vmatpush.bf16.msra.mxu0 0
  %245 = vmatpush.bf16.msra.mxu0 0
  %246 = vmatpush.bf16.msra.mxu0 0
  %247 = vmatpush.bf16.msra.mxu0 0
  %248 = vmatpush.bf16.msra.mxu0 0
  %249 = vmatpush.bf16.msra.mxu0 0
  %250 = vmatpush.bf16.msra.mxu0 0
  %251 = vmatpush.bf16.msra.mxu0 %v242
  %252 = vmatmul.bf16.gmra.mxu0 %v239
  %v253 = vpop.f32.mrf.mxu0
  %v254 = vadd.f32 0.0, %v253
  %v255 = vpop.f32.mrf.mxu0
  %256 = vdwg.mxu0
  %v259 = vunpack.c.l.b16 %v59
  %v260 = vunpack.c.l.b16 %v60
  %v261 = vpack.c.b16 %v260, %v259
  %v263 = vsel %vm116, %v21, 0
  %v266 = vsel %vm120, %v261, 0
  %268 = vmatpush.bf16.msra.mxu0 0
  %269 = vmatpush.bf16.msra.mxu0 0
  %270 = vmatpush.bf16.msra.mxu0 0
  %271 = vmatpush.bf16.msra.mxu0 0
  %272 = vmatpush.bf16.msra.mxu0 0
  %273 = vmatpush.bf16.msra.mxu0 0
  %274 = vmatpush.bf16.msra.mxu0 0
  %275 = vmatpush.bf16.msra.mxu0 %v266
  %276 = vmatmul.bf16.gmra.mxu0 %v263
  %v277 = vpop.f32.mrf.mxu0
  %v278 = vadd.f32 0.0, %v277
  %v279 = vpop.f32.mrf.mxu0
  %280 = vdwg.mxu0
  %v283 = vunpack.c.l.b16 %v61
  %v284 = vunpack.c.l.b16 %v62
  %v285 = vpack.c.b16 %v284, %v283
  %v287 = vsel %vm116, %v22, 0
  %v290 = vsel %vm120, %v285, 0
  %292 = vmatpush.bf16.msra.mxu0 0
  %293 = vmatpush.bf16.msra.mxu0 0
  %294 = vmatpush.bf16.msra.mxu0 0
  %295 = vmatpush.bf16.msra.mxu0 0
  %296 = vmatpush.bf16.msra.mxu0 0
  %297 = vmatpush.bf16.msra.mxu0 0
  %298 = vmatpush.bf16.msra.mxu0 0
  %299 = vmatpush.bf16.msra.mxu0 %v290
  %300 = vmatmul.bf16.gmra.mxu0 %v287
  %v301 = vpop.f32.mrf.mxu0
  %v302 = vadd.f32 0.0, %v301
  %v303 = vpop.f32.mrf.mxu0
  %304 = vdwg.mxu0
  %v307 = vunpack.c.l.b16 %v63
  %v308 = vunpack.c.l.b16 %v64
  %v309 = vpack.c.b16 %v308, %v307
  %v311 = vsel %vm116, %v23, 0
  %v314 = vsel %vm120, %v309, 0
  %316 = vmatpush.bf16.msra.mxu0 0
  %317 = vmatpush.bf16.msra.mxu0 0
  %318 = vmatpush.bf16.msra.mxu0 0
  %319 = vmatpush.bf16.msra.mxu0 0
  %320 = vmatpush.bf16.msra.mxu0 0
  %321 = vmatpush.bf16.msra.mxu0 0
  %322 = vmatpush.bf16.msra.mxu0 0
  %323 = vmatpush.bf16.msra.mxu0 %v314
  %324 = vmatmul.bf16.gmra.mxu0 %v311
  %v325 = vpop.f32.mrf.mxu0
  %v326 = vadd.f32 0.0, %v325
  %v327 = vpop.f32.mrf.mxu0
  %328 = vdwg.mxu0
  %v331 = vunpack.c.l.b16 %v65
  %v332 = vunpack.c.l.b16 %v66
  %v333 = vpack.c.b16 %v332, %v331
  %v335 = vsel %vm116, %v24, 0
  %v338 = vsel %vm120, %v333, 0
  %340 = vmatpush.bf16.msra.mxu0 0
  %341 = vmatpush.bf16.msra.mxu0 0
  %342 = vmatpush.bf16.msra.mxu0 0
  %343 = vmatpush.bf16.msra.mxu0 0
  %344 = vmatpush.bf16.msra.mxu0 0
  %345 = vmatpush.bf16.msra.mxu0 0
  %346 = vmatpush.bf16.msra.mxu0 0
  %347 = vmatpush.bf16.msra.mxu0 %v338
  %348 = vmatmul.bf16.gmra.mxu0 %v335
  %v349 = vpop.f32.mrf.mxu0
  %v350 = vadd.f32 0.0, %v349
  %v351 = vpop.f32.mrf.mxu0
  %352 = vdwg.mxu0
  %v355 = vunpack.c.l.b16 %v67
  %v356 = vunpack.c.l.b16 %v68
  %v357 = vpack.c.b16 %v356, %v355
  %v359 = vsel %vm116, %v25, 0
  %v362 = vsel %vm120, %v357, 0
  %364 = vmatpush.bf16.msra.mxu0 0
  %365 = vmatpush.bf16.msra.mxu0 0
  %366 = vmatpush.bf16.msra.mxu0 0
  %367 = vmatpush.bf16.msra.mxu0 0
  %368 = vmatpush.bf16.msra.mxu0 0
  %369 = vmatpush.bf16.msra.mxu0 0
  %370 = vmatpush.bf16.msra.mxu0 0
  %371 = vmatpush.bf16.msra.mxu0 %v362
  %372 = vmatmul.bf16.gmra.mxu0 %v359
  %v373 = vpop.f32.mrf.mxu0
  %v374 = vadd.f32 0.0, %v373
  %v375 = vpop.f32.mrf.mxu0
  %376 = vdwg.mxu0
  %v379 = vunpack.c.l.b16 %v69
  %v380 = vunpack.c.l.b16 %v70
  %v381 = vpack.c.b16 %v380, %v379
  %v383 = vsel %vm116, %v26, 0
  %v386 = vsel %vm120, %v381, 0
  %388 = vmatpush.bf16.msra.mxu0 0
  %389 = vmatpush.bf16.msra.mxu0 0
  %390 = vmatpush.bf16.msra.mxu0 0
  %391 = vmatpush.bf16.msra.mxu0 0
  %392 = vmatpush.bf16.msra.mxu0 0
  %393 = vmatpush.bf16.msra.mxu0 0
  %394 = vmatpush.bf16.msra.mxu0 0
  %395 = vmatpush.bf16.msra.mxu0 %v386
  %396 = vmatmul.bf16.gmra.mxu0 %v383
  %v397 = vpop.f32.mrf.mxu0
  %v398 = vadd.f32 0.0, %v397
  %v399 = vpop.f32.mrf.mxu0
  %400 = vdwg.mxu0
  %v403 = vunpack.c.l.b16 %v71
  %v404 = vunpack.c.l.b16 %v72
  %v405 = vpack.c.b16 %v404, %v403
  %v407 = vsel %vm116, %v27, 0
  %v410 = vsel %vm120, %v405, 0
  %412 = vmatpush.bf16.msra.mxu0 0
  %413 = vmatpush.bf16.msra.mxu0 0
  %414 = vmatpush.bf16.msra.mxu0 0
  %415 = vmatpush.bf16.msra.mxu0 0
  %416 = vmatpush.bf16.msra.mxu0 0
  %417 = vmatpush.bf16.msra.mxu0 0
  %418 = vmatpush.bf16.msra.mxu0 0
  %419 = vmatpush.bf16.msra.mxu0 %v410
  %420 = vmatmul.bf16.gmra.mxu0 %v407
  %v421 = vpop.f32.mrf.mxu0
  %v422 = vadd.f32 0.0, %v421
  %v423 = vpop.f32.mrf.mxu0
  %424 = vdwg.mxu0
  %v427 = vunpack.c.l.b16 %v73
  %v428 = vunpack.c.l.b16 %v74
  %v429 = vpack.c.b16 %v428, %v427
  %v431 = vsel %vm116, %v28, 0
  %v434 = vsel %vm120, %v429, 0
  %436 = vmatpush.bf16.msra.mxu0 0
  %437 = vmatpush.bf16.msra.mxu0 0
  %438 = vmatpush.bf16.msra.mxu0 0
  %439 = vmatpush.bf16.msra.mxu0 0
  %440 = vmatpush.bf16.msra.mxu0 0
  %441 = vmatpush.bf16.msra.mxu0 0
  %442 = vmatpush.bf16.msra.mxu0 0
  %443 = vmatpush.bf16.msra.mxu0 %v434
  %444 = vmatmul.bf16.gmra.mxu0 %v431
  %v445 = vpop.f32.mrf.mxu0
  %v446 = vadd.f32 0.0, %v445
  %v447 = vpop.f32.mrf.mxu0
  %448 = vdwg.mxu0
  %v451 = vunpack.c.l.b16 %v75
  %v452 = vunpack.c.l.b16 %v76
  %v453 = vpack.c.b16 %v452, %v451
  %v455 = vsel %vm116, %v29, 0
  %v458 = vsel %vm120, %v453, 0
  %460 = vmatpush.bf16.msra.mxu0 0
  %461 = vmatpush.bf16.msra.mxu0 0
  %462 = vmatpush.bf16.msra.mxu0 0
  %463 = vmatpush.bf16.msra.mxu0 0
  %464 = vmatpush.bf16.msra.mxu0 0
  %465 = vmatpush.bf16.msra.mxu0 0
  %466 = vmatpush.bf16.msra.mxu0 0
  %467 = vmatpush.bf16.msra.mxu0 %v458
  %468 = vmatmul.bf16.gmra.mxu0 %v455
  %v469 = vpop.f32.mrf.mxu0
  %v470 = vadd.f32 0.0, %v469
  %v471 = vpop.f32.mrf.mxu0
  %472 = vdwg.mxu0
  %v475 = vunpack.c.l.b16 %v77
  %v476 = vunpack.c.l.b16 %v78
  %v477 = vpack.c.b16 %v476, %v475
  %v479 = vsel %vm116, %v30, 0
  %v482 = vsel %vm120, %v477, 0
  %484 = vmatpush.bf16.msra.mxu0 0
  %485 = vmatpush.bf16.msra.mxu0 0
  %486 = vmatpush.bf16.msra.mxu0 0
  %487 = vmatpush.bf16.msra.mxu0 0
  %488 = vmatpush.bf16.msra.mxu0 0
  %489 = vmatpush.bf16.msra.mxu0 0
  %490 = vmatpush.bf16.msra.mxu0 0
  %491 = vmatpush.bf16.msra.mxu0 %v482
  %492 = vmatmul.bf16.gmra.mxu0 %v479
  %v493 = vpop.f32.mrf.mxu0
  %v494 = vadd.f32 0.0, %v493
  %v495 = vpop.f32.mrf.mxu0
  %496 = vdwg.mxu0
  %v499 = vunpack.c.l.b16 %v79
  %v500 = vunpack.c.l.b16 %v80
  %v501 = vpack.c.b16 %v500, %v499
  %v503 = vsel %vm116, %v31, 0
  %v506 = vsel %vm120, %v501, 0
  %508 = vmatpush.bf16.msra.mxu0 0
  %509 = vmatpush.bf16.msra.mxu0 0
  %510 = vmatpush.bf16.msra.mxu0 0
  %511 = vmatpush.bf16.msra.mxu0 0
  %512 = vmatpush.bf16.msra.mxu0 0
  %513 = vmatpush.bf16.msra.mxu0 0
  %514 = vmatpush.bf16.msra.mxu0 0
  %515 = vmatpush.bf16.msra.mxu0 %v506
  %516 = vmatmul.bf16.gmra.mxu0 %v503
  %v517 = vpop.f32.mrf.mxu0
  %v518 = vadd.f32 0.0, %v517
  %v519 = vpop.f32.mrf.mxu0
  %520 = vdwg.mxu0
  %v523 = vunpack.c.l.b16 %v81
  %v524 = vunpack.c.l.b16 %v82
  %v525 = vpack.c.b16 %v524, %v523
  %v527 = vsel %vm116, %v32, 0
  %v530 = vsel %vm120, %v525, 0
  %532 = vmatpush.bf16.msra.mxu0 0
  %533 = vmatpush.bf16.msra.mxu0 0
  %534 = vmatpush.bf16.msra.mxu0 0
  %535 = vmatpush.bf16.msra.mxu0 0
  %536 = vmatpush.bf16.msra.mxu0 0
  %537 = vmatpush.bf16.msra.mxu0 0
  %538 = vmatpush.bf16.msra.mxu0 0
  %539 = vmatpush.bf16.msra.mxu0 %v530
  %540 = vmatmul.bf16.gmra.mxu0 %v527
  %v541 = vpop.f32.mrf.mxu0
  %v542 = vadd.f32 0.0, %v541
  %v543 = vpop.f32.mrf.mxu0
  %544 = vdwg.mxu0
  %v547 = vunpack.c.l.b16 %v83
  %v548 = vunpack.c.l.b16 %v84
  %v549 = vpack.c.b16 %v548, %v547
  %v551 = vsel %vm116, %v33, 0
  %v554 = vsel %vm120, %v549, 0
  %556 = vmatpush.bf16.msra.mxu0 0
  %557 = vmatpush.bf16.msra.mxu0 0
  %558 = vmatpush.bf16.msra.mxu0 0
  %559 = vmatpush.bf16.msra.mxu0 0
  %560 = vmatpush.bf16.msra.mxu0 0
  %561 = vmatpush.bf16.msra.mxu0 0
  %562 = vmatpush.bf16.msra.mxu0 0
  %563 = vmatpush.bf16.msra.mxu0 %v554
  %564 = vmatmul.bf16.gmra.mxu0 %v551
  %v565 = vpop.f32.mrf.mxu0
  %v566 = vadd.f32 0.0, %v565
  %v567 = vpop.f32.mrf.mxu0
  %568 = vdwg.mxu0
  %v571 = vunpack.c.l.b16 %v85
  %v572 = vunpack.c.l.b16 %v86
  %v573 = vpack.c.b16 %v572, %v571
  %v575 = vsel %vm116, %v34, 0
  %v578 = vsel %vm120, %v573, 0
  %580 = vmatpush.bf16.msra.mxu0 0
  %581 = vmatpush.bf16.msra.mxu0 0
  %582 = vmatpush.bf16.msra.mxu0 0
  %583 = vmatpush.bf16.msra.mxu0 0
  %584 = vmatpush.bf16.msra.mxu0 0
  %585 = vmatpush.bf16.msra.mxu0 0
  %586 = vmatpush.bf16.msra.mxu0 0
  %587 = vmatpush.bf16.msra.mxu0 %v578
  %588 = vmatmul.bf16.gmra.mxu0 %v575
  %v589 = vpop.f32.mrf.mxu0
  %v590 = vadd.f32 0.0, %v589
  %v591 = vpop.f32.mrf.mxu0
  %592 = vdwg.mxu0
  %v595 = vunpack.c.l.b16 %v87
  %v596 = vunpack.c.l.b16 %v88
  %v597 = vpack.c.b16 %v596, %v595
  %v599 = vsel %vm116, %v35, 0
  %v602 = vsel %vm120, %v597, 0
  %604 = vmatpush.bf16.msra.mxu0 0
  %605 = vmatpush.bf16.msra.mxu0 0
  %606 = vmatpush.bf16.msra.mxu0 0
  %607 = vmatpush.bf16.msra.mxu0 0
  %608 = vmatpush.bf16.msra.mxu0 0
  %609 = vmatpush.bf16.msra.mxu0 0
  %610 = vmatpush.bf16.msra.mxu0 0
  %611 = vmatpush.bf16.msra.mxu0 %v602
  %612 = vmatmul.bf16.gmra.mxu0 %v599
  %v613 = vpop.f32.mrf.mxu0
  %v614 = vadd.f32 0.0, %v613
  %v615 = vpop.f32.mrf.mxu0
  %616 = vdwg.mxu0
  %v619 = vunpack.c.l.b16 %v89
  %v620 = vunpack.c.l.b16 %v90
  %v621 = vpack.c.b16 %v620, %v619
  %v623 = vsel %vm116, %v36, 0
  %v626 = vsel %vm120, %v621, 0
  %628 = vmatpush.bf16.msra.mxu0 0
  %629 = vmatpush.bf16.msra.mxu0 0
  %630 = vmatpush.bf16.msra.mxu0 0
  %631 = vmatpush.bf16.msra.mxu0 0
  %632 = vmatpush.bf16.msra.mxu0 0
  %633 = vmatpush.bf16.msra.mxu0 0
  %634 = vmatpush.bf16.msra.mxu0 0
  %635 = vmatpush.bf16.msra.mxu0 %v626
  %636 = vmatmul.bf16.gmra.mxu0 %v623
  %v637 = vpop.f32.mrf.mxu0
  %v638 = vadd.f32 0.0, %v637
  %v639 = vpop.f32.mrf.mxu0
  %640 = vdwg.mxu0
  %v643 = vunpack.c.l.b16 %v91
  %v644 = vunpack.c.l.b16 %v92
  %v645 = vpack.c.b16 %v644, %v643
  %v647 = vsel %vm116, %v37, 0
  %v650 = vsel %vm120, %v645, 0
  %652 = vmatpush.bf16.msra.mxu0 0
  %653 = vmatpush.bf16.msra.mxu0 0
  %654 = vmatpush.bf16.msra.mxu0 0
  %655 = vmatpush.bf16.msra.mxu0 0
  %656 = vmatpush.bf16.msra.mxu0 0
  %657 = vmatpush.bf16.msra.mxu0 0
  %658 = vmatpush.bf16.msra.mxu0 0
  %659 = vmatpush.bf16.msra.mxu0 %v650
  %660 = vmatmul.bf16.gmra.mxu0 %v647
  %v661 = vpop.f32.mrf.mxu0
  %v662 = vadd.f32 0.0, %v661
  %v663 = vpop.f32.mrf.mxu0
  %664 = vdwg.mxu0
  %v667 = vunpack.c.l.b16 %v93
  %v668 = vunpack.c.l.b16 %v94
  %v669 = vpack.c.b16 %v668, %v667
  %v671 = vsel %vm116, %v38, 0
  %v674 = vsel %vm120, %v669, 0
  %676 = vmatpush.bf16.msra.mxu0 0
  %677 = vmatpush.bf16.msra.mxu0 0
  %678 = vmatpush.bf16.msra.mxu0 0
  %679 = vmatpush.bf16.msra.mxu0 0
  %680 = vmatpush.bf16.msra.mxu0 0
  %681 = vmatpush.bf16.msra.mxu0 0
  %682 = vmatpush.bf16.msra.mxu0 0
  %683 = vmatpush.bf16.msra.mxu0 %v674
  %684 = vmatmul.bf16.gmra.mxu0 %v671
  %v685 = vpop.f32.mrf.mxu0
  %v686 = vadd.f32 0.0, %v685
  %v687 = vpop.f32.mrf.mxu0
  %688 = vdwg.mxu0
  %v691 = vunpack.c.l.b16 %v95
  %v692 = vunpack.c.l.b16 %v96
  %v693 = vpack.c.b16 %v692, %v691
  %v695 = vsel %vm116, %v39, 0
  %v698 = vsel %vm120, %v693, 0
  %700 = vmatpush.bf16.msra.mxu0 0
  %701 = vmatpush.bf16.msra.mxu0 0
  %702 = vmatpush.bf16.msra.mxu0 0
  %703 = vmatpush.bf16.msra.mxu0 0
  %704 = vmatpush.bf16.msra.mxu0 0
  %705 = vmatpush.bf16.msra.mxu0 0
  %706 = vmatpush.bf16.msra.mxu0 0
  %707 = vmatpush.bf16.msra.mxu0 %v698
  %708 = vmatmul.bf16.gmra.mxu0 %v695
  %v709 = vpop.f32.mrf.mxu0
  %v710 = vadd.f32 0.0, %v709
  %v711 = vpop.f32.mrf.mxu0
  %712 = vdwg.mxu0
  %v715 = vunpack.c.l.b16 %v97
  %v716 = vunpack.c.l.b16 %v98
  %v717 = vpack.c.b16 %v716, %v715
  %v719 = vsel %vm116, %v40, 0
  %v722 = vsel %vm120, %v717, 0
  %724 = vmatpush.bf16.msra.mxu0 0
  %725 = vmatpush.bf16.msra.mxu0 0
  %726 = vmatpush.bf16.msra.mxu0 0
  %727 = vmatpush.bf16.msra.mxu0 0
  %728 = vmatpush.bf16.msra.mxu0 0
  %729 = vmatpush.bf16.msra.mxu0 0
  %730 = vmatpush.bf16.msra.mxu0 0
  %731 = vmatpush.bf16.msra.mxu0 %v722
  %732 = vmatmul.bf16.gmra.mxu0 %v719
  %v733 = vpop.f32.mrf.mxu0
  %v734 = vadd.f32 0.0, %v733
  %v735 = vpop.f32.mrf.mxu0
  %736 = vdwg.mxu0
  %v739 = vunpack.c.l.b16 %v99
  %v740 = vunpack.c.l.b16 %v100
  %v741 = vpack.c.b16 %v740, %v739
  %v743 = vsel %vm116, %v41, 0
  %v746 = vsel %vm120, %v741, 0
  %748 = vmatpush.bf16.msra.mxu0 0
  %749 = vmatpush.bf16.msra.mxu0 0
  %750 = vmatpush.bf16.msra.mxu0 0
  %751 = vmatpush.bf16.msra.mxu0 0
  %752 = vmatpush.bf16.msra.mxu0 0
  %753 = vmatpush.bf16.msra.mxu0 0
  %754 = vmatpush.bf16.msra.mxu0 0
  %755 = vmatpush.bf16.msra.mxu0 %v746
  %756 = vmatmul.bf16.gmra.mxu0 %v743
  %v757 = vpop.f32.mrf.mxu0
  %v758 = vadd.f32 0.0, %v757
  %v759 = vpop.f32.mrf.mxu0
  %760 = vdwg.mxu0
  %v763 = vunpack.c.l.b16 %v101
  %v764 = vunpack.c.l.b16 %v102
  %v765 = vpack.c.b16 %v764, %v763
  %v767 = vsel %vm116, %v42, 0
  %v770 = vsel %vm120, %v765, 0
  %772 = vmatpush.bf16.msra.mxu0 0
  %773 = vmatpush.bf16.msra.mxu0 0
  %774 = vmatpush.bf16.msra.mxu0 0
  %775 = vmatpush.bf16.msra.mxu0 0
  %776 = vmatpush.bf16.msra.mxu0 0
  %777 = vmatpush.bf16.msra.mxu0 0
  %778 = vmatpush.bf16.msra.mxu0 0
  %779 = vmatpush.bf16.msra.mxu0 %v770
  %780 = vmatmul.bf16.gmra.mxu0 %v767
  %v781 = vpop.f32.mrf.mxu0
  %v782 = vadd.f32 0.0, %v781
  %v783 = vpop.f32.mrf.mxu0
  %784 = vdwg.mxu0
  %v787 = vunpack.c.l.b16 %v103
  %v788 = vunpack.c.l.b16 %v104
  %v789 = vpack.c.b16 %v788, %v787
  %v791 = vsel %vm116, %v43, 0
  %v794 = vsel %vm120, %v789, 0
  %796 = vmatpush.bf16.msra.mxu0 0
  %797 = vmatpush.bf16.msra.mxu0 0
  %798 = vmatpush.bf16.msra.mxu0 0
  %799 = vmatpush.bf16.msra.mxu0 0
  %800 = vmatpush.bf16.msra.mxu0 0
  %801 = vmatpush.bf16.msra.mxu0 0
  %802 = vmatpush.bf16.msra.mxu0 0
  %803 = vmatpush.bf16.msra.mxu0 %v794
  %804 = vmatmul.bf16.gmra.mxu0 %v791
  %v805 = vpop.f32.mrf.mxu0
  %v806 = vadd.f32 0.0, %v805
  %v807 = vpop.f32.mrf.mxu0
  %808 = vdwg.mxu0
  %v811 = vunpack.c.l.b16 %v105
  %v812 = vunpack.c.l.b16 %v106
  %v813 = vpack.c.b16 %v812, %v811
  %v815 = vsel %vm116, %v44, 0
  %v818 = vsel %vm120, %v813, 0
  %820 = vmatpush.bf16.msra.mxu0 0
  %821 = vmatpush.bf16.msra.mxu0 0
  %822 = vmatpush.bf16.msra.mxu0 0
  %823 = vmatpush.bf16.msra.mxu0 0
  %824 = vmatpush.bf16.msra.mxu0 0
  %825 = vmatpush.bf16.msra.mxu0 0
  %826 = vmatpush.bf16.msra.mxu0 0
  %827 = vmatpush.bf16.msra.mxu0 %v818
  %828 = vmatmul.bf16.gmra.mxu0 %v815
  %v829 = vpop.f32.mrf.mxu0
  %v830 = vadd.f32 0.0, %v829
  %v831 = vpop.f32.mrf.mxu0
  %832 = vdwg.mxu0
  %v835 = vunpack.c.l.b16 %v107
  %v836 = vunpack.c.l.b16 %v108
  %v837 = vpack.c.b16 %v836, %v835
  %v839 = vsel %vm116, %v45, 0
  %v842 = vsel %vm120, %v837, 0
  %844 = vmatpush.bf16.msra.mxu0 0
  %845 = vmatpush.bf16.msra.mxu0 0
  %846 = vmatpush.bf16.msra.mxu0 0
  %847 = vmatpush.bf16.msra.mxu0 0
  %848 = vmatpush.bf16.msra.mxu0 0
  %849 = vmatpush.bf16.msra.mxu0 0
  %850 = vmatpush.bf16.msra.mxu0 0
  %851 = vmatpush.bf16.msra.mxu0 %v842
  %852 = vmatmul.bf16.gmra.mxu0 %v839
  %v853 = vpop.f32.mrf.mxu0
  %v854 = vadd.f32 0.0, %v853
  %v855 = vpop.f32.mrf.mxu0
  %856 = vdwg.mxu0
  %v859 = vunpack.c.l.b16 %v109
  %v860 = vunpack.c.l.b16 %v110
  %v861 = vpack.c.b16 %v860, %v859
  %v863 = vsel %vm116, %v46, 0
  %v866 = vsel %vm120, %v861, 0
  %868 = vmatpush.bf16.msra.mxu0 0
  %869 = vmatpush.bf16.msra.mxu0 0
  %870 = vmatpush.bf16.msra.mxu0 0
  %871 = vmatpush.bf16.msra.mxu0 0
  %872 = vmatpush.bf16.msra.mxu0 0
  %873 = vmatpush.bf16.msra.mxu0 0
  %874 = vmatpush.bf16.msra.mxu0 0
  %875 = vmatpush.bf16.msra.mxu0 %v866
  %876 = vmatmul.bf16.gmra.mxu0 %v863
  %v877 = vpop.f32.mrf.mxu0
  %v878 = vadd.f32 0.0, %v877
  %v879 = vpop.f32.mrf.mxu0
  %880 = vdwg.mxu0
  %vm881 = vcmask 27648
  %v882 = vsel %vm881, %v134, -inf
  %883 = vmax.xlane.f32.xlu0 %v882
  %v884 = vpop.xlane.xlu0 %883
  %v885 = vsel %vm881, %v158, -inf
  %886 = vmax.xlane.f32.xlu0 %v885
  %v887 = vpop.xlane.xlu0 %886
  %v888 = vsel %vm881, %v182, -inf
  %889 = vmax.xlane.f32.xlu0 %v888
  %v890 = vpop.xlane.xlu0 %889
  %v891 = vsel %vm881, %v206, -inf
  %892 = vmax.xlane.f32.xlu0 %v891
  %v893 = vpop.xlane.xlu0 %892
  %v894 = vsel %vm881, %v230, -inf
  %895 = vmax.xlane.f32.xlu0 %v894
  %v896 = vpop.xlane.xlu0 %895
  %v897 = vsel %vm881, %v254, -inf
  %898 = vmax.xlane.f32.xlu0 %v897
  %v899 = vpop.xlane.xlu0 %898
  %v900 = vsel %vm881, %v278, -inf
  %901 = vmax.xlane.f32.xlu0 %v900
  %v902 = vpop.xlane.xlu0 %901
  %v903 = vsel %vm881, %v302, -inf
  %904 = vmax.xlane.f32.xlu0 %v903
  %v905 = vpop.xlane.xlu0 %904
  %v906 = vsel %vm881, %v326, -inf
  %907 = vmax.xlane.f32.xlu0 %v906
  %v908 = vpop.xlane.xlu0 %907
  %v909 = vsel %vm881, %v350, -inf
  %910 = vmax.xlane.f32.xlu0 %v909
  %v911 = vpop.xlane.xlu0 %910
  %v912 = vsel %vm881, %v374, -inf
  %913 = vmax.xlane.f32.xlu0 %v912
  %v914 = vpop.xlane.xlu0 %913
  %v915 = vsel %vm881, %v398, -inf
  %916 = vmax.xlane.f32.xlu0 %v915
  %v917 = vpop.xlane.xlu0 %916
  %v918 = vsel %vm881, %v422, -inf
  %919 = vmax.xlane.f32.xlu0 %v918
  %v920 = vpop.xlane.xlu0 %919
  %v921 = vsel %vm881, %v446, -inf
  %922 = vmax.xlane.f32.xlu0 %v921
  %v923 = vpop.xlane.xlu0 %922
  %v924 = vsel %vm881, %v470, -inf
  %925 = vmax.xlane.f32.xlu0 %v924
  %v926 = vpop.xlane.xlu0 %925
  %v927 = vsel %vm881, %v494, -inf
  %928 = vmax.xlane.f32.xlu0 %v927
  %v929 = vpop.xlane.xlu0 %928
  %v930 = vsel %vm881, %v518, -inf
  %931 = vmax.xlane.f32.xlu0 %v930
  %v932 = vpop.xlane.xlu0 %931
  %v933 = vsel %vm881, %v542, -inf
  %934 = vmax.xlane.f32.xlu0 %v933
  %v935 = vpop.xlane.xlu0 %934
  %v936 = vsel %vm881, %v566, -inf
  %937 = vmax.xlane.f32.xlu0 %v936
  %v938 = vpop.xlane.xlu0 %937
  %v939 = vsel %vm881, %v590, -inf
  %940 = vmax.xlane.f32.xlu0 %v939
  %v941 = vpop.xlane.xlu0 %940
  %v942 = vsel %vm881, %v614, -inf
  %943 = vmax.xlane.f32.xlu0 %v942
  %v944 = vpop.xlane.xlu0 %943
  %v945 = vsel %vm881, %v638, -inf
  %946 = vmax.xlane.f32.xlu0 %v945
  %v947 = vpop.xlane.xlu0 %946
  %v948 = vsel %vm881, %v662, -inf
  %949 = vmax.xlane.f32.xlu0 %v948
  %v950 = vpop.xlane.xlu0 %949
  %v951 = vsel %vm881, %v686, -inf
  %952 = vmax.xlane.f32.xlu0 %v951
  %v953 = vpop.xlane.xlu0 %952
  %v954 = vsel %vm881, %v710, -inf
  %955 = vmax.xlane.f32.xlu0 %v954
  %v956 = vpop.xlane.xlu0 %955
  %v957 = vsel %vm881, %v734, -inf
  %958 = vmax.xlane.f32.xlu0 %v957
  %v959 = vpop.xlane.xlu0 %958
  %v960 = vsel %vm881, %v758, -inf
  %961 = vmax.xlane.f32.xlu0 %v960
  %v962 = vpop.xlane.xlu0 %961
  %v963 = vsel %vm881, %v782, -inf
  %964 = vmax.xlane.f32.xlu0 %v963
  %v965 = vpop.xlane.xlu0 %964
  %v966 = vsel %vm881, %v806, -inf
  %967 = vmax.xlane.f32.xlu0 %v966
  %v968 = vpop.xlane.xlu0 %967
  %v969 = vsel %vm881, %v830, -inf
  %970 = vmax.xlane.f32.xlu0 %v969
  %v971 = vpop.xlane.xlu0 %970
  %v972 = vsel %vm881, %v854, -inf
  %973 = vmax.xlane.f32.xlu0 %v972
  %v974 = vpop.xlane.xlu0 %973
  %v975 = vsel %vm881, %v878, -inf
  %976 = vmax.xlane.f32.xlu0 %v975
  %v977 = vpop.xlane.xlu0 %976
  %v978 = vsub.f32 %v134, %v884
  %v979 = vsub.f32 %v158, %v887
  %v980 = vsub.f32 %v182, %v890
  %v981 = vsub.f32 %v206, %v893
  %v982 = vsub.f32 %v230, %v896
  %v983 = vsub.f32 %v254, %v899
  %v984 = vsub.f32 %v278, %v902
  %v985 = vsub.f32 %v302, %v905
  %v986 = vsub.f32 %v326, %v908
  %v987 = vsub.f32 %v350, %v911
  %v988 = vsub.f32 %v374, %v914
  %v989 = vsub.f32 %v398, %v917
  %v990 = vsub.f32 %v422, %v920
  %v991 = vsub.f32 %v446, %v923
  %v992 = vsub.f32 %v470, %v926
  %v993 = vsub.f32 %v494, %v929
  %v994 = vsub.f32 %v518, %v932
  %v995 = vsub.f32 %v542, %v935
  %v996 = vsub.f32 %v566, %v938
  %v997 = vsub.f32 %v590, %v941
  %v998 = vsub.f32 %v614, %v944
  %v999 = vsub.f32 %v638, %v947
  %v1000 = vsub.f32 %v662, %v950
  %v1001 = vsub.f32 %v686, %v953
  %v1002 = vsub.f32 %v710, %v956
  %v1003 = vsub.f32 %v734, %v959
  %v1004 = vsub.f32 %v758, %v962
  %v1005 = vsub.f32 %v782, %v965
  %v1006 = vsub.f32 %v806, %v968
  %v1007 = vsub.f32 %v830, %v971
  %v1008 = vsub.f32 %v854, %v974
  %v1009 = vsub.f32 %v878, %v977
  %v1010 = vmul.f32 %v978, 1.442695
  %v1011 = vpow.pop %v1010
  %v1012 = vmul.f32 %v979, 1.442695
  %v1013 = vpow.pop %v1012
  %v1014 = vmul.f32 %v980, 1.442695
  %v1015 = vpow.pop %v1014
  %v1016 = vmul.f32 %v981, 1.442695
  %v1017 = vpow.pop %v1016
  %v1018 = vmul.f32 %v982, 1.442695
  %v1019 = vpow.pop %v1018
  %v1020 = vmul.f32 %v983, 1.442695
  %v1021 = vpow.pop %v1020
  %v1022 = vmul.f32 %v984, 1.442695
  %v1023 = vpow.pop %v1022
  %v1024 = vmul.f32 %v985, 1.442695
  %v1025 = vpow.pop %v1024
  %v1026 = vmul.f32 %v986, 1.442695
  %v1027 = vpow.pop %v1026
  %v1028 = vmul.f32 %v987, 1.442695
  %v1029 = vpow.pop %v1028
  %v1030 = vmul.f32 %v988, 1.442695
  %v1031 = vpow.pop %v1030
  %v1032 = vmul.f32 %v989, 1.442695
  %v1033 = vpow.pop %v1032
  %v1034 = vmul.f32 %v990, 1.442695
  %v1035 = vpow.pop %v1034
  %v1036 = vmul.f32 %v991, 1.442695
  %v1037 = vpow.pop %v1036
  %v1038 = vmul.f32 %v992, 1.442695
  %v1039 = vpow.pop %v1038
  %v1040 = vmul.f32 %v993, 1.442695
  %v1041 = vpow.pop %v1040
  %v1042 = vmul.f32 %v994, 1.442695
  %v1043 = vpow.pop %v1042
  %v1044 = vmul.f32 %v995, 1.442695
  %v1045 = vpow.pop %v1044
  %v1046 = vmul.f32 %v996, 1.442695
  %v1047 = vpow.pop %v1046
  %v1048 = vmul.f32 %v997, 1.442695
  %v1049 = vpow.pop %v1048
  %v1050 = vmul.f32 %v998, 1.442695
  %v1051 = vpow.pop %v1050
  %v1052 = vmul.f32 %v999, 1.442695
  %v1053 = vpow.pop %v1052
  %v1054 = vmul.f32 %v1000, 1.442695
  %v1055 = vpow.pop %v1054
  %v1056 = vmul.f32 %v1001, 1.442695
  %v1057 = vpow.pop %v1056
  %v1058 = vmul.f32 %v1002, 1.442695
  %v1059 = vpow.pop %v1058
  %v1060 = vmul.f32 %v1003, 1.442695
  %v1061 = vpow.pop %v1060
  %v1062 = vmul.f32 %v1004, 1.442695
  %v1063 = vpow.pop %v1062
  %v1064 = vmul.f32 %v1005, 1.442695
  %v1065 = vpow.pop %v1064
  %v1066 = vmul.f32 %v1006, 1.442695
  %v1067 = vpow.pop %v1066
  %v1068 = vmul.f32 %v1007, 1.442695
  %v1069 = vpow.pop %v1068
  %v1070 = vmul.f32 %v1008, 1.442695
  %v1071 = vpow.pop %v1070
  %v1072 = vmul.f32 %v1009, 1.442695
  %v1073 = vpow.pop %v1072
  %v1074 = vsel %vm881, %v1011, 0.0
  %1075 = vadd.xlane.f32.xlu0 %v1074
  %v1076 = vpop.xlane.xlu0 %1075
  %v1077 = vsel %vm881, %v1013, 0.0
  %1078 = vadd.xlane.f32.xlu0 %v1077
  %v1079 = vpop.xlane.xlu0 %1078
  %v1080 = vsel %vm881, %v1015, 0.0
  %1081 = vadd.xlane.f32.xlu0 %v1080
  %v1082 = vpop.xlane.xlu0 %1081
  %v1083 = vsel %vm881, %v1017, 0.0
  %1084 = vadd.xlane.f32.xlu0 %v1083
  %v1085 = vpop.xlane.xlu0 %1084
  %v1086 = vsel %vm881, %v1019, 0.0
  %1087 = vadd.xlane.f32.xlu0 %v1086
  %v1088 = vpop.xlane.xlu0 %1087
  %v1089 = vsel %vm881, %v1021, 0.0
  %1090 = vadd.xlane.f32.xlu0 %v1089
  %v1091 = vpop.xlane.xlu0 %1090
  %v1092 = vsel %vm881, %v1023, 0.0
  %1093 = vadd.xlane.f32.xlu0 %v1092
  %v1094 = vpop.xlane.xlu0 %1093
  %v1095 = vsel %vm881, %v1025, 0.0
  %1096 = vadd.xlane.f32.xlu0 %v1095
  %v1097 = vpop.xlane.xlu0 %1096
  %v1098 = vsel %vm881, %v1027, 0.0
  %1099 = vadd.xlane.f32.xlu0 %v1098
  %v1100 = vpop.xlane.xlu0 %1099
  %v1101 = vsel %vm881, %v1029, 0.0
  %1102 = vadd.xlane.f32.xlu0 %v1101
  %v1103 = vpop.xlane.xlu0 %1102
  %v1104 = vsel %vm881, %v1031, 0.0
  %1105 = vadd.xlane.f32.xlu0 %v1104
  %v1106 = vpop.xlane.xlu0 %1105
  %v1107 = vsel %vm881, %v1033, 0.0
  %1108 = vadd.xlane.f32.xlu0 %v1107
  %v1109 = vpop.xlane.xlu0 %1108
  %v1110 = vsel %vm881, %v1035, 0.0
  %1111 = vadd.xlane.f32.xlu0 %v1110
  %v1112 = vpop.xlane.xlu0 %1111
  %v1113 = vsel %vm881, %v1037, 0.0
  %1114 = vadd.xlane.f32.xlu0 %v1113
  %v1115 = vpop.xlane.xlu0 %1114
  %v1116 = vsel %vm881, %v1039, 0.0
  %1117 = vadd.xlane.f32.xlu0 %v1116
  %v1118 = vpop.xlane.xlu0 %1117
  %v1119 = vsel %vm881, %v1041, 0.0
  %1120 = vadd.xlane.f32.xlu0 %v1119
  %v1121 = vpop.xlane.xlu0 %1120
  %v1122 = vsel %vm881, %v1043, 0.0
  %1123 = vadd.xlane.f32.xlu0 %v1122
  %v1124 = vpop.xlane.xlu0 %1123
  %v1125 = vsel %vm881, %v1045, 0.0
  %1126 = vadd.xlane.f32.xlu0 %v1125
  %v1127 = vpop.xlane.xlu0 %1126
  %v1128 = vsel %vm881, %v1047, 0.0
  %1129 = vadd.xlane.f32.xlu0 %v1128
  %v1130 = vpop.xlane.xlu0 %1129
  %v1131 = vsel %vm881, %v1049, 0.0
  %1132 = vadd.xlane.f32.xlu0 %v1131
  %v1133 = vpop.xlane.xlu0 %1132
  %v1134 = vsel %vm881, %v1051, 0.0
  %1135 = vadd.xlane.f32.xlu0 %v1134
  %v1136 = vpop.xlane.xlu0 %1135
  %v1137 = vsel %vm881, %v1053, 0.0
  %1138 = vadd.xlane.f32.xlu0 %v1137
  %v1139 = vpop.xlane.xlu0 %1138
  %v1140 = vsel %vm881, %v1055, 0.0
  %1141 = vadd.xlane.f32.xlu0 %v1140
  %v1142 = vpop.xlane.xlu0 %1141
  %v1143 = vsel %vm881, %v1057, 0.0
  %1144 = vadd.xlane.f32.xlu0 %v1143
  %v1145 = vpop.xlane.xlu0 %1144
  %v1146 = vsel %vm881, %v1059, 0.0
  %1147 = vadd.xlane.f32.xlu0 %v1146
  %v1148 = vpop.xlane.xlu0 %1147
  %v1149 = vsel %vm881, %v1061, 0.0
  %1150 = vadd.xlane.f32.xlu0 %v1149
  %v1151 = vpop.xlane.xlu0 %1150
  %v1152 = vsel %vm881, %v1063, 0.0
  %1153 = vadd.xlane.f32.xlu0 %v1152
  %v1154 = vpop.xlane.xlu0 %1153
  %v1155 = vsel %vm881, %v1065, 0.0
  %1156 = vadd.xlane.f32.xlu0 %v1155
  %v1157 = vpop.xlane.xlu0 %1156
  %v1158 = vsel %vm881, %v1067, 0.0
  %1159 = vadd.xlane.f32.xlu0 %v1158
  %v1160 = vpop.xlane.xlu0 %1159
  %v1161 = vsel %vm881, %v1069, 0.0
  %1162 = vadd.xlane.f32.xlu0 %v1161
  %v1163 = vpop.xlane.xlu0 %1162
  %v1164 = vsel %vm881, %v1071, 0.0
  %1165 = vadd.xlane.f32.xlu0 %v1164
  %v1166 = vpop.xlane.xlu0 %1165
  %v1167 = vsel %vm881, %v1073, 0.0
  %1168 = vadd.xlane.f32.xlu0 %v1167
  %v1169 = vpop.xlane.xlu0 %1168
  %v1170 = vrcp.pop %v1076
  %v1171 = vrcp.pop %v1079
  %v1172 = vrcp.pop %v1082
  %v1173 = vrcp.pop %v1085
  %v1174 = vrcp.pop %v1088
  %v1175 = vrcp.pop %v1091
  %v1176 = vrcp.pop %v1094
  %v1177 = vrcp.pop %v1097
  %v1178 = vrcp.pop %v1100
  %v1179 = vrcp.pop %v1103
  %v1180 = vrcp.pop %v1106
  %v1181 = vrcp.pop %v1109
  %v1182 = vrcp.pop %v1112
  %v1183 = vrcp.pop %v1115
  %v1184 = vrcp.pop %v1118
  %v1185 = vrcp.pop %v1121
  %v1186 = vrcp.pop %v1124
  %v1187 = vrcp.pop %v1127
  %v1188 = vrcp.pop %v1130
  %v1189 = vrcp.pop %v1133
  %v1190 = vrcp.pop %v1136
  %v1191 = vrcp.pop %v1139
  %v1192 = vrcp.pop %v1142
  %v1193 = vrcp.pop %v1145
  %v1194 = vrcp.pop %v1148
  %v1195 = vrcp.pop %v1151
  %v1196 = vrcp.pop %v1154
  %v1197 = vrcp.pop %v1157
  %v1198 = vrcp.pop %v1160
  %v1199 = vrcp.pop %v1163
  %v1200 = vrcp.pop %v1166
  %v1201 = vrcp.pop %v1169
  %v1202 = vmul.f32 %v1011, %v1170
  %v1203 = vmul.f32 %v1013, %v1171
  %v1204 = vmul.f32 %v1015, %v1172
  %v1205 = vmul.f32 %v1017, %v1173
  %v1206 = vmul.f32 %v1019, %v1174
  %v1207 = vmul.f32 %v1021, %v1175
  %v1208 = vmul.f32 %v1023, %v1176
  %v1209 = vmul.f32 %v1025, %v1177
  %v1210 = vmul.f32 %v1027, %v1178
  %v1211 = vmul.f32 %v1029, %v1179
  %v1212 = vmul.f32 %v1031, %v1180
  %v1213 = vmul.f32 %v1033, %v1181
  %v1214 = vmul.f32 %v1035, %v1182
  %v1215 = vmul.f32 %v1037, %v1183
  %v1216 = vmul.f32 %v1039, %v1184
  %v1217 = vmul.f32 %v1041, %v1185
  %v1218 = vmul.f32 %v1043, %v1186
  %v1219 = vmul.f32 %v1045, %v1187
  %v1220 = vmul.f32 %v1047, %v1188
  %v1221 = vmul.f32 %v1049, %v1189
  %v1222 = vmul.f32 %v1051, %v1190
  %v1223 = vmul.f32 %v1053, %v1191
  %v1224 = vmul.f32 %v1055, %v1192
  %v1225 = vmul.f32 %v1057, %v1193
  %v1226 = vmul.f32 %v1059, %v1194
  %v1227 = vmul.f32 %v1061, %v1195
  %v1228 = vmul.f32 %v1063, %v1196
  %v1229 = vmul.f32 %v1065, %v1197
  %v1230 = vmul.f32 %v1067, %v1198
  %v1231 = vmul.f32 %v1069, %v1199
  %v1232 = vmul.f32 %v1071, %v1200
  %v1233 = vmul.f32 %v1073, %v1201
  %v1234 = vpack.c.bf16 %v1202, %v1202
  %v1235 = vpack.c.bf16 %v1203, %v1203
  %v1236 = vpack.c.bf16 %v1204, %v1204
  %v1237 = vpack.c.bf16 %v1205, %v1205
  %v1238 = vpack.c.bf16 %v1206, %v1206
  %v1239 = vpack.c.bf16 %v1207, %v1207
  %v1240 = vpack.c.bf16 %v1208, %v1208
  %v1241 = vpack.c.bf16 %v1209, %v1209
  %v1242 = vpack.c.bf16 %v1210, %v1210
  %v1243 = vpack.c.bf16 %v1211, %v1211
  %v1244 = vpack.c.bf16 %v1212, %v1212
  %v1245 = vpack.c.bf16 %v1213, %v1213
  %v1246 = vpack.c.bf16 %v1214, %v1214
  %v1247 = vpack.c.bf16 %v1215, %v1215
  %v1248 = vpack.c.bf16 %v1216, %v1216
  %v1249 = vpack.c.bf16 %v1217, %v1217
  %v1250 = vpack.c.bf16 %v1218, %v1218
  %v1251 = vpack.c.bf16 %v1219, %v1219
  %v1252 = vpack.c.bf16 %v1220, %v1220
  %v1253 = vpack.c.bf16 %v1221, %v1221
  %v1254 = vpack.c.bf16 %v1222, %v1222
  %v1255 = vpack.c.bf16 %v1223, %v1223
  %v1256 = vpack.c.bf16 %v1224, %v1224
  %v1257 = vpack.c.bf16 %v1225, %v1225
  %v1258 = vpack.c.bf16 %v1226, %v1226
  %v1259 = vpack.c.bf16 %v1227, %v1227
  %v1260 = vpack.c.bf16 %v1228, %v1228
  %v1261 = vpack.c.bf16 %v1229, %v1229
  %v1262 = vpack.c.bf16 %v1230, %v1230
  %v1263 = vpack.c.bf16 %v1231, %v1231
  %v1264 = vpack.c.bf16 %v1232, %v1232
  %v1265 = vpack.c.bf16 %v1233, %v1233
  %v1266 = vld [vmem:[%s2] sm:$0x3]
  %v1267 = vld [vmem:[%s2 + $0x2] sm:$0x3]
  %v1268 = vld [vmem:[%s2 + $0x4] sm:$0x3]
  %v1269 = vld [vmem:[%s2 + $0x6] sm:$0x3]
  %v1270 = vld [vmem:[%s2 + $0x8] sm:$0x3]
  %v1271 = vld [vmem:[%s2 + $0xa] sm:$0x3]
  %v1272 = vld [vmem:[%s2 + $0xc] sm:$0x3]
  %v1273 = vld [vmem:[%s2 + $0xe] sm:$0x3]
  %v1274 = vld [vmem:[%s2 + $0x10] sm:$0x3]
  %v1275 = vld [vmem:[%s2 + $0x12] sm:$0x3]
  %v1276 = vld [vmem:[%s2 + $0x14] sm:$0x3]
  %v1277 = vld [vmem:[%s2 + $0x16] sm:$0x3]
  %v1278 = vld [vmem:[%s2 + $0x18] sm:$0x3]
  %v1279 = vld [vmem:[%s2 + $0x1a] sm:$0x3]
  %v1280 = vld [vmem:[%s2 + $0x1c] sm:$0x3]
  %v1281 = vld [vmem:[%s2 + $0x1e] sm:$0x3]
  %v1282 = vld [vmem:[%s2 + $0x20] sm:$0x3]
  %v1283 = vld [vmem:[%s2 + $0x22] sm:$0x3]
  %v1284 = vld [vmem:[%s2 + $0x24] sm:$0x3]
  %v1285 = vld [vmem:[%s2 + $0x26] sm:$0x3]
  %v1286 = vld [vmem:[%s2 + $0x28] sm:$0x3]
  %v1287 = vld [vmem:[%s2 + $0x2a] sm:$0x3]
  %v1288 = vld [vmem:[%s2 + $0x2c] sm:$0x3]
  %v1289 = vld [vmem:[%s2 + $0x2e] sm:$0x3]
  %v1290 = vld [vmem:[%s2 + $0x30] sm:$0x3]
  %v1291 = vld [vmem:[%s2 + $0x32] sm:$0x3]
  %v1292 = vld [vmem:[%s2 + $0x34] sm:$0x3]
  %v1293 = vld [vmem:[%s2 + $0x36] sm:$0x3]
  %v1294 = vld [vmem:[%s2 + $0x38] sm:$0x3]
  %v1295 = vld [vmem:[%s2 + $0x3a] sm:$0x3]
  %v1296 = vld [vmem:[%s2 + $0x3c] sm:$0x3]
  %v1297 = vld [vmem:[%s2 + $0x3e] sm:$0x3]
  %vm1298 = vcmask 31744
  %v1300 = vsel %vm1298, %v1234, 0
  %vm1302 = vcmask 1041408
  %v1304 = vsel %vm1302, %v1266, 0
  %1306 = vmatpush.bf16.msra.mxu0 0
  %1307 = vmatpush.bf16.msra.mxu0 0
  %1308 = vmatpush.bf16.msra.mxu0 0
  %1309 = vmatpush.bf16.msra.mxu0 0
  %1310 = vmatpush.bf16.msra.mxu0 0
  %1311 = vmatpush.bf16.msra.mxu0 0
  %1312 = vmatpush.bf16.msra.mxu0 0
  %1313 = vmatpush.bf16.msra.mxu0 %v1304
  %1314 = vmatmul.bf16.gmra.mxu0 %v1300
  %v1315 = vpop.f32.mrf.mxu0
  %v1316 = vadd.f32 0.0, %v1315
  %v1317 = vpop.f32.mrf.mxu0
  %1318 = vdwg.mxu0
  %v1320 = vsel %vm1298, %v1235, 0
  %v1323 = vsel %vm1302, %v1267, 0
  %1325 = vmatpush.bf16.msra.mxu0 0
  %1326 = vmatpush.bf16.msra.mxu0 0
  %1327 = vmatpush.bf16.msra.mxu0 0
  %1328 = vmatpush.bf16.msra.mxu0 0
  %1329 = vmatpush.bf16.msra.mxu0 0
  %1330 = vmatpush.bf16.msra.mxu0 0
  %1331 = vmatpush.bf16.msra.mxu0 0
  %1332 = vmatpush.bf16.msra.mxu0 %v1323
  %1333 = vmatmul.bf16.gmra.mxu0 %v1320
  %v1334 = vpop.f32.mrf.mxu0
  %v1335 = vadd.f32 0.0, %v1334
  %v1336 = vpop.f32.mrf.mxu0
  %1337 = vdwg.mxu0
  %v1339 = vsel %vm1298, %v1236, 0
  %v1342 = vsel %vm1302, %v1268, 0
  %1344 = vmatpush.bf16.msra.mxu0 0
  %1345 = vmatpush.bf16.msra.mxu0 0
  %1346 = vmatpush.bf16.msra.mxu0 0
  %1347 = vmatpush.bf16.msra.mxu0 0
  %1348 = vmatpush.bf16.msra.mxu0 0
  %1349 = vmatpush.bf16.msra.mxu0 0
  %1350 = vmatpush.bf16.msra.mxu0 0
  %1351 = vmatpush.bf16.msra.mxu0 %v1342
  %1352 = vmatmul.bf16.gmra.mxu0 %v1339
  %v1353 = vpop.f32.mrf.mxu0
  %v1354 = vadd.f32 0.0, %v1353
  %v1355 = vpop.f32.mrf.mxu0
  %1356 = vdwg.mxu0
  %v1358 = vsel %vm1298, %v1237, 0
  %v1361 = vsel %vm1302, %v1269, 0
  %1363 = vmatpush.bf16.msra.mxu0 0
  %1364 = vmatpush.bf16.msra.mxu0 0
  %1365 = vmatpush.bf16.msra.mxu0 0
  %1366 = vmatpush.bf16.msra.mxu0 0
  %1367 = vmatpush.bf16.msra.mxu0 0
  %1368 = vmatpush.bf16.msra.mxu0 0
  %1369 = vmatpush.bf16.msra.mxu0 0
  %1370 = vmatpush.bf16.msra.mxu0 %v1361
  %1371 = vmatmul.bf16.gmra.mxu0 %v1358
  %v1372 = vpop.f32.mrf.mxu0
  %v1373 = vadd.f32 0.0, %v1372
  %v1374 = vpop.f32.mrf.mxu0
  %1375 = vdwg.mxu0
  %v1377 = vsel %vm1298, %v1238, 0
  %v1380 = vsel %vm1302, %v1270, 0
  %1382 = vmatpush.bf16.msra.mxu0 0
  %1383 = vmatpush.bf16.msra.mxu0 0
  %1384 = vmatpush.bf16.msra.mxu0 0
  %1385 = vmatpush.bf16.msra.mxu0 0
  %1386 = vmatpush.bf16.msra.mxu0 0
  %1387 = vmatpush.bf16.msra.mxu0 0
  %1388 = vmatpush.bf16.msra.mxu0 0
  %1389 = vmatpush.bf16.msra.mxu0 %v1380
  %1390 = vmatmul.bf16.gmra.mxu0 %v1377
  %v1391 = vpop.f32.mrf.mxu0
  %v1392 = vadd.f32 0.0, %v1391
  %v1393 = vpop.f32.mrf.mxu0
  %1394 = vdwg.mxu0
  %v1396 = vsel %vm1298, %v1239, 0
  %v1399 = vsel %vm1302, %v1271, 0
  %1401 = vmatpush.bf16.msra.mxu0 0
  %1402 = vmatpush.bf16.msra.mxu0 0
  %1403 = vmatpush.bf16.msra.mxu0 0
  %1404 = vmatpush.bf16.msra.mxu0 0
  %1405 = vmatpush.bf16.msra.mxu0 0
  %1406 = vmatpush.bf16.msra.mxu0 0
  %1407 = vmatpush.bf16.msra.mxu0 0
  %1408 = vmatpush.bf16.msra.mxu0 %v1399
  %1409 = vmatmul.bf16.gmra.mxu0 %v1396
  %v1410 = vpop.f32.mrf.mxu0
  %v1411 = vadd.f32 0.0, %v1410
  %v1412 = vpop.f32.mrf.mxu0
  %1413 = vdwg.mxu0
  %v1415 = vsel %vm1298, %v1240, 0
  %v1418 = vsel %vm1302, %v1272, 0
  %1420 = vmatpush.bf16.msra.mxu0 0
  %1421 = vmatpush.bf16.msra.mxu0 0
  %1422 = vmatpush.bf16.msra.mxu0 0
  %1423 = vmatpush.bf16.msra.mxu0 0
  %1424 = vmatpush.bf16.msra.mxu0 0
  %1425 = vmatpush.bf16.msra.mxu0 0
  %1426 = vmatpush.bf16.msra.mxu0 0
  %1427 = vmatpush.bf16.msra.mxu0 %v1418
  %1428 = vmatmul.bf16.gmra.mxu0 %v1415
  %v1429 = vpop.f32.mrf.mxu0
  %v1430 = vadd.f32 0.0, %v1429
  %v1431 = vpop.f32.mrf.mxu0
  %1432 = vdwg.mxu0
  %v1434 = vsel %vm1298, %v1241, 0
  %v1437 = vsel %vm1302, %v1273, 0
  %1439 = vmatpush.bf16.msra.mxu0 0
  %1440 = vmatpush.bf16.msra.mxu0 0
  %1441 = vmatpush.bf16.msra.mxu0 0
  %1442 = vmatpush.bf16.msra.mxu0 0
  %1443 = vmatpush.bf16.msra.mxu0 0
  %1444 = vmatpush.bf16.msra.mxu0 0
  %1445 = vmatpush.bf16.msra.mxu0 0
  %1446 = vmatpush.bf16.msra.mxu0 %v1437
  %1447 = vmatmul.bf16.gmra.mxu0 %v1434
  %v1448 = vpop.f32.mrf.mxu0
  %v1449 = vadd.f32 0.0, %v1448
  %v1450 = vpop.f32.mrf.mxu0
  %1451 = vdwg.mxu0
  %v1453 = vsel %vm1298, %v1242, 0
  %v1456 = vsel %vm1302, %v1274, 0
  %1458 = vmatpush.bf16.msra.mxu0 0
  %1459 = vmatpush.bf16.msra.mxu0 0
  %1460 = vmatpush.bf16.msra.mxu0 0
  %1461 = vmatpush.bf16.msra.mxu0 0
  %1462 = vmatpush.bf16.msra.mxu0 0
  %1463 = vmatpush.bf16.msra.mxu0 0
  %1464 = vmatpush.bf16.msra.mxu0 0
  %1465 = vmatpush.bf16.msra.mxu0 %v1456
  %1466 = vmatmul.bf16.gmra.mxu0 %v1453
  %v1467 = vpop.f32.mrf.mxu0
  %v1468 = vadd.f32 0.0, %v1467
  %v1469 = vpop.f32.mrf.mxu0
  %1470 = vdwg.mxu0
  %v1472 = vsel %vm1298, %v1243, 0
  %v1475 = vsel %vm1302, %v1275, 0
  %1477 = vmatpush.bf16.msra.mxu0 0
  %1478 = vmatpush.bf16.msra.mxu0 0
  %1479 = vmatpush.bf16.msra.mxu0 0
  %1480 = vmatpush.bf16.msra.mxu0 0
  %1481 = vmatpush.bf16.msra.mxu0 0
  %1482 = vmatpush.bf16.msra.mxu0 0
  %1483 = vmatpush.bf16.msra.mxu0 0
  %1484 = vmatpush.bf16.msra.mxu0 %v1475
  %1485 = vmatmul.bf16.gmra.mxu0 %v1472
  %v1486 = vpop.f32.mrf.mxu0
  %v1487 = vadd.f32 0.0, %v1486
  %v1488 = vpop.f32.mrf.mxu0
  %1489 = vdwg.mxu0
  %v1491 = vsel %vm1298, %v1244, 0
  %v1494 = vsel %vm1302, %v1276, 0
  %1496 = vmatpush.bf16.msra.mxu0 0
  %1497 = vmatpush.bf16.msra.mxu0 0
  %1498 = vmatpush.bf16.msra.mxu0 0
  %1499 = vmatpush.bf16.msra.mxu0 0
  %1500 = vmatpush.bf16.msra.mxu0 0
  %1501 = vmatpush.bf16.msra.mxu0 0
  %1502 = vmatpush.bf16.msra.mxu0 0
  %1503 = vmatpush.bf16.msra.mxu0 %v1494
  %1504 = vmatmul.bf16.gmra.mxu0 %v1491
  %v1505 = vpop.f32.mrf.mxu0
  %v1506 = vadd.f32 0.0, %v1505
  %v1507 = vpop.f32.mrf.mxu0
  %1508 = vdwg.mxu0
  %v1510 = vsel %vm1298, %v1245, 0
  %v1513 = vsel %vm1302, %v1277, 0
  %1515 = vmatpush.bf16.msra.mxu0 0
  %1516 = vmatpush.bf16.msra.mxu0 0
  %1517 = vmatpush.bf16.msra.mxu0 0
  %1518 = vmatpush.bf16.msra.mxu0 0
  %1519 = vmatpush.bf16.msra.mxu0 0
  %1520 = vmatpush.bf16.msra.mxu0 0
  %1521 = vmatpush.bf16.msra.mxu0 0
  %1522 = vmatpush.bf16.msra.mxu0 %v1513
  %1523 = vmatmul.bf16.gmra.mxu0 %v1510
  %v1524 = vpop.f32.mrf.mxu0
  %v1525 = vadd.f32 0.0, %v1524
  %v1526 = vpop.f32.mrf.mxu0
  %1527 = vdwg.mxu0
  %v1529 = vsel %vm1298, %v1246, 0
  %v1532 = vsel %vm1302, %v1278, 0
  %1534 = vmatpush.bf16.msra.mxu0 0
  %1535 = vmatpush.bf16.msra.mxu0 0
  %1536 = vmatpush.bf16.msra.mxu0 0
  %1537 = vmatpush.bf16.msra.mxu0 0
  %1538 = vmatpush.bf16.msra.mxu0 0
  %1539 = vmatpush.bf16.msra.mxu0 0
  %1540 = vmatpush.bf16.msra.mxu0 0
  %1541 = vmatpush.bf16.msra.mxu0 %v1532
  %1542 = vmatmul.bf16.gmra.mxu0 %v1529
  %v1543 = vpop.f32.mrf.mxu0
  %v1544 = vadd.f32 0.0, %v1543
  %v1545 = vpop.f32.mrf.mxu0
  %1546 = vdwg.mxu0
  %v1548 = vsel %vm1298, %v1247, 0
  %v1551 = vsel %vm1302, %v1279, 0
  %1553 = vmatpush.bf16.msra.mxu0 0
  %1554 = vmatpush.bf16.msra.mxu0 0
  %1555 = vmatpush.bf16.msra.mxu0 0
  %1556 = vmatpush.bf16.msra.mxu0 0
  %1557 = vmatpush.bf16.msra.mxu0 0
  %1558 = vmatpush.bf16.msra.mxu0 0
  %1559 = vmatpush.bf16.msra.mxu0 0
  %1560 = vmatpush.bf16.msra.mxu0 %v1551
  %1561 = vmatmul.bf16.gmra.mxu0 %v1548
  %v1562 = vpop.f32.mrf.mxu0
  %v1563 = vadd.f32 0.0, %v1562
  %v1564 = vpop.f32.mrf.mxu0
  %1565 = vdwg.mxu0
  %v1567 = vsel %vm1298, %v1248, 0
  %v1570 = vsel %vm1302, %v1280, 0
  %1572 = vmatpush.bf16.msra.mxu0 0
  %1573 = vmatpush.bf16.msra.mxu0 0
  %1574 = vmatpush.bf16.msra.mxu0 0
  %1575 = vmatpush.bf16.msra.mxu0 0
  %1576 = vmatpush.bf16.msra.mxu0 0
  %1577 = vmatpush.bf16.msra.mxu0 0
  %1578 = vmatpush.bf16.msra.mxu0 0
  %1579 = vmatpush.bf16.msra.mxu0 %v1570
  %1580 = vmatmul.bf16.gmra.mxu0 %v1567
  %v1581 = vpop.f32.mrf.mxu0
  %v1582 = vadd.f32 0.0, %v1581
  %v1583 = vpop.f32.mrf.mxu0
  %1584 = vdwg.mxu0
  %v1586 = vsel %vm1298, %v1249, 0
  %v1589 = vsel %vm1302, %v1281, 0
  %1591 = vmatpush.bf16.msra.mxu0 0
  %1592 = vmatpush.bf16.msra.mxu0 0
  %1593 = vmatpush.bf16.msra.mxu0 0
  %1594 = vmatpush.bf16.msra.mxu0 0
  %1595 = vmatpush.bf16.msra.mxu0 0
  %1596 = vmatpush.bf16.msra.mxu0 0
  %1597 = vmatpush.bf16.msra.mxu0 0
  %1598 = vmatpush.bf16.msra.mxu0 %v1589
  %1599 = vmatmul.bf16.gmra.mxu0 %v1586
  %v1600 = vpop.f32.mrf.mxu0
  %v1601 = vadd.f32 0.0, %v1600
  %v1602 = vpop.f32.mrf.mxu0
  %1603 = vdwg.mxu0
  %v1605 = vsel %vm1298, %v1250, 0
  %v1608 = vsel %vm1302, %v1282, 0
  %1610 = vmatpush.bf16.msra.mxu0 0
  %1611 = vmatpush.bf16.msra.mxu0 0
  %1612 = vmatpush.bf16.msra.mxu0 0
  %1613 = vmatpush.bf16.msra.mxu0 0
  %1614 = vmatpush.bf16.msra.mxu0 0
  %1615 = vmatpush.bf16.msra.mxu0 0
  %1616 = vmatpush.bf16.msra.mxu0 0
  %1617 = vmatpush.bf16.msra.mxu0 %v1608
  %1618 = vmatmul.bf16.gmra.mxu0 %v1605
  %v1619 = vpop.f32.mrf.mxu0
  %v1620 = vadd.f32 0.0, %v1619
  %v1621 = vpop.f32.mrf.mxu0
  %1622 = vdwg.mxu0
  %v1624 = vsel %vm1298, %v1251, 0
  %v1627 = vsel %vm1302, %v1283, 0
  %1629 = vmatpush.bf16.msra.mxu0 0
  %1630 = vmatpush.bf16.msra.mxu0 0
  %1631 = vmatpush.bf16.msra.mxu0 0
  %1632 = vmatpush.bf16.msra.mxu0 0
  %1633 = vmatpush.bf16.msra.mxu0 0
  %1634 = vmatpush.bf16.msra.mxu0 0
  %1635 = vmatpush.bf16.msra.mxu0 0
  %1636 = vmatpush.bf16.msra.mxu0 %v1627
  %1637 = vmatmul.bf16.gmra.mxu0 %v1624
  %v1638 = vpop.f32.mrf.mxu0
  %v1639 = vadd.f32 0.0, %v1638
  %v1640 = vpop.f32.mrf.mxu0
  %1641 = vdwg.mxu0
  %v1643 = vsel %vm1298, %v1252, 0
  %v1646 = vsel %vm1302, %v1284, 0
  %1648 = vmatpush.bf16.msra.mxu0 0
  %1649 = vmatpush.bf16.msra.mxu0 0
  %1650 = vmatpush.bf16.msra.mxu0 0
  %1651 = vmatpush.bf16.msra.mxu0 0
  %1652 = vmatpush.bf16.msra.mxu0 0
  %1653 = vmatpush.bf16.msra.mxu0 0
  %1654 = vmatpush.bf16.msra.mxu0 0
  %1655 = vmatpush.bf16.msra.mxu0 %v1646
  %1656 = vmatmul.bf16.gmra.mxu0 %v1643
  %v1657 = vpop.f32.mrf.mxu0
  %v1658 = vadd.f32 0.0, %v1657
  %v1659 = vpop.f32.mrf.mxu0
  %1660 = vdwg.mxu0
  %v1662 = vsel %vm1298, %v1253, 0
  %v1665 = vsel %vm1302, %v1285, 0
  %1667 = vmatpush.bf16.msra.mxu0 0
  %1668 = vmatpush.bf16.msra.mxu0 0
  %1669 = vmatpush.bf16.msra.mxu0 0
  %1670 = vmatpush.bf16.msra.mxu0 0
  %1671 = vmatpush.bf16.msra.mxu0 0
  %1672 = vmatpush.bf16.msra.mxu0 0
  %1673 = vmatpush.bf16.msra.mxu0 0
  %1674 = vmatpush.bf16.msra.mxu0 %v1665
  %1675 = vmatmul.bf16.gmra.mxu0 %v1662
  %v1676 = vpop.f32.mrf.mxu0
  %v1677 = vadd.f32 0.0, %v1676
  %v1678 = vpop.f32.mrf.mxu0
  %1679 = vdwg.mxu0
  %v1681 = vsel %vm1298, %v1254, 0
  %v1684 = vsel %vm1302, %v1286, 0
  %1686 = vmatpush.bf16.msra.mxu0 0
  %1687 = vmatpush.bf16.msra.mxu0 0
  %1688 = vmatpush.bf16.msra.mxu0 0
  %1689 = vmatpush.bf16.msra.mxu0 0
  %1690 = vmatpush.bf16.msra.mxu0 0
  %1691 = vmatpush.bf16.msra.mxu0 0
  %1692 = vmatpush.bf16.msra.mxu0 0
  %1693 = vmatpush.bf16.msra.mxu0 %v1684
  %1694 = vmatmul.bf16.gmra.mxu0 %v1681
  %v1695 = vpop.f32.mrf.mxu0
  %v1696 = vadd.f32 0.0, %v1695
  %v1697 = vpop.f32.mrf.mxu0
  %1698 = vdwg.mxu0
  %v1700 = vsel %vm1298, %v1255, 0
  %v1703 = vsel %vm1302, %v1287, 0
  %1705 = vmatpush.bf16.msra.mxu0 0
  %1706 = vmatpush.bf16.msra.mxu0 0
  %1707 = vmatpush.bf16.msra.mxu0 0
  %1708 = vmatpush.bf16.msra.mxu0 0
  %1709 = vmatpush.bf16.msra.mxu0 0
  %1710 = vmatpush.bf16.msra.mxu0 0
  %1711 = vmatpush.bf16.msra.mxu0 0
  %1712 = vmatpush.bf16.msra.mxu0 %v1703
  %1713 = vmatmul.bf16.gmra.mxu0 %v1700
  %v1714 = vpop.f32.mrf.mxu0
  %v1715 = vadd.f32 0.0, %v1714
  %v1716 = vpop.f32.mrf.mxu0
  %1717 = vdwg.mxu0
  %v1719 = vsel %vm1298, %v1256, 0
  %v1722 = vsel %vm1302, %v1288, 0
  %1724 = vmatpush.bf16.msra.mxu0 0
  %1725 = vmatpush.bf16.msra.mxu0 0
  %1726 = vmatpush.bf16.msra.mxu0 0
  %1727 = vmatpush.bf16.msra.mxu0 0
  %1728 = vmatpush.bf16.msra.mxu0 0
  %1729 = vmatpush.bf16.msra.mxu0 0
  %1730 = vmatpush.bf16.msra.mxu0 0
  %1731 = vmatpush.bf16.msra.mxu0 %v1722
  %1732 = vmatmul.bf16.gmra.mxu0 %v1719
  %v1733 = vpop.f32.mrf.mxu0
  %v1734 = vadd.f32 0.0, %v1733
  %v1735 = vpop.f32.mrf.mxu0
  %1736 = vdwg.mxu0
  %v1738 = vsel %vm1298, %v1257, 0
  %v1741 = vsel %vm1302, %v1289, 0
  %1743 = vmatpush.bf16.msra.mxu0 0
  %1744 = vmatpush.bf16.msra.mxu0 0
  %1745 = vmatpush.bf16.msra.mxu0 0
  %1746 = vmatpush.bf16.msra.mxu0 0
  %1747 = vmatpush.bf16.msra.mxu0 0
  %1748 = vmatpush.bf16.msra.mxu0 0
  %1749 = vmatpush.bf16.msra.mxu0 0
  %1750 = vmatpush.bf16.msra.mxu0 %v1741
  %1751 = vmatmul.bf16.gmra.mxu0 %v1738
  %v1752 = vpop.f32.mrf.mxu0
  %v1753 = vadd.f32 0.0, %v1752
  %v1754 = vpop.f32.mrf.mxu0
  %1755 = vdwg.mxu0
  %v1757 = vsel %vm1298, %v1258, 0
  %v1760 = vsel %vm1302, %v1290, 0
  %1762 = vmatpush.bf16.msra.mxu0 0
  %1763 = vmatpush.bf16.msra.mxu0 0
  %1764 = vmatpush.bf16.msra.mxu0 0
  %1765 = vmatpush.bf16.msra.mxu0 0
  %1766 = vmatpush.bf16.msra.mxu0 0
  %1767 = vmatpush.bf16.msra.mxu0 0
  %1768 = vmatpush.bf16.msra.mxu0 0
  %1769 = vmatpush.bf16.msra.mxu0 %v1760
  %1770 = vmatmul.bf16.gmra.mxu0 %v1757
  %v1771 = vpop.f32.mrf.mxu0
  %v1772 = vadd.f32 0.0, %v1771
  %v1773 = vpop.f32.mrf.mxu0
  %1774 = vdwg.mxu0
  %v1776 = vsel %vm1298, %v1259, 0
  %v1779 = vsel %vm1302, %v1291, 0
  %1781 = vmatpush.bf16.msra.mxu0 0
  %1782 = vmatpush.bf16.msra.mxu0 0
  %1783 = vmatpush.bf16.msra.mxu0 0
  %1784 = vmatpush.bf16.msra.mxu0 0
  %1785 = vmatpush.bf16.msra.mxu0 0
  %1786 = vmatpush.bf16.msra.mxu0 0
  %1787 = vmatpush.bf16.msra.mxu0 0
  %1788 = vmatpush.bf16.msra.mxu0 %v1779
  %1789 = vmatmul.bf16.gmra.mxu0 %v1776
  %v1790 = vpop.f32.mrf.mxu0
  %v1791 = vadd.f32 0.0, %v1790
  %v1792 = vpop.f32.mrf.mxu0
  %1793 = vdwg.mxu0
  %v1795 = vsel %vm1298, %v1260, 0
  %v1798 = vsel %vm1302, %v1292, 0
  %1800 = vmatpush.bf16.msra.mxu0 0
  %1801 = vmatpush.bf16.msra.mxu0 0
  %1802 = vmatpush.bf16.msra.mxu0 0
  %1803 = vmatpush.bf16.msra.mxu0 0
  %1804 = vmatpush.bf16.msra.mxu0 0
  %1805 = vmatpush.bf16.msra.mxu0 0
  %1806 = vmatpush.bf16.msra.mxu0 0
  %1807 = vmatpush.bf16.msra.mxu0 %v1798
  %1808 = vmatmul.bf16.gmra.mxu0 %v1795
  %v1809 = vpop.f32.mrf.mxu0
  %v1810 = vadd.f32 0.0, %v1809
  %v1811 = vpop.f32.mrf.mxu0
  %1812 = vdwg.mxu0
  %v1814 = vsel %vm1298, %v1261, 0
  %v1817 = vsel %vm1302, %v1293, 0
  %1819 = vmatpush.bf16.msra.mxu0 0
  %1820 = vmatpush.bf16.msra.mxu0 0
  %1821 = vmatpush.bf16.msra.mxu0 0
  %1822 = vmatpush.bf16.msra.mxu0 0
  %1823 = vmatpush.bf16.msra.mxu0 0
  %1824 = vmatpush.bf16.msra.mxu0 0
  %1825 = vmatpush.bf16.msra.mxu0 0
  %1826 = vmatpush.bf16.msra.mxu0 %v1817
  %1827 = vmatmul.bf16.gmra.mxu0 %v1814
  %v1828 = vpop.f32.mrf.mxu0
  %v1829 = vadd.f32 0.0, %v1828
  %v1830 = vpop.f32.mrf.mxu0
  %1831 = vdwg.mxu0
  %v1833 = vsel %vm1298, %v1262, 0
  %v1836 = vsel %vm1302, %v1294, 0
  %1838 = vmatpush.bf16.msra.mxu0 0
  %1839 = vmatpush.bf16.msra.mxu0 0
  %1840 = vmatpush.bf16.msra.mxu0 0
  %1841 = vmatpush.bf16.msra.mxu0 0
  %1842 = vmatpush.bf16.msra.mxu0 0
  %1843 = vmatpush.bf16.msra.mxu0 0
  %1844 = vmatpush.bf16.msra.mxu0 0
  %1845 = vmatpush.bf16.msra.mxu0 %v1836
  %1846 = vmatmul.bf16.gmra.mxu0 %v1833
  %v1847 = vpop.f32.mrf.mxu0
  %v1848 = vadd.f32 0.0, %v1847
  %v1849 = vpop.f32.mrf.mxu0
  %1850 = vdwg.mxu0
  %v1852 = vsel %vm1298, %v1263, 0
  %v1855 = vsel %vm1302, %v1295, 0
  %1857 = vmatpush.bf16.msra.mxu0 0
  %1858 = vmatpush.bf16.msra.mxu0 0
  %1859 = vmatpush.bf16.msra.mxu0 0
  %1860 = vmatpush.bf16.msra.mxu0 0
  %1861 = vmatpush.bf16.msra.mxu0 0
  %1862 = vmatpush.bf16.msra.mxu0 0
  %1863 = vmatpush.bf16.msra.mxu0 0
  %1864 = vmatpush.bf16.msra.mxu0 %v1855
  %1865 = vmatmul.bf16.gmra.mxu0 %v1852
  %v1866 = vpop.f32.mrf.mxu0
  %v1867 = vadd.f32 0.0, %v1866
  %v1868 = vpop.f32.mrf.mxu0
  %1869 = vdwg.mxu0
  %v1871 = vsel %vm1298, %v1264, 0
  %v1874 = vsel %vm1302, %v1296, 0
  %1876 = vmatpush.bf16.msra.mxu0 0
  %1877 = vmatpush.bf16.msra.mxu0 0
  %1878 = vmatpush.bf16.msra.mxu0 0
  %1879 = vmatpush.bf16.msra.mxu0 0
  %1880 = vmatpush.bf16.msra.mxu0 0
  %1881 = vmatpush.bf16.msra.mxu0 0
  %1882 = vmatpush.bf16.msra.mxu0 0
  %1883 = vmatpush.bf16.msra.mxu0 %v1874
  %1884 = vmatmul.bf16.gmra.mxu0 %v1871
  %v1885 = vpop.f32.mrf.mxu0
  %v1886 = vadd.f32 0.0, %v1885
  %v1887 = vpop.f32.mrf.mxu0
  %1888 = vdwg.mxu0
  %v1890 = vsel %vm1298, %v1265, 0
  %v1893 = vsel %vm1302, %v1297, 0
  %1895 = vmatpush.bf16.msra.mxu0 0
  %1896 = vmatpush.bf16.msra.mxu0 0
  %1897 = vmatpush.bf16.msra.mxu0 0
  %1898 = vmatpush.bf16.msra.mxu0 0
  %1899 = vmatpush.bf16.msra.mxu0 0
  %1900 = vmatpush.bf16.msra.mxu0 0
  %1901 = vmatpush.bf16.msra.mxu0 0
  %1902 = vmatpush.bf16.msra.mxu0 %v1893
  %1903 = vmatmul.bf16.gmra.mxu0 %v1890
  %v1904 = vpop.f32.mrf.mxu0
  %v1905 = vadd.f32 0.0, %v1904
  %v1906 = vpop.f32.mrf.mxu0
  %1907 = vdwg.mxu0
  %v1908 = vpack.c.bf16 %v1316, %v1316
  %v1909 = vpack.c.bf16 %v1335, %v1335
  %v1910 = vpack.c.bf16 %v1354, %v1354
  %v1911 = vpack.c.bf16 %v1373, %v1373
  %v1912 = vpack.c.bf16 %v1392, %v1392
  %v1913 = vpack.c.bf16 %v1411, %v1411
  %v1914 = vpack.c.bf16 %v1430, %v1430
  %v1915 = vpack.c.bf16 %v1449, %v1449
  %v1916 = vpack.c.bf16 %v1468, %v1468
  %v1917 = vpack.c.bf16 %v1487, %v1487
  %v1918 = vpack.c.bf16 %v1506, %v1506
  %v1919 = vpack.c.bf16 %v1525, %v1525
  %v1920 = vpack.c.bf16 %v1544, %v1544
  %v1921 = vpack.c.bf16 %v1563, %v1563
  %v1922 = vpack.c.bf16 %v1582, %v1582
  %v1923 = vpack.c.bf16 %v1601, %v1601
  %v1924 = vpack.c.bf16 %v1620, %v1620
  %v1925 = vpack.c.bf16 %v1639, %v1639
  %v1926 = vpack.c.bf16 %v1658, %v1658
  %v1927 = vpack.c.bf16 %v1677, %v1677
  %v1928 = vpack.c.bf16 %v1696, %v1696
  %v1929 = vpack.c.bf16 %v1715, %v1715
  %v1930 = vpack.c.bf16 %v1734, %v1734
  %v1931 = vpack.c.bf16 %v1753, %v1753
  %v1932 = vpack.c.bf16 %v1772, %v1772
  %v1933 = vpack.c.bf16 %v1791, %v1791
  %v1934 = vpack.c.bf16 %v1810, %v1810
  %v1935 = vpack.c.bf16 %v1829, %v1829
  %v1936 = vpack.c.bf16 %v1848, %v1848
  %v1937 = vpack.c.bf16 %v1867, %v1867
  %v1938 = vpack.c.bf16 %v1886, %v1886
  %v1939 = vpack.c.bf16 %v1905, %v1905
  %vm1940 = vcmask 58368
  %1941 = vst.msk [vmem:[%s3] sm:$0x3] %vm1940, %v1908
  %1942 = vst.msk [vmem:[%s3 + $0x2] sm:$0x3] %vm1940, %v1909
  %1943 = vst.msk [vmem:[%s3 + $0x4] sm:$0x3] %vm1940, %v1910
  %1944 = vst.msk [vmem:[%s3 + $0x6] sm:$0x3] %vm1940, %v1911
  %1945 = vst.msk [vmem:[%s3 + $0x8] sm:$0x3] %vm1940, %v1912
  %1946 = vst.msk [vmem:[%s3 + $0xa] sm:$0x3] %vm1940, %v1913
  %1947 = vst.msk [vmem:[%s3 + $0xc] sm:$0x3] %vm1940, %v1914
  %1948 = vst.msk [vmem:[%s3 + $0xe] sm:$0x3] %vm1940, %v1915
  %1949 = vst.msk [vmem:[%s3 + $0x10] sm:$0x3] %vm1940, %v1916
  %1950 = vst.msk [vmem:[%s3 + $0x12] sm:$0x3] %vm1940, %v1917
  %1951 = vst.msk [vmem:[%s3 + $0x14] sm:$0x3] %vm1940, %v1918
  %1952 = vst.msk [vmem:[%s3 + $0x16] sm:$0x3] %vm1940, %v1919
  %1953 = vst.msk [vmem:[%s3 + $0x18] sm:$0x3] %vm1940, %v1920
  %1954 = vst.msk [vmem:[%s3 + $0x1a] sm:$0x3] %vm1940, %v1921
  %1955 = vst.msk [vmem:[%s3 + $0x1c] sm:$0x3] %vm1940, %v1922
  %1956 = vst.msk [vmem:[%s3 + $0x1e] sm:$0x3] %vm1940, %v1923
  %1957 = vst.msk [vmem:[%s3 + $0x20] sm:$0x3] %vm1940, %v1924
  %1958 = vst.msk [vmem:[%s3 + $0x22] sm:$0x3] %vm1940, %v1925
  %1959 = vst.msk [vmem:[%s3 + $0x24] sm:$0x3] %vm1940, %v1926
  %1960 = vst.msk [vmem:[%s3 + $0x26] sm:$0x3] %vm1940, %v1927
  %1961 = vst.msk [vmem:[%s3 + $0x28] sm:$0x3] %vm1940, %v1928
  %1962 = vst.msk [vmem:[%s3 + $0x2a] sm:$0x3] %vm1940, %v1929
  %1963 = vst.msk [vmem:[%s3 + $0x2c] sm:$0x3] %vm1940, %v1930
  %1964 = vst.msk [vmem:[%s3 + $0x2e] sm:$0x3] %vm1940, %v1931
  %1965 = vst.msk [vmem:[%s3 + $0x30] sm:$0x3] %vm1940, %v1932
  %1966 = vst.msk [vmem:[%s3 + $0x32] sm:$0x3] %vm1940, %v1933
  %1967 = vst.msk [vmem:[%s3 + $0x34] sm:$0x3] %vm1940, %v1934
  %1968 = vst.msk [vmem:[%s3 + $0x36] sm:$0x3] %vm1940, %v1935
  %1969 = vst.msk [vmem:[%s3 + $0x38] sm:$0x3] %vm1940, %v1936
  %1970 = vst.msk [vmem:[%s3 + $0x3a] sm:$0x3] %vm1940, %v1937
  %1971 = vst.msk [vmem:[%s3 + $0x3c] sm:$0x3] %vm1940, %v1938
  %1972 = vst.msk [vmem:[%s3 + $0x3e] sm:$0x3] %vm1940, %v1939
  // Predicated region
  $region14: #{lora_sam_encoder_forward.29} parent=0 // pred_check
    _
  $region15: #{lora_sam_encoder_forward.29} parent=0 // pred_check_branch
    %1974 = sbr.rel (0) target = $region17
  $region16: #{lora_sam_encoder_forward.29} parent=0 // pred_region
    _
  $region17: #{lora_sam_encoder_forward.29} parent=0 // pred_fallthru
    _
  // Predicated region
  $region18: #{lora_sam_encoder_forward.29} parent=0 // pred_check
    _
  $region19: #{lora_sam_encoder_forward.29} parent=0 // pred_check_branch
    %1976 = sbr.rel (0) target = $region21
  $region20: #{lora_sam_encoder_forward.29} parent=0 // pred_region
    _
  $region21: #{lora_sam_encoder_forward.29} parent=0 // pred_fallthru
    _

// kernel: lora_sam_encoder_forward.48
$region0: #{lora_sam_encoder_forward.48}
  #allocation0 [shape = 'u32[]', space=smem, size = 0x4, offset = 0x4, fixed_abs, tag = 'smem constant byte address 0x4 - core index']
  #allocation1 [shape = 'u32[72,128]{1,0:T(1,128)}', space=vmem, size = 0x9000, scoped, tag = 'internal scratch']
  %s0 = inlined_call_operand.vmem [shape: bf16[32,32], index: 0, kind: input, shape index: {}]
  %s1 = inlined_call_operand.vmem [shape: bf16[32,16], index: 1, kind: input, shape index: {}]
  %s2 = inlined_call_operand.vmem [shape: f32[1,16], index: 2, kind: input, shape index: {}]
  %s3 = inlined_call_operand.vmem [shape: bf16[32,16], index: 3, kind: output, shape index: {}]
  %s4 = sld [smem:[#allocation0]]
  $region22: #{lora_sam_encoder_forward.48} parent=0
    _
  %s6 = ssub.s32 1, %s4
  %s7 = scalar_select 0, %s6, %s4
  // Predicated region
  $region2: #{lora_sam_encoder_forward.48} parent=0 // pred_check
    _
  $region3: #{lora_sam_encoder_forward.48} parent=0 // pred_check_branch
    %9 = sbr.rel (0) target = $region5
  $region4: #{lora_sam_encoder_forward.48} parent=0 // pred_region
    _
  $region5: #{lora_sam_encoder_forward.48} parent=0 // pred_fallthru
    _
  // Predicated region
  $region6: #{lora_sam_encoder_forward.48} parent=0 // pred_check
    _
  $region7: #{lora_sam_encoder_forward.48} parent=0 // pred_check_branch
    %11 = sbr.rel (0) target = $region9
  $region8: #{lora_sam_encoder_forward.48} parent=0 // pred_region
    _
  $region9: #{lora_sam_encoder_forward.48} parent=0 // pred_fallthru
    _
  // Predicated region
  $region10: #{lora_sam_encoder_forward.48} parent=0 // pred_check
    _
  $region11: #{lora_sam_encoder_forward.48} parent=0 // pred_check_branch
    %13 = sbr.rel (0) target = $region13
  $region12: #{lora_sam_encoder_forward.48} parent=0 // pred_region
    _
  $region13: #{lora_sam_encoder_forward.48} parent=0 // pred_fallthru
    _
  %v15 = vld [vmem:[%s0] sm:$0xf]
  %v16 = vld [vmem:[%s0 + $0x4] sm:$0xf]
  %v17 = vld [vmem:[%s0 + $0x8] sm:$0xf]
  %v18 = vld [vmem:[%s0 + $0xc] sm:$0xf]
  %v19 = vld [vmem:[%s1] sm:$0xf]
  %v20 = vld [vmem:[%s1 + $0x4] sm:$0xf]
  %v21 = vld [vmem:[%s1 + $0x8] sm:$0xf]
  %v22 = vld [vmem:[%s1 + $0xc] sm:$0xf]
  %v23 = vld [vmem:[%s2] sm:$0x1]
  %v25 = vperm.slane %v23, 0
  %v31 = vunpack.c.l.b16 %v15
  %v32 = vunpack.c.l.b16 %v16
  %v33 = vunpack.c.l.b16 %v17
  %v34 = vunpack.c.l.b16 %v18
  %v35 = vpack.c.b16 %v32, %v31
  %v36 = vpack.c.b16 %v34, %v33
  %v41 = vunpack.c.l.b16 %v19
  %v42 = vunpack.c.l.b16 %v20
  %v43 = vunpack.c.l.b16 %v21
  %v44 = vunpack.c.l.b16 %v22
  %v45 = vpack.c.b16 %v42, %v41
  %v46 = vpack.c.b16 %v44, %v43
  %vm49 = vcmask 261120
  %v51 = vsel %vm49, %v35, 0
  %v54 = vsel %vm49, %v36, 0
  %56 = vmatpush.bf16.msra.mxu0 0
  %57 = vmatpush.bf16.msra.mxu0 0
  %58 = vmatpush.bf16.msra.mxu0 0
  %59 = vmatpush.bf16.msra.mxu0 0
  %60 = vmatpush.bf16.msra.mxu0 0
  %61 = vmatpush.bf16.msra.mxu0 0
  %62 = vmatpush.bf16.msra.mxu0 %v46
  %63 = vmatpush.bf16.msra.mxu0 %v45
  %64 = vmatmul.bf16.gmra.mxu0 %v51
  %v65 = vpop.f32.mrf.mxu0
  %v66 = vadd.f32 %v25, %v65
  %v67 = vpop.f32.mrf.mxu0
  %v68 = vadd.f32 %v25, %v67
  %69 = vmatmul.bf16.gmra.mxu0 %v54
  %v70 = vpop.f32.mrf.mxu0
  %v71 = vadd.f32 %v25, %v70
  %v72 = vpop.f32.mrf.mxu0
  %v73 = vadd.f32 %v25, %v72
  %74 = vdwg.mxu0
  %v75 = vpack.c.bf16 %v66, %v66
  %v76 = vpack.c.bf16 %v68, %v68
  %v77 = vpack.c.bf16 %v71, %v71
  %v78 = vpack.c.bf16 %v73, %v73
  %vm79 = vcmask 125952
  %80 = vst.msk [vmem:[%s3] sm:$0xf] %vm79, %v75
  %81 = vst.msk [vmem:[%s3 + $0x4] sm:$0xf] %vm79, %v76
  %82 = vst.msk [vmem:[%s3 + $0x8] sm:$0xf] %vm79, %v77
  %83 = vst.msk [vmem:[%s3 + $0xc] sm:$0xf] %vm79, %v78
  // Predicated region
  $region14: #{lora_sam_encoder_forward.48} parent=0 // pred_check
    _
  $region15: #{lora_sam_encoder_forward.48} parent=0 // pred_check_branch
    %85 = sbr.rel (0) target = $region17
  $region16: #{lora_sam_encoder_forward.48} parent=0 // pred_region
    _
  $region17: #{lora_sam_encoder_forward.48} parent=0 // pred_fallthru
    _
  // Predicated region
  $region18: #{lora_sam_encoder_forward.48} parent=0 // pred_check
    _
  $region19: #{lora_sam_encoder_forward.48} parent=0 // pred_check_branch
    %87 = sbr.rel (0) target = $region21
  $region20: #{lora_sam_encoder_forward.48} parent=0 // pred_region
    _
  $region21: #{lora_sam_encoder_forward.48} parent=0 // pred_fallthru
    _

// kernel: lora_sam_encoder_forward.43
$region0: #{lora_sam_encoder_forward.43}
  #allocation0 [shape = 'u32[]', space=smem, size = 0x4, offset = 0x4, fixed_abs, tag = 'smem constant byte address 0x4 - core index']
  #allocation1 [shape = 'u32[72,128]{1,0:T(1,128)}', space=vmem, size = 0x9000, scoped, tag = 'internal scratch']
  %s0 = inlined_call_operand.vmem [shape: bf16[8,16,16], index: 0, kind: input, shape index: {}]
  %s1 = inlined_call_operand.vmem [shape: bf16[8,16,16], index: 1, kind: input, shape index: {}]
  %s2 = inlined_call_operand.vmem [shape: bf16[8,16,8], index: 2, kind: input, shape index: {}]
  %s3 = inlined_call_operand.vmem [shape: bf16[8,16,8], index: 3, kind: output, shape index: {}]
  %s4 = sld [smem:[#allocation0]]
  $region22: #{lora_sam_encoder_forward.43} parent=0
    _
  %s6 = ssub.s32 1, %s4
  %s7 = scalar_select 0, %s6, %s4
  // Predicated region
  $region2: #{lora_sam_encoder_forward.43} parent=0 // pred_check
    _
  $region3: #{lora_sam_encoder_forward.43} parent=0 // pred_check_branch
    %9 = sbr.rel (0) target = $region5
  $region4: #{lora_sam_encoder_forward.43} parent=0 // pred_region
    _
  $region5: #{lora_sam_encoder_forward.43} parent=0 // pred_fallthru
    _
  // Predicated region
  $region6: #{lora_sam_encoder_forward.43} parent=0 // pred_check
    _
  $region7: #{lora_sam_encoder_forward.43} parent=0 // pred_check_branch
    %11 = sbr.rel (0) target = $region9
  $region8: #{lora_sam_encoder_forward.43} parent=0 // pred_region
    _
  $region9: #{lora_sam_encoder_forward.43} parent=0 // pred_fallthru
    _
  // Predicated region
  $region10: #{lora_sam_encoder_forward.43} parent=0 // pred_check
    _
  $region11: #{lora_sam_encoder_forward.43} parent=0 // pred_check_branch
    %13 = sbr.rel (0) target = $region13
  $region12: #{lora_sam_encoder_forward.43} parent=0 // pred_region
    _
  $region13: #{lora_sam_encoder_forward.43} parent=0 // pred_fallthru
    _
  %v15 = vld [vmem:[%s0] sm:$0xf]
  %v16 = vld [vmem:[%s0 + $0x4] sm:$0xf]
  %v17 = vld [vmem:[%s0 + $0x8] sm:$0xf]
  %v18 = vld [vmem:[%s0 + $0xc] sm:$0xf]
  %v19 = vld [vmem:[%s0 + $0x10] sm:$0xf]
  %v20 = vld [vmem:[%s0 + $0x14] sm:$0xf]
  %v21 = vld [vmem:[%s0 + $0x18] sm:$0xf]
  %v22 = vld [vmem:[%s0 + $0x1c] sm:$0xf]
  %v23 = vld [vmem:[%s0 + $0x20] sm:$0xf]
  %v24 = vld [vmem:[%s0 + $0x24] sm:$0xf]
  %v25 = vld [vmem:[%s0 + $0x28] sm:$0xf]
  %v26 = vld [vmem:[%s0 + $0x2c] sm:$0xf]
  %v27 = vld [vmem:[%s0 + $0x30] sm:$0xf]
  %v28 = vld [vmem:[%s0 + $0x34] sm:$0xf]
  %v29 = vld [vmem:[%s0 + $0x38] sm:$0xf]
  %v30 = vld [vmem:[%s0 + $0x3c] sm:$0xf]
  %v31 = vld [vmem:[%s1] sm:$0xf]
  %v32 = vld [vmem:[%s1 + $0x4] sm:$0xf]
  %v33 = vld [vmem:[%s1 + $0x8] sm:$0xf]
  %v34 = vld [vmem:[%s1 + $0xc] sm:$0xf]
  %v35 = vld [vmem:[%s1 + $0x10] sm:$0xf]
  %v36 = vld [vmem:[%s1 + $0x14] sm:$0xf]
  %v37 = vld [vmem:[%s1 + $0x18] sm:$0xf]
  %v38 = vld [vmem:[%s1 + $0x1c] sm:$0xf]
  %v39 = vld [vmem:[%s1 + $0x20] sm:$0xf]
  %v40 = vld [vmem:[%s1 + $0x24] sm:$0xf]
  %v41 = vld [vmem:[%s1 + $0x28] sm:$0xf]
  %v42 = vld [vmem:[%s1 + $0x2c] sm:$0xf]
  %v43 = vld [vmem:[%s1 + $0x30] sm:$0xf]
  %v44 = vld [vmem:[%s1 + $0x34] sm:$0xf]
  %v45 = vld [vmem:[%s1 + $0x38] sm:$0xf]
  %v46 = vld [vmem:[%s1 + $0x3c] sm:$0xf]
  %v49 = vunpack.c.l.b16 %v15
  %v50 = vunpack.c.l.b16 %v16
  %v51 = vpack.c.b16 %v50, %v49
  %v54 = vunpack.c.l.b16 %v31
  %v55 = vunpack.c.l.b16 %v32
  %v56 = vpack.c.b16 %v55, %v54
  %vm58 = vcmask 130048
  %v60 = vsel %vm58, %v51, 0
  %62 = vmatpush.bf16.msra.mxu0 0
  %63 = vmatpush.bf16.msra.mxu0 0
  %64 = vmatpush.bf16.msra.mxu0 0
  %65 = vmatpush.bf16.msra.mxu0 0
  %66 = vmatpush.bf16.msra.mxu0 0
  %67 = vmatpush.bf16.msra.mxu0 0
  %68 = vmatpush.bf16.msra.mxu0 0
  %69 = vmatpush.bf16.msra.mxu0 %v56
  %70 = vmatmul.bf16.gmra.mxu0 %v60
  %v71 = vpop.f32.mrf.mxu0
  %v72 = vadd.f32 0.0, %v71
  %v73 = vpop.f32.mrf.mxu0
  %v74 = vadd.f32 0.0, %v73
  %75 = vdwg.mxu0
  %v78 = vunpack.c.l.b16 %v17
  %v79 = vunpack.c.l.b16 %v18
  %v80 = vpack.c.b16 %v79, %v78
  %v83 = vunpack.c.l.b16 %v33
  %v84 = vunpack.c.l.b16 %v34
  %v85 = vpack.c.b16 %v84, %v83
  %v88 = vsel %vm58, %v80, 0
  %90 = vmatpush.bf16.msra.mxu0 0
  %91 = vmatpush.bf16.msra.mxu0 0
  %92 = vmatpush.bf16.msra.mxu0 0
  %93 = vmatpush.bf16.msra.mxu0 0
  %94 = vmatpush.bf16.msra.mxu0 0
  %95 = vmatpush.bf16.msra.mxu0 0
  %96 = vmatpush.bf16.msra.mxu0 0
  %97 = vmatpush.bf16.msra.mxu0 %v85
  %98 = vmatmul.bf16.gmra.mxu0 %v88
  %v99 = vpop.f32.mrf.mxu0
  %v100 = vadd.f32 0.0, %v99
  %v101 = vpop.f32.mrf.mxu0
  %v102 = vadd.f32 0.0, %v101
  %103 = vdwg.mxu0
  %v106 = vunpack.c.l.b16 %v19
  %v107 = vunpack.c.l.b16 %v20
  %v108 = vpack.c.b16 %v107, %v106
  %v111 = vunpack.c.l.b16 %v35
  %v112 = vunpack.c.l.b16 %v36
  %v113 = vpack.c.b16 %v112, %v111
  %v116 = vsel %vm58, %v108, 0
  %118 = vmatpush.bf16.msra.mxu0 0
  %119 = vmatpush.bf16.msra.mxu0 0
  %120 = vmatpush.bf16.msra.mxu0 0
  %121 = vmatpush.bf16.msra.mxu0 0
  %122 = vmatpush.bf16.msra.mxu0 0
  %123 = vmatpush.bf16.msra.mxu0 0
  %124 = vmatpush.bf16.msra.mxu0 0
  %125 = vmatpush.bf16.msra.mxu0 %v113
  %126 = vmatmul.bf16.gmra.mxu0 %v116
  %v127 = vpop.f32.mrf.mxu0
  %v128 = vadd.f32 0.0, %v127
  %v129 = vpop.f32.mrf.mxu0
  %v130 = vadd.f32 0.0, %v129
  %131 = vdwg.mxu0
  %v134 = vunpack.c.l.b16 %v21
  %v135 = vunpack.c.l.b16 %v22
  %v136 = vpack.c.b16 %v135, %v134
  %v139 = vunpack.c.l.b16 %v37
  %v140 = vunpack.c.l.b16 %v38
  %v141 = vpack.c.b16 %v140, %v139
  %v144 = vsel %vm58, %v136, 0
  %146 = vmatpush.bf16.msra.mxu0 0
  %147 = vmatpush.bf16.msra.mxu0 0
  %148 = vmatpush.bf16.msra.mxu0 0
  %149 = vmatpush.bf16.msra.mxu0 0
  %150 = vmatpush.bf16.msra.mxu0 0
  %151 = vmatpush.bf16.msra.mxu0 0
  %152 = vmatpush.bf16.msra.mxu0 0
  %153 = vmatpush.bf16.msra.mxu0 %v141
  %154 = vmatmul.bf16.gmra.mxu0 %v144
  %v155 = vpop.f32.mrf.mxu0
  %v156 = vadd.f32 0.0, %v155
  %v157 = vpop.f32.mrf.mxu0
  %v158 = vadd.f32 0.0, %v157
  %159 = vdwg.mxu0
  %v162 = vunpack.c.l.b16 %v23
  %v163 = vunpack.c.l.b16 %v24
  %v164 = vpack.c.b16 %v163, %v162
  %v167 = vunpack.c.l.b16 %v39
  %v168 = vunpack.c.l.b16 %v40
  %v169 = vpack.c.b16 %v168, %v167
  %v172 = vsel %vm58, %v164, 0
  %174 = vmatpush.bf16.msra.mxu0 0
  %175 = vmatpush.bf16.msra.mxu0 0
  %176 = vmatpush.bf16.msra.mxu0 0
  %177 = vmatpush.bf16.msra.mxu0 0
  %178 = vmatpush.bf16.msra.mxu0 0
  %179 = vmatpush.bf16.msra.mxu0 0
  %180 = vmatpush.bf16.msra.mxu0 0
  %181 = vmatpush.bf16.msra.mxu0 %v169
  %182 = vmatmul.bf16.gmra.mxu0 %v172
  %v183 = vpop.f32.mrf.mxu0
  %v184 = vadd.f32 0.0, %v183
  %v185 = vpop.f32.mrf.mxu0
  %v186 = vadd.f32 0.0, %v185
  %187 = vdwg.mxu0
  %v190 = vunpack.c.l.b16 %v25
  %v191 = vunpack.c.l.b16 %v26
  %v192 = vpack.c.b16 %v191, %v190
  %v195 = vunpack.c.l.b16 %v41
  %v196 = vunpack.c.l.b16 %v42
  %v197 = vpack.c.b16 %v196, %v195
  %v200 = vsel %vm58, %v192, 0
  %202 = vmatpush.bf16.msra.mxu0 0
  %203 = vmatpush.bf16.msra.mxu0 0
  %204 = vmatpush.bf16.msra.mxu0 0
  %205 = vmatpush.bf16.msra.mxu0 0
  %206 = vmatpush.bf16.msra.mxu0 0
  %207 = vmatpush.bf16.msra.mxu0 0
  %208 = vmatpush.bf16.msra.mxu0 0
  %209 = vmatpush.bf16.msra.mxu0 %v197
  %210 = vmatmul.bf16.gmra.mxu0 %v200
  %v211 = vpop.f32.mrf.mxu0
  %v212 = vadd.f32 0.0, %v211
  %v213 = vpop.f32.mrf.mxu0
  %v214 = vadd.f32 0.0, %v213
  %215 = vdwg.mxu0
  %v218 = vunpack.c.l.b16 %v27
  %v219 = vunpack.c.l.b16 %v28
  %v220 = vpack.c.b16 %v219, %v218
  %v223 = vunpack.c.l.b16 %v43
  %v224 = vunpack.c.l.b16 %v44
  %v225 = vpack.c.b16 %v224, %v223
  %v228 = vsel %vm58, %v220, 0
  %230 = vmatpush.bf16.msra.mxu0 0
  %231 = vmatpush.bf16.msra.mxu0 0
  %232 = vmatpush.bf16.msra.mxu0 0
  %233 = vmatpush.bf16.msra.mxu0 0
  %234 = vmatpush.bf16.msra.mxu0 0
  %235 = vmatpush.bf16.msra.mxu0 0
  %236 = vmatpush.bf16.msra.mxu0 0
  %237 = vmatpush.bf16.msra.mxu0 %v225
  %238 = vmatmul.bf16.gmra.mxu0 %v228
  %v239 = vpop.f32.mrf.mxu0
  %v240 = vadd.f32 0.0, %v239
  %v241 = vpop.f32.mrf.mxu0
  %v242 = vadd.f32 0.0, %v241
  %243 = vdwg.mxu0
  %v246 = vunpack.c.l.b16 %v29
  %v247 = vunpack.c.l.b16 %v30
  %v248 = vpack.c.b16 %v247, %v246
  %v251 = vunpack.c.l.b16 %v45
  %v252 = vunpack.c.l.b16 %v46
  %v253 = vpack.c.b16 %v252, %v251
  %v256 = vsel %vm58, %v248, 0
  %258 = vmatpush.bf16.msra.mxu0 0
  %259 = vmatpush.bf16.msra.mxu0 0
  %260 = vmatpush.bf16.msra.mxu0 0
  %261 = vmatpush.bf16.msra.mxu0 0
  %262 = vmatpush.bf16.msra.mxu0 0
  %263 = vmatpush.bf16.msra.mxu0 0
  %264 = vmatpush.bf16.msra.mxu0 0
  %265 = vmatpush.bf16.msra.mxu0 %v253
  %266 = vmatmul.bf16.gmra.mxu0 %v256
  %v267 = vpop.f32.mrf.mxu0
  %v268 = vadd.f32 0.0, %v267
  %v269 = vpop.f32.mrf.mxu0
  %v270 = vadd.f32 0.0, %v269
  %271 = vdwg.mxu0
  %v272 = vsel %vm58, %v72, -inf
  %273 = vmax.xlane.f32.xlu0 %v272
  %v274 = vpop.xlane.xlu0 %273
  %v275 = vsel %vm58, %v74, -inf
  %276 = vmax.xlane.f32.xlu0 %v275
  %v277 = vpop.xlane.xlu0 %276
  %v278 = vsel %vm58, %v100, -inf
  %279 = vmax.xlane.f32.xlu0 %v278
  %v280 = vpop.xlane.xlu0 %279
  %v281 = vsel %vm58, %v102, -inf
  %282 = vmax.xlane.f32.xlu0 %v281
  %v283 = vpop.xlane.xlu0 %282
  %v284 = vsel %vm58, %v128, -inf
  %285 = vmax.xlane.f32.xlu0 %v284
  %v286 = vpop.xlane.xlu0 %285
  %v287 = vsel %vm58, %v130, -inf
  %288 = vmax.xlane.f32.xlu0 %v287
  %v289 = vpop.xlane.xlu0 %288
  %v290 = vsel %vm58, %v156, -inf
  %291 = vmax.xlane.f32.xlu0 %v290
  %v292 = vpop.xlane.xlu0 %291
  %v293 = vsel %vm58, %v158, -inf
  %294 = vmax.xlane.f32.xlu0 %v293
  %v295 = vpop.xlane.xlu0 %294
  %v296 = vsel %vm58, %v184, -inf
  %297 = vmax.xlane.f32.xlu0 %v296
  %v298 = vpop.xlane.xlu0 %297
  %v299 = vsel %vm58, %v186, -inf
  %300 = vmax.xlane.f32.xlu0 %v299
  %v301 = vpop.xlane.xlu0 %300
  %v302 = vsel %vm58, %v212, -inf
  %303 = vmax.xlane.f32.xlu0 %v302
  %v304 = vpop.xlane.xlu0 %303
  %v305 = vsel %vm58, %v214, -inf
  %306 = vmax.xlane.f32.xlu0 %v305
  %v307 = vpop.xlane.xlu0 %306
  %v308 = vsel %vm58, %v240, -inf
  %309 = vmax.xlane.f32.xlu0 %v308
  %v310 = vpop.xlane.xlu0 %309
  %v311 = vsel %vm58, %v242, -inf
  %312 = vmax.xlane.f32.xlu0 %v311
  %v313 = vpop.xlane.xlu0 %312
  %v314 = vsel %vm58, %v268, -inf
  %315 = vmax.xlane.f32.xlu0 %v314
  %v316 = vpop.xlane.xlu0 %315
  %v317 = vsel %vm58, %v270, -inf
  %318 = vmax.xlane.f32.xlu0 %v317
  %v319 = vpop.xlane.xlu0 %318
  %v320 = vsub.f32 %v72, %v274
  %v321 = vsub.f32 %v74, %v277
  %v322 = vsub.f32 %v100, %v280
  %v323 = vsub.f32 %v102, %v283
  %v324 = vsub.f32 %v128, %v286
  %v325 = vsub.f32 %v130, %v289
  %v326 = vsub.f32 %v156, %v292
  %v327 = vsub.f32 %v158, %v295
  %v328 = vsub.f32 %v184, %v298
  %v329 = vsub.f32 %v186, %v301
  %v330 = vsub.f32 %v212, %v304
  %v331 = vsub.f32 %v214, %v307
  %v332 = vsub.f32 %v240, %v310
  %v333 = vsub.f32 %v242, %v313
  %v334 = vsub.f32 %v268, %v316
  %v335 = vsub.f32 %v270, %v319
  %v336 = vmul.f32 %v320, 1.442695
  %v337 = vpow.pop %v336
  %v338 = vmul.f32 %v321, 1.442695
  %v339 = vpow.pop %v338
  %v340 = vmul.f32 %v322, 1.442695
  %v341 = vpow.pop %v340
  %v342 = vmul.f32 %v323, 1.442695
  %v343 = vpow.pop %v342
  %v344 = vmul.f32 %v324, 1.442695
  %v345 = vpow.pop %v344
  %v346 = vmul.f32 %v325, 1.442695
  %v347 = vpow.pop %v346
  %v348 = vmul.f32 %v326, 1.442695
  %v349 = vpow.pop %v348
  %v350 = vmul.f32 %v327, 1.442695
  %v351 = vpow.pop %v350
  %v352 = vmul.f32 %v328, 1.442695
  %v353 = vpow.pop %v352
  %v354 = vmul.f32 %v329, 1.442695
  %v355 = vpow.pop %v354
  %v356 = vmul.f32 %v330, 1.442695
  %v357 = vpow.pop %v356
  %v358 = vmul.f32 %v331, 1.442695
  %v359 = vpow.pop %v358
  %v360 = vmul.f32 %v332, 1.442695
  %v361 = vpow.pop %v360
  %v362 = vmul.f32 %v333, 1.442695
  %v363 = vpow.pop %v362
  %v364 = vmul.f32 %v334, 1.442695
  %v365 = vpow.pop %v364
  %v366 = vmul.f32 %v335, 1.442695
  %v367 = vpow.pop %v366
  %v368 = vsel %vm58, %v337, 0.0
  %369 = vadd.xlane.f32.xlu0 %v368
  %v370 = vpop.xlane.xlu0 %369
  %v371 = vsel %vm58, %v339, 0.0
  %372 = vadd.xlane.f32.xlu0 %v371
  %v373 = vpop.xlane.xlu0 %372
  %v374 = vsel %vm58, %v341, 0.0
  %375 = vadd.xlane.f32.xlu0 %v374
  %v376 = vpop.xlane.xlu0 %375
  %v377 = vsel %vm58, %v343, 0.0
  %378 = vadd.xlane.f32.xlu0 %v377
  %v379 = vpop.xlane.xlu0 %378
  %v380 = vsel %vm58, %v345, 0.0
  %381 = vadd.xlane.f32.xlu0 %v380
  %v382 = vpop.xlane.xlu0 %381
  %v383 = vsel %vm58, %v347, 0.0
  %384 = vadd.xlane.f32.xlu0 %v383
  %v385 = vpop.xlane.xlu0 %384
  %v386 = vsel %vm58, %v349, 0.0
  %387 = vadd.xlane.f32.xlu0 %v386
  %v388 = vpop.xlane.xlu0 %387
  %v389 = vsel %vm58, %v351, 0.0
  %390 = vadd.xlane.f32.xlu0 %v389
  %v391 = vpop.xlane.xlu0 %390
  %v392 = vsel %vm58, %v353, 0.0
  %393 = vadd.xlane.f32.xlu0 %v392
  %v394 = vpop.xlane.xlu0 %393
  %v395 = vsel %vm58, %v355, 0.0
  %396 = vadd.xlane.f32.xlu0 %v395
  %v397 = vpop.xlane.xlu0 %396
  %v398 = vsel %vm58, %v357, 0.0
  %399 = vadd.xlane.f32.xlu0 %v398
  %v400 = vpop.xlane.xlu0 %399
  %v401 = vsel %vm58, %v359, 0.0
  %402 = vadd.xlane.f32.xlu0 %v401
  %v403 = vpop.xlane.xlu0 %402
  %v404 = vsel %vm58, %v361, 0.0
  %405 = vadd.xlane.f32.xlu0 %v404
  %v406 = vpop.xlane.xlu0 %405
  %v407 = vsel %vm58, %v363, 0.0
  %408 = vadd.xlane.f32.xlu0 %v407
  %v409 = vpop.xlane.xlu0 %408
  %v410 = vsel %vm58, %v365, 0.0
  %411 = vadd.xlane.f32.xlu0 %v410
  %v412 = vpop.xlane.xlu0 %411
  %v413 = vsel %vm58, %v367, 0.0
  %414 = vadd.xlane.f32.xlu0 %v413
  %v415 = vpop.xlane.xlu0 %414
  %v416 = vrcp.pop %v370
  %v417 = vrcp.pop %v373
  %v418 = vrcp.pop %v376
  %v419 = vrcp.pop %v379
  %v420 = vrcp.pop %v382
  %v421 = vrcp.pop %v385
  %v422 = vrcp.pop %v388
  %v423 = vrcp.pop %v391
  %v424 = vrcp.pop %v394
  %v425 = vrcp.pop %v397
  %v426 = vrcp.pop %v400
  %v427 = vrcp.pop %v403
  %v428 = vrcp.pop %v406
  %v429 = vrcp.pop %v409
  %v430 = vrcp.pop %v412
  %v431 = vrcp.pop %v415
  %v432 = vmul.f32 %v337, %v416
  %v433 = vmul.f32 %v339, %v417
  %v434 = vmul.f32 %v341, %v418
  %v435 = vmul.f32 %v343, %v419
  %v436 = vmul.f32 %v345, %v420
  %v437 = vmul.f32 %v347, %v421
  %v438 = vmul.f32 %v349, %v422
  %v439 = vmul.f32 %v351, %v423
  %v440 = vmul.f32 %v353, %v424
  %v441 = vmul.f32 %v355, %v425
  %v442 = vmul.f32 %v357, %v426
  %v443 = vmul.f32 %v359, %v427
  %v444 = vmul.f32 %v361, %v428
  %v445 = vmul.f32 %v363, %v429
  %v446 = vmul.f32 %v365, %v430
  %v447 = vmul.f32 %v367, %v431
  %v448 = vpack.c.bf16 %v432, %v432
  %v449 = vpack.c.bf16 %v433, %v433
  %v450 = vpack.c.bf16 %v434, %v434
  %v451 = vpack.c.bf16 %v435, %v435
  %v452 = vpack.c.bf16 %v436, %v436
  %v453 = vpack.c.bf16 %v437, %v437
  %v454 = vpack.c.bf16 %v438, %v438
  %v455 = vpack.c.bf16 %v439, %v439
  %v456 = vpack.c.bf16 %v440, %v440
  %v457 = vpack.c.bf16 %v441, %v441
  %v458 = vpack.c.bf16 %v442, %v442
  %v459 = vpack.c.bf16 %v443, %v443
  %v460 = vpack.c.bf16 %v444, %v444
  %v461 = vpack.c.bf16 %v445, %v445
  %v462 = vpack.c.bf16 %v446, %v446
  %v463 = vpack.c.bf16 %v447, %v447
  %v464 = vld [vmem:[%s2] sm:$0xf]
  %v465 = vld [vmem:[%s2 + $0x4] sm:$0xf]
  %v466 = vld [vmem:[%s2 + $0x8] sm:$0xf]
  %v467 = vld [vmem:[%s2 + $0xc] sm:$0xf]
  %v468 = vld [vmem:[%s2 + $0x10] sm:$0xf]
  %v469 = vld [vmem:[%s2 + $0x14] sm:$0xf]
  %v470 = vld [vmem:[%s2 + $0x18] sm:$0xf]
  %v471 = vld [vmem:[%s2 + $0x1c] sm:$0xf]
  %v472 = vld [vmem:[%s2 + $0x20] sm:$0xf]
  %v473 = vld [vmem:[%s2 + $0x24] sm:$0xf]
  %v474 = vld [vmem:[%s2 + $0x28] sm:$0xf]
  %v475 = vld [vmem:[%s2 + $0x2c] sm:$0xf]
  %v476 = vld [vmem:[%s2 + $0x30] sm:$0xf]
  %v477 = vld [vmem:[%s2 + $0x34] sm:$0xf]
  %v478 = vld [vmem:[%s2 + $0x38] sm:$0xf]
  %v479 = vld [vmem:[%s2 + $0x3c] sm:$0xf]
  %v482 = vunpack.c.l.b16 %v448
  %v483 = vunpack.c.l.b16 %v449
  %v484 = vpack.c.b16 %v483, %v482
  %v487 = vunpack.c.l.b16 %v464
  %v488 = vunpack.c.l.b16 %v465
  %v489 = vpack.c.b16 %v488, %v487
  %v492 = vsel %vm58, %v484, 0
  %494 = vmatpush.bf16.msra.mxu0 0
  %495 = vmatpush.bf16.msra.mxu0 0
  %496 = vmatpush.bf16.msra.mxu0 0
  %497 = vmatpush.bf16.msra.mxu0 0
  %498 = vmatpush.bf16.msra.mxu0 0
  %499 = vmatpush.bf16.msra.mxu0 0
  %500 = vmatpush.bf16.msra.mxu0 0
  %501 = vmatpush.bf16.msra.mxu0 %v489
  %502 = vmatmul.bf16.gmra.mxu0 %v492
  %v503 = vpop.f32.mrf.mxu0
  %v504 = vadd.f32 0.0, %v503
  %v505 = vpop.f32.mrf.mxu0
  %v506 = vadd.f32 0.0, %v505
  %507 = vdwg.mxu0
  %v510 = vunpack.c.l.b16 %v450
  %v511 = vunpack.c.l.b16 %v451
  %v512 = vpack.c.b16 %v511, %v510
  %v515 = vunpack.c.l.b16 %v466
  %v516 = vunpack.c.l.b16 %v467
  %v517 = vpack.c.b16 %v516, %v515
  %v520 = vsel %vm58, %v512, 0
  %522 = vmatpush.bf16.msra.mxu0 0
  %523 = vmatpush.bf16.msra.mxu0 0
  %524 = vmatpush.bf16.msra.mxu0 0
  %525 = vmatpush.bf16.msra.mxu0 0
  %526 = vmatpush.bf16.msra.mxu0 0
  %527 = vmatpush.bf16.msra.mxu0 0
  %528 = vmatpush.bf16.msra.mxu0 0
  %529 = vmatpush.bf16.msra.mxu0 %v517
  %530 = vmatmul.bf16.gmra.mxu0 %v520
  %v531 = vpop.f32.mrf.mxu0
  %v532 = vadd.f32 0.0, %v531
  %v533 = vpop.f32.mrf.mxu0
  %v534 = vadd.f32 0.0, %v533
  %535 = vdwg.mxu0
  %v538 = vunpack.c.l.b16 %v452
  %v539 = vunpack.c.l.b16 %v453
  %v540 = vpack.c.b16 %v539, %v538
  %v543 = vunpack.c.l.b16 %v468
  %v544 = vunpack.c.l.b16 %v469
  %v545 = vpack.c.b16 %v544, %v543
  %v548 = vsel %vm58, %v540, 0
  %550 = vmatpush.bf16.msra.mxu0 0
  %551 = vmatpush.bf16.msra.mxu0 0
  %552 = vmatpush.bf16.msra.mxu0 0
  %553 = vmatpush.bf16.msra.mxu0 0
  %554 = vmatpush.bf16.msra.mxu0 0
  %555 = vmatpush.bf16.msra.mxu0 0
  %556 = vmatpush.bf16.msra.mxu0 0
  %557 = vmatpush.bf16.msra.mxu0 %v545
  %558 = vmatmul.bf16.gmra.mxu0 %v548
  %v559 = vpop.f32.mrf.mxu0
  %v560 = vadd.f32 0.0, %v559
  %v561 = vpop.f32.mrf.mxu0
  %v562 = vadd.f32 0.0, %v561
  %563 = vdwg.mxu0
  %v566 = vunpack.c.l.b16 %v454
  %v567 = vunpack.c.l.b16 %v455
  %v568 = vpack.c.b16 %v567, %v566
  %v571 = vunpack.c.l.b16 %v470
  %v572 = vunpack.c.l.b16 %v471
  %v573 = vpack.c.b16 %v572, %v571
  %v576 = vsel %vm58, %v568, 0
  %578 = vmatpush.bf16.msra.mxu0 0
  %579 = vmatpush.bf16.msra.mxu0 0
  %580 = vmatpush.bf16.msra.mxu0 0
  %581 = vmatpush.bf16.msra.mxu0 0
  %582 = vmatpush.bf16.msra.mxu0 0
  %583 = vmatpush.bf16.msra.mxu0 0
  %584 = vmatpush.bf16.msra.mxu0 0
  %585 = vmatpush.bf16.msra.mxu0 %v573
  %586 = vmatmul.bf16.gmra.mxu0 %v576
  %v587 = vpop.f32.mrf.mxu0
  %v588 = vadd.f32 0.0, %v587
  %v589 = vpop.f32.mrf.mxu0
  %v590 = vadd.f32 0.0, %v589
  %591 = vdwg.mxu0
  %v594 = vunpack.c.l.b16 %v456
  %v595 = vunpack.c.l.b16 %v457
  %v596 = vpack.c.b16 %v595, %v594
  %v599 = vunpack.c.l.b16 %v472
  %v600 = vunpack.c.l.b16 %v473
  %v601 = vpack.c.b16 %v600, %v599
  %v604 = vsel %vm58, %v596, 0
  %606 = vmatpush.bf16.msra.mxu0 0
  %607 = vmatpush.bf16.msra.mxu0 0
  %608 = vmatpush.bf16.msra.mxu0 0
  %609 = vmatpush.bf16.msra.mxu0 0
  %610 = vmatpush.bf16.msra.mxu0 0
  %611 = vmatpush.bf16.msra.mxu0 0
  %612 = vmatpush.bf16.msra.mxu0 0
  %613 = vmatpush.bf16.msra.mxu0 %v601
  %614 = vmatmul.bf16.gmra.mxu0 %v604
  %v615 = vpop.f32.mrf.mxu0
  %v616 = vadd.f32 0.0, %v615
  %v617 = vpop.f32.mrf.mxu0
  %v618 = vadd.f32 0.0, %v617
  %619 = vdwg.mxu0
  %v622 = vunpack.c.l.b16 %v458
  %v623 = vunpack.c.l.b16 %v459
  %v624 = vpack.c.b16 %v623, %v622
  %v627 = vunpack.c.l.b16 %v474
  %v628 = vunpack.c.l.b16 %v475
  %v629 = vpack.c.b16 %v628, %v627
  %v632 = vsel %vm58, %v624, 0
  %634 = vmatpush.bf16.msra.mxu0 0
  %635 = vmatpush.bf16.msra.mxu0 0
  %636 = vmatpush.bf16.msra.mxu0 0
  %637 = vmatpush.bf16.msra.mxu0 0
  %638 = vmatpush.bf16.msra.mxu0 0
  %639 = vmatpush.bf16.msra.mxu0 0
  %640 = vmatpush.bf16.msra.mxu0 0
  %641 = vmatpush.bf16.msra.mxu0 %v629
  %642 = vmatmul.bf16.gmra.mxu0 %v632
  %v643 = vpop.f32.mrf.mxu0
  %v644 = vadd.f32 0.0, %v643
  %v645 = vpop.f32.mrf.mxu0
  %v646 = vadd.f32 0.0, %v645
  %647 = vdwg.mxu0
  %v650 = vunpack.c.l.b16 %v460
  %v651 = vunpack.c.l.b16 %v461
  %v652 = vpack.c.b16 %v651, %v650
  %v655 = vunpack.c.l.b16 %v476
  %v656 = vunpack.c.l.b16 %v477
  %v657 = vpack.c.b16 %v656, %v655
  %v660 = vsel %vm58, %v652, 0
  %662 = vmatpush.bf16.msra.mxu0 0
  %663 = vmatpush.bf16.msra.mxu0 0
  %664 = vmatpush.bf16.msra.mxu0 0
  %665 = vmatpush.bf16.msra.mxu0 0
  %666 = vmatpush.bf16.msra.mxu0 0
  %667 = vmatpush.bf16.msra.mxu0 0
  %668 = vmatpush.bf16.msra.mxu0 0
  %669 = vmatpush.bf16.msra.mxu0 %v657
  %670 = vmatmul.bf16.gmra.mxu0 %v660
  %v671 = vpop.f32.mrf.mxu0
  %v672 = vadd.f32 0.0, %v671
  %v673 = vpop.f32.mrf.mxu0
  %v674 = vadd.f32 0.0, %v673
  %675 = vdwg.mxu0
  %v678 = vunpack.c.l.b16 %v462
  %v679 = vunpack.c.l.b16 %v463
  %v680 = vpack.c.b16 %v679, %v678
  %v683 = vunpack.c.l.b16 %v478
  %v684 = vunpack.c.l.b16 %v479
  %v685 = vpack.c.b16 %v684, %v683
  %v688 = vsel %vm58, %v680, 0
  %690 = vmatpush.bf16.msra.mxu0 0
  %691 = vmatpush.bf16.msra.mxu0 0
  %692 = vmatpush.bf16.msra.mxu0 0
  %693 = vmatpush.bf16.msra.mxu0 0
  %694 = vmatpush.bf16.msra.mxu0 0
  %695 = vmatpush.bf16.msra.mxu0 0
  %696 = vmatpush.bf16.msra.mxu0 0
  %697 = vmatpush.bf16.msra.mxu0 %v685
  %698 = vmatmul.bf16.gmra.mxu0 %v688
  %v699 = vpop.f32.mrf.mxu0
  %v700 = vadd.f32 0.0, %v699
  %v701 = vpop.f32.mrf.mxu0
  %v702 = vadd.f32 0.0, %v701
  %703 = vdwg.mxu0
  %v704 = vpack.c.bf16 %v504, %v504
  %v705 = vpack.c.bf16 %v506, %v506
  %v706 = vpack.c.bf16 %v532, %v532
  %v707 = vpack.c.bf16 %v534, %v534
  %v708 = vpack.c.bf16 %v560, %v560
  %v709 = vpack.c.bf16 %v562, %v562
  %v710 = vpack.c.bf16 %v588, %v588
  %v711 = vpack.c.bf16 %v590, %v590
  %v712 = vpack.c.bf16 %v616, %v616
  %v713 = vpack.c.bf16 %v618, %v618
  %v714 = vpack.c.bf16 %v644, %v644
  %v715 = vpack.c.bf16 %v646, %v646
  %v716 = vpack.c.bf16 %v672, %v672
  %v717 = vpack.c.bf16 %v674, %v674
  %v718 = vpack.c.bf16 %v700, %v700
  %v719 = vpack.c.bf16 %v702, %v702
  %vm720 = vcmask 60416
  %721 = vst.msk [vmem:[%s3] sm:$0xf] %vm720, %v704
  %722 = vst.msk [vmem:[%s3 + $0x4] sm:$0xf] %vm720, %v705
  %723 = vst.msk [vmem:[%s3 + $0x8] sm:$0xf] %vm720, %v706
  %724 = vst.msk [vmem:[%s3 + $0xc] sm:$0xf] %vm720, %v707
  %725 = vst.msk [vmem:[%s3 + $0x10] sm:$0xf] %vm720, %v708
  %726 = vst.msk [vmem:[%s3 + $0x14] sm:$0xf] %vm720, %v709
  %727 = vst.msk [vmem:[%s3 + $0x18] sm:$0xf] %vm720, %v710
  %728 = vst.msk [vmem:[%s3 + $0x1c] sm:$0xf] %vm720, %v711
  %729 = vst.msk [vmem:[%s3 + $0x20] sm:$0xf] %vm720, %v712
  %730 = vst.msk [vmem:[%s3 + $0x24] sm:$0xf] %vm720, %v713
  %731 = vst.msk [vmem:[%s3 + $0x28] sm:$0xf] %vm720, %v714
  %732 = vst.msk [vmem:[%s3 + $0x2c] sm:$0xf] %vm720, %v715
  %733 = vst.msk [vmem:[%s3 + $0x30] sm:$0xf] %vm720, %v716
  %734 = vst.msk [vmem:[%s3 + $0x34] sm:$0xf] %vm720, %v717
  %735 = vst.msk [vmem:[%s3 + $0x38] sm:$0xf] %vm720, %v718
  %736 = vst.msk [vmem:[%s3 + $0x3c] sm:$0xf] %vm720, %v719
  // Predicated region
  $region14: #{lora_sam_encoder_forward.43} parent=0 // pred_check
    _
  $region15: #{lora_sam_encoder_forward.43} parent=0 // pred_check_branch
    %738 = sbr.rel (0) target = $region17
  $region16: #{lora_sam_encoder_forward.43} parent=0 // pred_region
    _
  $region17: #{lora_sam_encoder_forward.43} parent=0 // pred_fallthru
    _
  // Predicated region
  $region18: #{lora_sam_encoder_forward.43} parent=0 // pred_check
    _
  $region19: #{lora_sam_encoder_forward.43} parent=0 // pred_check_branch
    %740 = sbr.rel (0) target = $region21
  $region20: #{lora_sam_encoder_forward.43} parent=0 // pred_region
    _
  $region21: #{lora_sam_encoder_forward.43} parent=0 // pred_fallthru
    _

// kernel: lora_sam_encoder_forward.49
$region0: #{lora_sam_encoder_forward.49}
  #allocation0 [shape = 'u32[]', space=smem, size = 0x4, offset = 0x4, fixed_abs, tag = 'smem constant byte address 0x4 - core index']
  #allocation1 [shape = 'u32[72,128]{1,0:T(1,128)}', space=vmem, size = 0x9000, scoped, tag = 'internal scratch']
  %s0 = inlined_call_operand.vmem [shape: bf16[32,16], index: 0, kind: input, shape index: {}]
  %s1 = inlined_call_operand.vmem [shape: f32[1,16], index: 1, kind: input, shape index: {}]
  %s2 = inlined_call_operand.vmem [shape: f32[1,16], index: 2, kind: input, shape index: {}]
  %s3 = inlined_call_operand.vmem [shape: bf16[32,16], index: 3, kind: output, shape index: {}]
  %s4 = sld [smem:[#allocation0]]
  $region22: #{lora_sam_encoder_forward.49} parent=0
    _
  %s6 = ssub.s32 1, %s4
  %s7 = scalar_select 0, %s6, %s4
  // Predicated region
  $region2: #{lora_sam_encoder_forward.49} parent=0 // pred_check
    _
  $region3: #{lora_sam_encoder_forward.49} parent=0 // pred_check_branch
    %9 = sbr.rel (0) target = $region5
  $region4: #{lora_sam_encoder_forward.49} parent=0 // pred_region
    _
  $region5: #{lora_sam_encoder_forward.49} parent=0 // pred_fallthru
    _
  // Predicated region
  $region6: #{lora_sam_encoder_forward.49} parent=0 // pred_check
    _
  $region7: #{lora_sam_encoder_forward.49} parent=0 // pred_check_branch
    %11 = sbr.rel (0) target = $region9
  $region8: #{lora_sam_encoder_forward.49} parent=0 // pred_region
    _
  $region9: #{lora_sam_encoder_forward.49} parent=0 // pred_fallthru
    _
  // Predicated region
  $region10: #{lora_sam_encoder_forward.49} parent=0 // pred_check
    _
  $region11: #{lora_sam_encoder_forward.49} parent=0 // pred_check_branch
    %13 = sbr.rel (0) target = $region13
  $region12: #{lora_sam_encoder_forward.49} parent=0 // pred_region
    _
  $region13: #{lora_sam_encoder_forward.49} parent=0 // pred_fallthru
    _
  %v14 = vld [vmem:[%s0] sm:$0xf]
  %v15 = vld [vmem:[%s0 + $0x4] sm:$0xf]
  %v16 = vld [vmem:[%s0 + $0x8] sm:$0xf]
  %v17 = vld [vmem:[%s0 + $0xc] sm:$0xf]
  %v18 = vunpack.c.l.bf16 %v14
  %v19 = vunpack.c.l.bf16 %v15
  %v20 = vunpack.c.l.bf16 %v16
  %v21 = vunpack.c.l.bf16 %v17
  %vm22 = vcmask 130048
  %v23 = vsel %vm22, %v18, 0.0
  %24 = vadd.xlane.f32.xlu0 %v23
  %v25 = vpop.xlane.xlu0 %24
  %v26 = vsel %vm22, %v19, 0.0
  %27 = vadd.xlane.f32.xlu0 %v26
  %v28 = vpop.xlane.xlu0 %27
  %v29 = vsel %vm22, %v20, 0.0
  %30 = vadd.xlane.f32.xlu0 %v29
  %v31 = vpop.xlane.xlu0 %30
  %v32 = vsel %vm22, %v21, 0.0
  %33 = vadd.xlane.f32.xlu0 %v32
  %v34 = vpop.xlane.xlu0 %33
  %v35 = vrcp.pop 16.0
  %v36 = vmul.f32 16.0, %v35
  %v37 = vsub.f32 1.0, %v36
  %v38 = vmul.f32 %v35, %v37
  %v39 = vadd.f32 %v35, %v38
  %vm40 = vweird.f32 %v35
  %v41 = vsel %vm40, %v35, %v39
  %v42 = vmul.f32 %v25, %v41
  %v43 = vmul.f32 %v28, %v41
  %v44 = vmul.f32 %v31, %v41
  %v45 = vmul.f32 %v34, %v41
  %v46 = vsub.f32 %v18, %v42
  %v47 = vsub.f32 %v19, %v43
  %v48 = vsub.f32 %v20, %v44
  %v49 = vsub.f32 %v21, %v45
  %v50 = vmul.f32 %v46, %v46
  %v51 = vmul.f32 %v47, %v47
  %v52 = vmul.f32 %v48, %v48
  %v53 = vmul.f32 %v49, %v49
  %v54 = vsel %vm22, %v50, 0.0
  %55 = vadd.xlane.f32.xlu0 %v54
  %v56 = vpop.xlane.xlu0 %55
  %v57 = vsel %vm22, %v51, 0.0
  %58 = vadd.xlane.f32.xlu0 %v57
  %v59 = vpop.xlane.xlu0 %58
  %v60 = vsel %vm22, %v52, 0.0
  %61 = vadd.xlane.f32.xlu0 %v60
  %v62 = vpop.xlane.xlu0 %61
  %v63 = vsel %vm22, %v53, 0.0
  %64 = vadd.xlane.f32.xlu0 %v63
  %v65 = vpop.xlane.xlu0 %64
  %v66 = vmul.f32 %v56, %v41
  %v67 = vmul.f32 %v59, %v41
  %v68 = vmul.f32 %v62, %v41
  %v69 = vmul.f32 %v65, %v41
  %v70 = vadd.f32 %v66, 1e-06
  %v71 = vadd.f32 %v67, 1e-06
  %v72 = vadd.f32 %v68, 1e-06
  %v73 = vadd.f32 %v69, 1e-06
  %v74 = vrsqrt.pop %v70
  %v75 = vmul.f32 %v74, %v70
  %v76 = vmul.f32 %v75, %v74
  %v77 = vmul.f32 0.5, %v76
  %v78 = vsub.f32 1.5, %v77
  %v79 = vmul.f32 %v74, %v78
  %vm80 = vweird.f32 %v70
  %vm81 = vweird.f32 %v74
  %vm82 = vmor %vm80, %vm81
  %v83 = vsel %vm82, %v74, %v79
  %v84 = vrsqrt.pop %v71
  %v85 = vmul.f32 %v84, %v71
  %v86 = vmul.f32 %v85, %v84
  %v87 = vmul.f32 0.5, %v86
  %v88 = vsub.f32 1.5, %v87
  %v89 = vmul.f32 %v84, %v88
  %vm90 = vweird.f32 %v71
  %vm91 = vweird.f32 %v84
  %vm92 = vmor %vm90, %vm91
  %v93 = vsel %vm92, %v84, %v89
  %v94 = vrsqrt.pop %v72
  %v95 = vmul.f32 %v94, %v72
  %v96 = vmul.f32 %v95, %v94
  %v97 = vmul.f32 0.5, %v96
  %v98 = vsub.f32 1.5, %v97
  %v99 = vmul.f32 %v94, %v98
  %vm100 = vweird.f32 %v72
  %vm101 = vweird.f32 %v94
  %vm102 = vmor %vm100, %vm101
  %v103 = vsel %vm102, %v94, %v99
  %v104 = vrsqrt.pop %v73
  %v105 = vmul.f32 %v104, %v73
  %v106 = vmul.f32 %v105, %v104
  %v107 = vmul.f32 0.5, %v106
  %v108 = vsub.f32 1.5, %v107
  %v109 = vmul.f32 %v104, %v108
  %vm110 = vweird.f32 %v73
  %vm111 = vweird.f32 %v104
  %vm112 = vmor %vm110, %vm111
  %v113 = vsel %vm112, %v104, %v109
  %v114 = vmul.f32 %v46, %v83
  %v115 = vmul.f32 %v47, %v93
  %v116 = vmul.f32 %v48, %v103
  %v117 = vmul.f32 %v49, %v113
  %v118 = vld [vmem:[%s1] sm:$0x1]
  %v120 = vperm.slane %v118, 0
  %v122 = vmul.f32 %v114, %v120
  %v123 = vmul.f32 %v115, %v120
  %v124 = vmul.f32 %v116, %v120
  %v125 = vmul.f32 %v117, %v120
  %v126 = vld [vmem:[%s2] sm:$0x1]
  %v128 = vperm.slane %v126, 0
  %v130 = vadd.f32 %v122, %v128
  %v131 = vadd.f32 %v123, %v128
  %v132 = vadd.f32 %v124, %v128
  %v133 = vadd.f32 %v125, %v128
  %v134 = vpack.c.bf16 %v130, %v130
  %v135 = vpack.c.bf16 %v131, %v131
  %v136 = vpack.c.bf16 %v132, %v132
  %v137 = vpack.c.bf16 %v133, %v133
  %vm138 = vcmask 125952
  %139 = vst.msk [vmem:[%s3] sm:$0xf] %vm138, %v134
  %140 = vst.msk [vmem:[%s3 + $0x4] sm:$0xf] %vm138, %v135
  %141 = vst.msk [vmem:[%s3 + $0x8] sm:$0xf] %vm138, %v136
  %142 = vst.msk [vmem:[%s3 + $0xc] sm:$0xf] %vm138, %v137
  // Predicated region
  $region14: #{lora_sam_encoder_forward.49} parent=0 // pred_check
    _
  $region15: #{lora_sam_encoder_forward.49} parent=0 // pred_check_branch
    %144 = sbr.rel (0) target = $region17
  $region16: #{lora_sam_encoder_forward.49} parent=0 // pred_region
    _
  $region17: #{lora_sam_encoder_forward.49} parent=0 // pred_fallthru
    _
  // Predicated region
  $region18: #{lora_sam_encoder_forward.49} parent=0 // pred_check
    _
  $region19: #{lora_sam_encoder_forward.49} parent=0 // pred_check_branch
    %146 = sbr.rel (0) target = $region21
  $region20: #{lora_sam_encoder_forward.49} parent=0 // pred_region
    _
  $region21: #{lora_sam_encoder_forward.49} parent=0 // pred_fallthru
    _

// kernel: lora_sam_encoder_forward.50
$region0: #{lora_sam_encoder_forward.50}
  #allocation0 [shape = 'u32[]', space=smem, size = 0x4, offset = 0x4, fixed_abs, tag = 'smem constant byte address 0x4 - core index']
  #allocation1 [shape = 'u32[72,128]{1,0:T(1,128)}', space=vmem, size = 0x9000, scoped, tag = 'internal scratch']
  %s0 = inlined_call_operand.vmem [shape: bf16[32,144], index: 0, kind: input, shape index: {}]
  %s1 = inlined_call_operand.vmem [shape: bf16[144,16], index: 1, kind: input, shape index: {}]
  %s2 = inlined_call_operand.vmem [shape: f32[1,16], index: 2, kind: input, shape index: {}]
  %s3 = inlined_call_operand.vmem [shape: bf16[32,16], index: 3, kind: output, shape index: {}]
  %s4 = sld [smem:[#allocation0]]
  $region22: #{lora_sam_encoder_forward.50} parent=0
    _
  %s6 = ssub.s32 1, %s4
  %s7 = scalar_select 0, %s6, %s4
  // Predicated region
  $region2: #{lora_sam_encoder_forward.50} parent=0 // pred_check
    _
  $region3: #{lora_sam_encoder_forward.50} parent=0 // pred_check_branch
    %9 = sbr.rel (0) target = $region5
  $region4: #{lora_sam_encoder_forward.50} parent=0 // pred_region
    _
  $region5: #{lora_sam_encoder_forward.50} parent=0 // pred_fallthru
    _
  // Predicated region
  $region6: #{lora_sam_encoder_forward.50} parent=0 // pred_check
    _
  $region7: #{lora_sam_encoder_forward.50} parent=0 // pred_check_branch
    %11 = sbr.rel (0) target = $region9
  $region8: #{lora_sam_encoder_forward.50} parent=0 // pred_region
    _
  $region9: #{lora_sam_encoder_forward.50} parent=0 // pred_fallthru
    _
  // Predicated region
  $region10: #{lora_sam_encoder_forward.50} parent=0 // pred_check
    _
  $region11: #{lora_sam_encoder_forward.50} parent=0 // pred_check_branch
    %13 = sbr.rel (0) target = $region13
  $region12: #{lora_sam_encoder_forward.50} parent=0 // pred_region
    _
  $region13: #{lora_sam_encoder_forward.50} parent=0 // pred_fallthru
    _
  %v15 = vld [vmem:[%s0] sm:$0xff]
  %v16 = vld [vmem:[%s0 + $0x8] sm:$0xff]
  %v17 = vld [vmem:[%s0 + $0x10] sm:$0xff]
  %v18 = vld [vmem:[%s0 + $0x18] sm:$0xff]
  %v19 = vld [vmem:[%s1] sm:$0xf]
  %v20 = vld [vmem:[%s1 + $0x4] sm:$0xf]
  %v21 = vld [vmem:[%s1 + $0x8] sm:$0xf]
  %v22 = vld [vmem:[%s1 + $0xc] sm:$0xf]
  %v23 = vld [vmem:[%s1 + $0x10] sm:$0xf]
  %v24 = vld [vmem:[%s1 + $0x14] sm:$0xf]
  %v25 = vld [vmem:[%s1 + $0x18] sm:$0xf]
  %v26 = vld [vmem:[%s1 + $0x1c] sm:$0xf]
  %v27 = vld [vmem:[%s1 + $0x20] sm:$0xf]
  %v28 = vld [vmem:[%s1 + $0x24] sm:$0xf]
  %v29 = vld [vmem:[%s1 + $0x28] sm:$0xf]
  %v30 = vld [vmem:[%s1 + $0x2c] sm:$0xf]
  %v31 = vld [vmem:[%s1 + $0x30] sm:$0xf]
  %v32 = vld [vmem:[%s1 + $0x34] sm:$0xf]
  %v33 = vld [vmem:[%s1 + $0x38] sm:$0xf]
  %v34 = vld [vmem:[%s1 + $0x3c] sm:$0xf]
  %v35 = vld [vmem:[%s1 + $0x40] sm:$0xf]
  %v36 = vld [vmem:[%s1 + $0x44] sm:$0xf]
  %v37 = vld [vmem:[%s2] sm:$0x1]
  %v39 = vperm.slane %v37, 0
  %v45 = vunpack.c.l.b16 %v15
  %v46 = vunpack.c.h.b16 %v15
  %v47 = vunpack.c.l.b16 %v16
  %v48 = vunpack.c.h.b16 %v16
  %v49 = vunpack.c.l.b16 %v17
  %v50 = vunpack.c.h.b16 %v17
  %v51 = vunpack.c.l.b16 %v18
  %v52 = vunpack.c.h.b16 %v18
  %v53 = vpack.c.b16 %v47, %v45
  %v54 = vpack.c.b16 %v48, %v46
  %v55 = vpack.c.b16 %v51, %v49
  %v56 = vpack.c.b16 %v52, %v50
  %v77 = vunpack.c.l.b16 %v19
  %v78 = vunpack.c.l.b16 %v20
  %v79 = vunpack.c.l.b16 %v21
  %v80 = vunpack.c.l.b16 %v22
  %v81 = vunpack.c.l.b16 %v23
  %v82 = vunpack.c.l.b16 %v24
  %v83 = vunpack.c.l.b16 %v25
  %v84 = vunpack.c.l.b16 %v26
  %v85 = vunpack.c.l.b16 %v27
  %v86 = vunpack.c.l.b16 %v28
  %v87 = vunpack.c.l.b16 %v29
  %v88 = vunpack.c.l.b16 %v30
  %v89 = vunpack.c.l.b16 %v31
  %v90 = vunpack.c.l.b16 %v32
  %v91 = vunpack.c.l.b16 %v33
  %v92 = vunpack.c.l.b16 %v34
  %v93 = vunpack.c.l.b16 %v35
  %v94 = vunpack.c.l.b16 %v36
  %v95 = vpack.c.b16 %v78, %v77
  %v96 = vpack.c.b16 %v80, %v79
  %v97 = vpack.c.b16 %v82, %v81
  %v98 = vpack.c.b16 %v84, %v83
  %v99 = vpack.c.b16 %v86, %v85
  %v100 = vpack.c.b16 %v88, %v87
  %v101 = vpack.c.b16 %v90, %v89
  %v102 = vpack.c.b16 %v92, %v91
  %v103 = vpack.c.b16 %v94, %v93
  %vm113 = vcmask 130048
  %v115 = vsel %vm113, %v54, 0
  %v118 = vsel %vm113, %v56, 0
  %120 = vmatpush.bf16.msra.mxu0 %v102
  %121 = vmatpush.bf16.msra.mxu0 %v101
  %122 = vmatpush.bf16.msra.mxu0 %v100
  %123 = vmatpush.bf16.msra.mxu0 %v99
  %124 = vmatpush.bf16.msra.mxu0 %v98
  %125 = vmatpush.bf16.msra.mxu0 %v97
  %126 = vmatpush.bf16.msra.mxu0 %v96
  %127 = vmatpush.bf16.msra.mxu0 %v95
  %128 = vmatmul.bf16.gmra.mxu0 %v53
  %v129 = vpop.f32.mrf.mxu0
  %v130 = vadd.f32 %v39, %v129
  %v131 = vpop.f32.mrf.mxu0
  %v132 = vadd.f32 %v39, %v131
  %133 = vmatmul.bf16.gmra.mxu0 %v55
  %v134 = vpop.f32.mrf.mxu0
  %v135 = vadd.f32 %v39, %v134
  %v136 = vpop.f32.mrf.mxu0
  %v137 = vadd.f32 %v39, %v136
  %138 = vdwg.mxu0
  %139 = vmatpush.bf16.msra.mxu0 0
  %140 = vmatpush.bf16.msra.mxu0 0
  %141 = vmatpush.bf16.msra.mxu0 0
  %142 = vmatpush.bf16.msra.mxu0 0
  %143 = vmatpush.bf16.msra.mxu0 0
  %144 = vmatpush.bf16.msra.mxu0 0
  %145 = vmatpush.bf16.msra.mxu0 0
  %146 = vmatpush.bf16.msra.mxu0 %v103
  %147 = vmatmul.bf16.gmra.mxu0 %v115
  %v148 = vpop.f32.mrf.mxu0
  %v149 = vadd.f32 %v130, %v148
  %v150 = vpop.f32.mrf.mxu0
  %v151 = vadd.f32 %v132, %v150
  %152 = vmatmul.bf16.gmra.mxu0 %v118
  %v153 = vpop.f32.mrf.mxu0
  %v154 = vadd.f32 %v135, %v153
  %v155 = vpop.f32.mrf.mxu0
  %v156 = vadd.f32 %v137, %v155
  %157 = vdwg.mxu0
  %v158 = vpack.c.bf16 %v149, %v149
  %v159 = vpack.c.bf16 %v151, %v151
  %v160 = vpack.c.bf16 %v154, %v154
  %v161 = vpack.c.bf16 %v156, %v156
  %vm162 = vcmask 125952
  %163 = vst.msk [vmem:[%s3] sm:$0xf] %vm162, %v158
  %164 = vst.msk [vmem:[%s3 + $0x4] sm:$0xf] %vm162, %v159
  %165 = vst.msk [vmem:[%s3 + $0x8] sm:$0xf] %vm162, %v160
  %166 = vst.msk [vmem:[%s3 + $0xc] sm:$0xf] %vm162, %v161
  // Predicated region
  $region14: #{lora_sam_encoder_forward.50} parent=0 // pred_check
    _
  $region15: #{lora_sam_encoder_forward.50} parent=0 // pred_check_branch
    %168 = sbr.rel (0) target = $region17
  $region16: #{lora_sam_encoder_forward.50} parent=0 // pred_region
    _
  $region17: #{lora_sam_encoder_forward.50} parent=0 // pred_fallthru
    _
  // Predicated region
  $region18: #{lora_sam_encoder_forward.50} parent=0 // pred_check
    _
  $region19: #{lora_sam_encoder_forward.50} parent=0 // pred_check_branch
    %170 = sbr.rel (0) target = $region21
  $region20: #{lora_sam_encoder_forward.50} parent=0 // pred_region
    _
  $region21: #{lora_sam_encoder_forward.50} parent=0 // pred_fallthru
    _

</llo_original>
